<compile_context>
chip_gen: v7x
topology: tpu7x:2x2x1
jax: 0.10.0
libtpu: 0.0.40
codegen_flags: <defaults>
</compile_context>

<pallas_src>
import functools

import jax
import jax.numpy as jnp
from jax.experimental import pallas as pl
from jax.experimental.pallas import tpu as pltpu

F32 = jnp.float32
BF16 = jnp.bfloat16

_VMEM_LIMIT = 32 * 1024 * 1024

# bias-slab row layout (per layer)
_ROW_BQKV, _ROW_BM1, _ROW_BG1, _ROW_BG2, _ROW_BO, _ROW_BM2 = 0, 1, 2, 3, 4, 5
_ROW_N1S, _ROW_N1B, _ROW_N2S, _ROW_N2B, _ROW_N3S, _ROW_N3B = 6, 7, 8, 9, 10, 11
_N_BIAS_ROWS = 12


def _rup(x, m):
    return ((x + m - 1) // m) * m


# ------------------------------ Pallas kernels ------------------------------

def _embed_kernel(x_ref, pe_ref, ea_ref, pe_aff_ref, wn_ref, wp_ref, we_ref,
                  b_ref, x_out_ref, e_out_ref):
    """Fused: pe BatchNorm (eval affine) + node_emb + pe_lin (concat-free via
    zero-padded weights -> single lane-dense [N, Cp] store) + edge embedding."""
    x_pe = pe_ref[...] * pe_aff_ref[0:1, :] + pe_aff_ref[1:2, :]
    xo = jnp.dot(x_ref[...].astype(BF16), wn_ref[...], preferred_element_type=F32)
    xo = xo + jnp.dot(x_pe.astype(BF16), wp_ref[...], preferred_element_type=F32)
    x_out_ref[...] = xo + b_ref[0:1, :]
    e_out_ref[...] = jnp.dot(ea_ref[...].astype(BF16), we_ref[...],
                             preferred_element_type=F32) + b_ref[1:2, :]


def _gps_layers_kernel(src_ref, dst_ref,
                       x0_ref, e_ref, bcol_ref, brow_ref,
                       wg1_ref, wg2_ref, wqkv_ref, wo_ref, wm1_ref, wm2_ref,
                       slab_ref,
                       o_ref,
                       h_ref, agg_ref,
                       *, c, num_heads, head_dim, scale, gine_eps):
    """All GPSConv layers; grid axis = layer.  Node state h lives in VMEM
    scratch across grid steps (never round-trips HBM between layers)."""
    l = pl.program_id(0)
    cp = h_ref.shape[1]
    num_edges = e_ref.shape[0]

    @pl.when(l == 0)
    def _():
        h_ref[...] = x0_ref[...]

    x = h_ref[...]                                   # (N, Cp) f32
    xb = x.astype(BF16)

    # ----- local message passing: GINEConv (index-based, O(E*C)) -----
    agg_ref[...] = jnp.zeros_like(agg_ref)

    @pl.loop(0, num_edges)
    def _(i):
        s = src_ref[i]                               # SMEM scalar reads
        d = dst_ref[i]
        msg = jnp.maximum(h_ref[pl.ds(s, 1), :] + e_ref[pl.ds(i, 1), :], 0.0)
        agg_ref[pl.ds(d, 1), :] = agg_ref[pl.ds(d, 1), :] + msg

    hg = (1.0 + gine_eps) * x + agg_ref[...]
    hg = jnp.maximum(jnp.dot(hg.astype(BF16), wg1_ref[...],
                             preferred_element_type=F32)
                     + slab_ref[_ROW_BG1:_ROW_BG1 + 1, :cp], 0.0)
    hg = jnp.dot(hg.astype(BF16), wg2_ref[...],
                 preferred_element_type=F32) + slab_ref[_ROW_BG2:_ROW_BG2 + 1, :cp]
    h_local = ((hg + x) * slab_ref[_ROW_N1S:_ROW_N1S + 1, :cp]
               + slab_ref[_ROW_N1B:_ROW_N1B + 1, :cp])           # +res, BN

    # ----- global: per-graph (block-diagonal) multi-head self-attention -----
    qkv = jnp.dot(xb, wqkv_ref[...], preferred_element_type=F32)  # packed QKV
    qkv = qkv + slab_ref[_ROW_BQKV:_ROW_BQKV + 1, :qkv.shape[1]]
    mask = bcol_ref[...] == brow_ref[...]            # (N, N) bool, no f32 bias

    proj = jnp.zeros((x.shape[0], cp), F32)
    for hd in range(num_heads):                      # unrolled; true head slices
        lo = hd * head_dim
        q = qkv[:, lo:lo + head_dim]
        k = qkv[:, c + lo:c + lo + head_dim]
        v = qkv[:, 2 * c + lo:2 * c + lo + head_dim]
        s_ = jax.lax.dot_general(q.astype(BF16), k.astype(BF16),
                                 (((1,), (1,)), ((), ())),
                                 preferred_element_type=F32) * scale
        s_ = jnp.where(mask, s_, -1e30)
        s_ = s_ - jnp.max(s_, axis=-1, keepdims=True)
        p = jnp.exp(s_)
        p = p * pl.reciprocal(jnp.sum(p, axis=-1, keepdims=True), approx=True)
        oh = jnp.dot(p.astype(BF16), v.astype(BF16), preferred_element_type=F32)
        # per-head slice of the output projection == concat(heads) @ W_o
        proj = proj + jnp.dot(oh.astype(BF16), wo_ref[hd],
                              preferred_element_type=F32)
    proj = proj + slab_ref[_ROW_BO:_ROW_BO + 1, :cp]
    h_attn = ((proj + x) * slab_ref[_ROW_N2S:_ROW_N2S + 1, :cp]
              + slab_ref[_ROW_N2B:_ROW_N2B + 1, :cp])             # +res, BN

    # ----- combine + FFN + BN -----
    out = h_local + h_attn
    m = jnp.dot(out.astype(BF16), wm1_ref[...], preferred_element_type=F32)
    m = jnp.maximum(m + slab_ref[_ROW_BM1:_ROW_BM1 + 1, :m.shape[1]], 0.0)
    m = jnp.dot(m.astype(BF16), wm2_ref[...],
                preferred_element_type=F32) + slab_ref[_ROW_BM2:_ROW_BM2 + 1, :cp]
    out = out + m
    out = (out * slab_ref[_ROW_N3S:_ROW_N3S + 1, :cp]
           + slab_ref[_ROW_N3B:_ROW_N3B + 1, :cp])

    h_ref[...] = out          # state for next layer (VMEM resident)
    o_ref[...] = out          # HBM writeback happens once, after last layer


def _mlp3(g, w1_ref, w2_ref, w3_ref, b_ref):
    h = jnp.maximum(jnp.dot(g.astype(BF16), w1_ref[...],
                            preferred_element_type=F32) + b_ref[0:1, :], 0.0)
    h = jnp.maximum(jnp.dot(h.astype(BF16), w2_ref[...],
                            preferred_element_type=F32) + b_ref[1:2, :], 0.0)
    return jnp.dot(h.astype(BF16), w3_ref[...],
                   preferred_element_type=F32) + b_ref[2:3, :]


def _head_pool_kernel(batch_ref, h_ref, w1_ref, w2_ref, w3_ref, b_ref, o_ref):
    """Fused global_add_pool (index-based scatter loop) + 3-layer MLP head."""
    num_nodes = h_ref.shape[0]
    o_ref[...] = jnp.zeros_like(o_ref)

    @pl.loop(0, num_nodes)
    def _(i):
        g = batch_ref[i]
        o_ref[pl.ds(g, 1), :] = o_ref[pl.ds(g, 1), :] + h_ref[pl.ds(i, 1), :]

    pooled = o_ref[...]
    o_ref[...] = _mlp3(pooled, w1_ref, w2_ref, w3_ref, b_ref)


def _head_kernel(h_ref, w1_ref, w2_ref, w3_ref, b_ref, o_ref):
    """3-layer MLP head (pool_globally=False variant)."""
    o_ref[...] = _mlp3(h_ref[...], w1_ref, w2_ref, w3_ref, b_ref)


# --------------------------- parameter creation -----------------------------

def _init_linear(key, in_dim, out_dim):
    k1, k2 = jax.random.split(key)
    bound = in_dim ** -0.5
    return {"w": jax.random.uniform(k1, (in_dim, out_dim), F32, -bound, bound),
            "b": jax.random.uniform(k2, (out_dim,), F32, -bound, bound)}


def _init_bn(key, dim):
    k1, k2, k3, k4 = jax.random.split(key, 4)
    return {"gamma": 1.0 + 0.1 * jax.random.normal(k1, (dim,), F32),
            "beta": 0.1 * jax.random.normal(k2, (dim,), F32),
            "mean": 0.1 * jax.random.normal(k3, (dim,), F32),
            "var": 0.5 + jnp.abs(jax.random.normal(k4, (dim,), F32))}


def _bn_affine(bn, eps=1e-5):
    """Fold eval-mode BatchNorm1d into (scale, shift) vectors."""
    s = bn["gamma"] * jax.lax.rsqrt(bn["var"] + eps)
    return s, bn["beta"] - bn["mean"] * s


def _pad2(w, rows, cols):
    return jnp.zeros((rows, cols), F32).at[:w.shape[0], :w.shape[1]].set(w)


def _bf(w):
    return w.astype(BF16)


def init_gps_params(key, *, channels, pe_walk_length, pe_dim, num_edge_channels,
                    num_layers, num_heads):
    """Random (torch-layout-equivalent) init, pre-packed for the kernels:
    weights as zero-padded lane-dense [in, 128k] bf16, per-layer weights stacked
    along a leading L axis, all per-layer biases / BN affines packed into one
    [L, 12, W] f32 slab, MHA in_proj kept packed [Cp, 3C], out_proj split per
    head as [H, head_dim, Cp]."""
    c = channels
    cp = _rup(c, 128)
    wq_w = _rup(3 * c, 128)
    m1_w = _rup(2 * c, 128)
    slab_w = max(cp, wq_w, m1_w)
    head_dim = c // num_heads
    node_dim = c - pe_dim
    keys = jax.random.split(key, 5 + num_layers)

    node_emb = _init_linear(keys[0], c, node_dim)
    pe_lin = _init_linear(keys[1], pe_walk_length, pe_dim)
    pe_norm = _init_bn(keys[2], pe_walk_length)
    edge_emb = _init_linear(keys[3], num_edge_channels, c)

    pe_s, pe_b = _bn_affine(pe_norm)
    pe_affine = jnp.stack([pe_s, pe_b])                                  # [2, P]
    w_node = jnp.zeros((c, cp), F32).at[:, :node_dim].set(node_emb["w"])
    w_pe = jnp.zeros((pe_walk_length, cp), F32).at[:, node_dim:c].set(pe_lin["w"])
    b_cat = jnp.zeros((cp,), F32).at[:c].set(
        jnp.concatenate([node_emb["b"], pe_lin["b"]]))
    w_edge = jnp.zeros((num_edge_channels, cp), F32).at[:, :c].set(edge_emb["w"])
    b_edge = jnp.zeros((cp,), F32).at[:c].set(edge_emb["b"])
    params = {"embed": {"pe_affine": pe_affine, "w_node": _bf(w_node),
                        "w_pe": _bf(w_pe), "w_edge": _bf(w_edge),
                        "bias": jnp.stack([b_cat, b_edge])}}

    w_g1s, w_g2s, w_qkvs, w_os, w_m1s, w_m2s, slabs = [], [], [], [], [], [], []
    for layer in range(num_layers):
        lk = jax.random.split(keys[4 + layer], 9)
        gine1 = _init_linear(lk[0], c, c)
        gine2 = _init_linear(lk[1], c, c)
        attn_in = _init_linear(lk[2], c, 3 * c)      # packed q,k,v (in_proj^T)
        attn_out = _init_linear(lk[3], c, c)
        norm1 = _init_bn(lk[4], c)
        norm2 = _init_bn(lk[5], c)
        norm3 = _init_bn(lk[6], c)
        mlp1 = _init_linear(lk[7], c, 2 * c)
        mlp2 = _init_linear(lk[8], 2 * c, c)

        w_g1s.append(_pad2(gine1["w"], cp, cp))
        w_g2s.append(_pad2(gine2["w"], cp, cp))
        w_qkvs.append(_pad2(attn_in["w"], cp, wq_w))
        w_os.append(jnp.zeros((num_heads, head_dim, cp), F32)
                    .at[:, :, :c].set(attn_out["w"].reshape(num_heads, head_dim, c)))
        w_m1s.append(_pad2(mlp1["w"], cp, m1_w))
        w_m2s.append(_pad2(mlp2["w"], m1_w, cp))

        n1s, n1b = _bn_affine(norm1)
        n2s, n2b = _bn_affine(norm2)
        n3s, n3b = _bn_affine(norm3)
        slab = jnp.zeros((_N_BIAS_ROWS, slab_w), F32)
        slab = slab.at[_ROW_BQKV, :3 * c].set(attn_in["b"])
        slab = slab.at[_ROW_BM1, :2 * c].set(mlp1["b"])
        slab = slab.at[_ROW_BG1, :c].set(gine1["b"])
        slab = slab.at[_ROW_BG2, :c].set(gine2["b"])
        slab = slab.at[_ROW_BO, :c].set(attn_out["b"])
        slab = slab.at[_ROW_BM2, :c].set(mlp2["b"])
        slab = slab.at[_ROW_N1S, :c].set(n1s).at[_ROW_N1B, :c].set(n1b)
        slab = slab.at[_ROW_N2S, :c].set(n2s).at[_ROW_N2B, :c].set(n2b)
        slab = slab.at[_ROW_N3S, :c].set(n3s).at[_ROW_N3B, :c].set(n3b)
        slabs.append(slab)

    params["layers"] = {
        "w_g1": _bf(jnp.stack(w_g1s)), "w_g2": _bf(jnp.stack(w_g2s)),
        "w_qkv": _bf(jnp.stack(w_qkvs)), "w_o": _bf(jnp.stack(w_os)),
        "w_m1": _bf(jnp.stack(w_m1s)), "w_m2": _bf(jnp.stack(w_m2s)),
        "slab": jnp.stack(slabs),
    }

    km = jax.random.split(keys[4 + num_layers], 3)
    m1 = _init_linear(km[0], c, c)
    m2 = _init_linear(km[1], c, c)
    m3 = _init_linear(km[2], c, c)
    hbias = (jnp.zeros((3, cp), F32)
             .at[0, :c].set(m1["b"]).at[1, :c].set(m2["b"]).at[2, :c].set(m3["b"]))
    params["head"] = {"w1": _bf(_pad2(m1["w"], cp, cp)),
                      "w2": _bf(_pad2(m2["w"], cp, cp)),
                      "w3": _bf(_pad2(m3["w"], cp, cp)),
                      "bias": hbias}
    return params


# ------------------------------- forward ------------------------------------

def prepare_graph(edge_index, batch):
    """Precompute graph-structure tensors ONCE outside the jitted forward."""
    n = batch.shape[0]
    src = edge_index[0].astype(jnp.int32)
    dst = edge_index[1].astype(jnp.int32)
    bcol = batch.reshape(n, 1).astype(jnp.int32)
    brow = batch.reshape(1, n).astype(jnp.int32)
    return src, dst, bcol, brow


def build_gps_forward(*, channels, num_heads, num_graphs, pool_globally=True,
                      gine_eps=0.0):
    c = channels
    cp = _rup(c, 128)
    wq_w = _rup(3 * c, 128)
    m1_w = _rup(2 * c, 128)
    slab_w = max(cp, wq_w, m1_w)
    head_dim = c // num_heads
    scale = 1.0 / (head_dim ** 0.5)
    layer_kernel = functools.partial(
        _gps_layers_kernel, c=c, num_heads=num_heads, head_dim=head_dim,
        scale=scale, gine_eps=float(gine_eps))

    @jax.jit
    def forward(params, x, pe, edge_attr, src, dst, bcol, brow, batch):
        n = x.shape[0]
        e_cnt = edge_attr.shape[0]
        num_layers = params["layers"]["w_g1"].shape[0]

        # ---- fused embed (pe BN + node_emb + pe_lin + edge emb) ----
        emb = params["embed"]
        h, e = pl.pallas_call(
            _embed_kernel,
            out_shape=(jax.ShapeDtypeStruct((n, cp), F32),
                       jax.ShapeDtypeStruct((e_cnt, cp), F32)),
            compiler_params=pltpu.CompilerParams(vmem_limit_bytes=_VMEM_LIMIT),
        )(x, pe, edge_attr, emb["pe_affine"], emb["w_node"], emb["w_pe"],
          emb["w_edge"], emb["bias"])

        # ---- ALL GPS layers in one pallas_call, grid over layers ----
        lw = params["layers"]
        cidx = lambda l, s, d: (0, 0)               # constant blocks (resident)
        widx = lambda l, s, d: (l, 0, 0)            # per-layer weight blocks
        h = pl.pallas_call(
            layer_kernel,
            grid_spec=pltpu.PrefetchScalarGridSpec(
                num_scalar_prefetch=2,
                grid=(num_layers,),
                in_specs=[
                    pl.BlockSpec((n, cp), cidx),                       # x0
                    pl.BlockSpec((e_cnt, cp), cidx),                   # e
                    pl.BlockSpec((n, 1), cidx),                        # bcol
                    pl.BlockSpec((1, n), cidx),                        # brow
                    pl.BlockSpec((None, cp, cp), widx),                # w_g1
                    pl.BlockSpec((None, cp, cp), widx),                # w_g2
                    pl.BlockSpec((None, cp, wq_w), widx),              # w_qkv
                    pl.BlockSpec((None, num_heads, head_dim, cp),
                                 lambda l, s, d: (l, 0, 0, 0)),        # w_o
                    pl.BlockSpec((None, cp, m1_w), widx),              # w_m1
                    pl.BlockSpec((None, m1_w, cp), widx),              # w_m2
                    pl.BlockSpec((None, _N_BIAS_ROWS, slab_w), widx),  # bias slab
                ],
                out_specs=pl.BlockSpec((n, cp), cidx),
                scratch_shapes=[pltpu.VMEM((n, cp), F32),              # h state
                                pltpu.VMEM((n, cp), F32)]),            # GINE agg
            out_shape=jax.ShapeDtypeStruct((n, cp), F32),
            compiler_params=pltpu.CompilerParams(
                dimension_semantics=("arbitrary",),
                vmem_limit_bytes=_VMEM_LIMIT),
        )(src, dst, h, e, bcol, brow,
          lw["w_g1"], lw["w_g2"], lw["w_qkv"], lw["w_o"], lw["w_m1"], lw["w_m2"],
          lw["slab"])

        # ---- head ----
        hp = params["head"]
        if pool_globally:
            cid = lambda i, b: (0, 0)
            out = pl.pallas_call(
                _head_pool_kernel,
                grid_spec=pltpu.PrefetchScalarGridSpec(
                    num_scalar_prefetch=1,
                    grid=(1,),
                    in_specs=[pl.BlockSpec((n, cp), cid),
                              pl.BlockSpec((cp, cp), cid),
                              pl.BlockSpec((cp, cp), cid),
                              pl.BlockSpec((cp, cp), cid),
                              pl.BlockSpec((3, cp), cid)],
                    out_specs=pl.BlockSpec((num_graphs, cp), cid)),
                out_shape=jax.ShapeDtypeStruct((num_graphs, cp), F32),
                compiler_params=pltpu.CompilerParams(
                    dimension_semantics=("arbitrary",),
                    vmem_limit_bytes=_VMEM_LIMIT),
            )(batch, h, hp["w1"], hp["w2"], hp["w3"], hp["bias"])
            return out[:, :c]

        out = pl.pallas_call(
            _head_kernel,
            out_shape=jax.ShapeDtypeStruct((n, cp), F32),
            compiler_params=pltpu.CompilerParams(vmem_limit_bytes=_VMEM_LIMIT),
        )(h, hp["w1"], hp["w2"], hp["w3"], hp["bias"])
        return out[:, :c]

    return forward


# --------------------------------- main --------------------------------------

if __name__ == "__main__":
    channels = 32
    pe_walk_length = 8
    pe_dim = 8
    num_edge_channels = 4
    num_layers = 2
    num_heads = 4
    num_nodes = 16
    num_edges = 32
    num_graphs = 2

    key = jax.random.PRNGKey(0)
    kp, kx, kpe, ke, kea = jax.random.split(key, 5)
    params = init_gps_params(kp, channels=channels, pe_walk_length=pe_walk_length,
                             pe_dim=pe_dim, num_edge_channels=num_edge_channels,
                             num_layers=num_layers, num_heads=num_heads)

    x = jax.random.normal(kx, (num_nodes, channels), F32)
    pe = jax.random.normal(kpe, (num_nodes, pe_walk_length), F32)
    edge_attr = jax.random.normal(kea, (num_edges, num_edge_channels), F32)
    batch = jnp.concatenate([jnp.zeros(num_nodes // 2, jnp.int32),
                             jnp.ones(num_nodes - num_nodes // 2, jnp.int32)])

    # COO edges, kept inside their respective graph
    k1, k2, k3, k4 = jax.random.split(ke, 4)
    src0 = jax.random.randint(k1, (num_edges // 2,), 0, num_nodes // 2)
    dst0 = jax.random.randint(k2, (num_edges // 2,), 0, num_nodes // 2)
    src1 = jax.random.randint(k3, (num_edges // 2,), num_nodes // 2, num_nodes)
    dst1 = jax.random.randint(k4, (num_edges // 2,), num_nodes // 2, num_nodes)
    edge_index = jnp.stack([jnp.concatenate([src0, src1]),
                            jnp.concatenate([dst0, dst1])]).astype(jnp.int32)

    # Graph-structure operands prepared once, outside the jitted forward.
    src, dst, bcol, brow = prepare_graph(edge_index, batch)

    forward = build_gps_forward(channels=channels, num_heads=num_heads,
                                num_graphs=num_graphs, pool_globally=True)

    out = forward(params, x, pe, edge_attr, src, dst, bcol, brow, batch)
    out = jax.block_until_ready(out)

    assert out.shape == (num_graphs, channels), out.shape
    assert bool(jnp.all(jnp.isfinite(out)))
    print("KERNEL_OK")
</pallas_src>

<mosaic_0001>
module attributes {stable_mosaic.version = 11 : i64} {
  func.func @_embed_kernel(%arg0: memref<16x32xf32, #tpu.memory_space<vmem>>, %arg1: memref<16x8xf32, #tpu.memory_space<vmem>>, %arg2: memref<32x4xf32, #tpu.memory_space<vmem>>, %arg3: memref<2x8xf32, #tpu.memory_space<vmem>>, %arg4: memref<32x128xbf16, #tpu.memory_space<vmem>>, %arg5: memref<8x128xbf16, #tpu.memory_space<vmem>>, %arg6: memref<4x128xbf16, #tpu.memory_space<vmem>>, %arg7: memref<2x128xf32, #tpu.memory_space<vmem>>, %arg8: memref<16x128xf32, #tpu.memory_space<vmem>>, %arg9: memref<32x128xf32, #tpu.memory_space<vmem>>) attributes {dimension_semantics = [], scalar_prefetch = 0 : i64, scratch_operands = 0 : i64, tpu.core_type = #tpu.core_type<tc>} {
    %c0 = arith.constant 0 : index
    %c0_0 = arith.constant 0 : index
    %0 = vector.load %arg1[%c0, %c0_0] : memref<16x8xf32, #tpu.memory_space<vmem>>, vector<16x8xf32>
    %c0_1 = arith.constant 0 : index
    %c0_2 = arith.constant 0 : index
    %1 = vector.load %arg3[%c0_1, %c0_2] : memref<2x8xf32, #tpu.memory_space<vmem>>, vector<1x8xf32>
    %2 = vector.broadcast %1 : vector<1x8xf32> to vector<16x8xf32>
    %3 = arith.mulf %0, %2 : vector<16x8xf32>
    %c1 = arith.constant 1 : index
    %c0_3 = arith.constant 0 : index
    %4 = vector.load %arg3[%c1, %c0_3] : memref<2x8xf32, #tpu.memory_space<vmem>>, vector<1x8xf32>
    %5 = vector.broadcast %4 : vector<1x8xf32> to vector<16x8xf32>
    %6 = arith.addf %3, %5 : vector<16x8xf32>
    %c0_4 = arith.constant 0 : index
    %c0_5 = arith.constant 0 : index
    %7 = vector.load %arg0[%c0_4, %c0_5] : memref<16x32xf32, #tpu.memory_space<vmem>>, vector<16x32xf32>
    %8 = arith.truncf %7 : vector<16x32xf32> to vector<16x32xbf16>
    %c0_6 = arith.constant 0 : index
    %c0_7 = arith.constant 0 : index
    %9 = vector.load %arg4[%c0_6, %c0_7] : memref<32x128xbf16, #tpu.memory_space<vmem>>, vector<32x128xbf16>
    %cst = arith.constant dense<0.000000e+00> : vector<16x128xf32>
    %10 = tpu.matmul %8, %9, %cst {dimension_numbers = #tpu.dot_dimension_numbers<[1], [0], [0], [1], [0, 0, 1, 1], [], []>} : vector<16x32xbf16>, vector<32x128xbf16>, vector<16x128xf32> -> vector<16x128xf32>
    %11 = arith.truncf %6 : vector<16x8xf32> to vector<16x8xbf16>
    %c0_8 = arith.constant 0 : index
    %c0_9 = arith.constant 0 : index
    %12 = vector.load %arg5[%c0_8, %c0_9] : memref<8x128xbf16, #tpu.memory_space<vmem>>, vector<8x128xbf16>
    %cst_10 = arith.constant dense<0.000000e+00> : vector<16x128xf32>
    %13 = tpu.matmul %11, %12, %cst_10 {dimension_numbers = #tpu.dot_dimension_numbers<[1], [0], [0], [1], [0, 0, 1, 1], [], []>} : vector<16x8xbf16>, vector<8x128xbf16>, vector<16x128xf32> -> vector<16x128xf32>
    %14 = arith.addf %10, %13 : vector<16x128xf32>
    %c0_11 = arith.constant 0 : index
    %c0_12 = arith.constant 0 : index
    %15 = vector.load %arg7[%c0_11, %c0_12] : memref<2x128xf32, #tpu.memory_space<vmem>>, vector<1x128xf32>
    %16 = vector.broadcast %15 : vector<1x128xf32> to vector<16x128xf32>
    %17 = arith.addf %14, %16 : vector<16x128xf32>
    %c0_13 = arith.constant 0 : index
    %c0_14 = arith.constant 0 : index
    %18 = vector.load %arg8[%c0_13, %c0_14] : memref<16x128xf32, #tpu.memory_space<vmem>>, vector<16x128xf32>
    tpu.vector_store %arg8[%c0_13, %c0_14], %17 {strides = array<i32>} : memref<16x128xf32, #tpu.memory_space<vmem>>, vector<16x128xf32>,
    %c0_15 = arith.constant 0 : index
    %c0_16 = arith.constant 0 : index
    %19 = vector.load %arg2[%c0_15, %c0_16] : memref<32x4xf32, #tpu.memory_space<vmem>>, vector<32x4xf32>
    %20 = arith.truncf %19 : vector<32x4xf32> to vector<32x4xbf16>
    %c0_17 = arith.constant 0 : index
    %c0_18 = arith.constant 0 : index
    %21 = vector.load %arg6[%c0_17, %c0_18] : memref<4x128xbf16, #tpu.memory_space<vmem>>, vector<4x128xbf16>
    %cst_19 = arith.constant dense<0.000000e+00> : vector<32x128xf32>
    %22 = tpu.matmul %20, %21, %cst_19 {dimension_numbers = #tpu.dot_dimension_numbers<[1], [0], [0], [1], [0, 0, 1, 1], [], []>} : vector<32x4xbf16>, vector<4x128xbf16>, vector<32x128xf32> -> vector<32x128xf32>
    %c1_20 = arith.constant 1 : index
    %c0_21 = arith.constant 0 : index
    %23 = vector.load %arg7[%c1_20, %c0_21] : memref<2x128xf32, #tpu.memory_space<vmem>>, vector<1x128xf32>
    %24 = vector.broadcast %23 : vector<1x128xf32> to vector<32x128xf32>
    %25 = arith.addf %22, %24 : vector<32x128xf32>
    %c0_22 = arith.constant 0 : index
    %c0_23 = arith.constant 0 : index
    %26 = vector.load %arg9[%c0_22, %c0_23] : memref<32x128xf32, #tpu.memory_space<vmem>>, vector<32x128xf32>
    tpu.vector_store %arg9[%c0_22, %c0_23], %25 {strides = array<i32>} : memref<32x128xf32, #tpu.memory_space<vmem>>, vector<32x128xf32>,
    return
  }
}

module attributes {stable_mosaic.version = 11 : i64} {
  func.func @_gps_layers_kernel(%arg0: i32, %arg1: memref<32xi32, #tpu.memory_space<smem>>, %arg2: memref<32xi32, #tpu.memory_space<smem>>, %arg3: memref<16x128xf32, #tpu.memory_space<vmem>>, %arg4: memref<32x128xf32, #tpu.memory_space<vmem>>, %arg5: memref<16x1xi32, #tpu.memory_space<vmem>>, %arg6: memref<1x16xi32, #tpu.memory_space<vmem>>, %arg7: memref<1x128x128xbf16, #tpu.memory_space<vmem>>, %arg8: memref<1x128x128xbf16, #tpu.memory_space<vmem>>, %arg9: memref<1x128x128xbf16, #tpu.memory_space<vmem>>, %arg10: memref<1x4x8x128xbf16, #tpu.memory_space<vmem>>, %arg11: memref<1x128x128xbf16, #tpu.memory_space<vmem>>, %arg12: memref<1x128x128xbf16, #tpu.memory_space<vmem>>, %arg13: memref<1x12x128xf32, #tpu.memory_space<vmem>>, %arg14: memref<16x128xf32, #tpu.memory_space<vmem>>, %arg15: memref<16x128xf32, #tpu.memory_space<vmem>>, %arg16: memref<16x128xf32, #tpu.memory_space<vmem>>) attributes {dimension_semantics = [#tpu.dimension_semantics<arbitrary>], iteration_bounds = array<i64: 2>, scalar_prefetch = 2 : i64, scratch_operands = 2 : i64, tpu.core_type = #tpu.core_type<tc>, window_params = [{pipeline_mode = #tpu.pipeline_mode<synchronous>, transform_indices = @transform_0, window_bounds = array<i64: 16, 128>}, {pipeline_mode = #tpu.pipeline_mode<synchronous>, transform_indices = @transform_1, window_bounds = array<i64: 32, 128>}, {pipeline_mode = #tpu.pipeline_mode<synchronous>, transform_indices = @transform_2, window_bounds = array<i64: 16, 1>}, {pipeline_mode = #tpu.pipeline_mode<synchronous>, transform_indices = @transform_3, window_bounds = array<i64: 1, 16>}, {transform_indices = @transform_4, window_bounds = array<i64: 1, 128, 128>}, {transform_indices = @transform_5, window_bounds = array<i64: 1, 128, 128>}, {transform_indices = @transform_6, window_bounds = array<i64: 1, 128, 128>}, {transform_indices = @transform_7, window_bounds = array<i64: 1, 4, 8, 128>}, {transform_indices = @transform_8, window_bounds = array<i64: 1, 128, 128>}, {transform_indices = @transform_9, window_bounds = array<i64: 1, 128, 128>}, {transform_indices = @transform_10, window_bounds = array<i64: 1, 12, 128>}, {pipeline_mode = #tpu.pipeline_mode<synchronous>, transform_indices = @transform_11, window_bounds = array<i64: 16, 128>}]} {
    %c0_i32 = arith.constant 0 : i32
    %0 = arith.cmpi eq, %arg0, %c0_i32 : i32
    %1 = arith.extui %0 : i1 to i32
    %c0_i32_0 = arith.constant 0 : i32
    %2 = arith.cmpi ne, %1, %c0_i32_0 : i32
    scf.if %2 {
      %c0_109 = arith.constant 0 : index
      %c0_110 = arith.constant 0 : index
      %207 = vector.load %arg3[%c0_109, %c0_110] : memref<16x128xf32, #tpu.memory_space<vmem>>, vector<16x128xf32>
      %c0_111 = arith.constant 0 : index
      %c0_112 = arith.constant 0 : index
      %208 = vector.load %arg15[%c0_111, %c0_112] : memref<16x128xf32, #tpu.memory_space<vmem>>, vector<16x128xf32>
      tpu.vector_store %arg15[%c0_111, %c0_112], %207 {strides = array<i32>} : memref<16x128xf32, #tpu.memory_space<vmem>>, vector<16x128xf32>,
    } else {
    }
    %c0 = arith.constant 0 : index
    %c0_1 = arith.constant 0 : index
    %3 = vector.load %arg15[%c0, %c0_1] : memref<16x128xf32, #tpu.memory_space<vmem>>, vector<16x128xf32>
    %4 = arith.truncf %3 : vector<16x128xf32> to vector<16x128xbf16>
    %cst = arith.constant 0.000000e+00 : f32
    %5 = vector.broadcast %cst : f32 to vector<16x128xf32>
    %c0_2 = arith.constant 0 : index
    %c0_3 = arith.constant 0 : index
    %6 = vector.load %arg16[%c0_2, %c0_3] : memref<16x128xf32, #tpu.memory_space<vmem>>, vector<16x128xf32>
    tpu.vector_store %arg16[%c0_2, %c0_3], %5 {strides = array<i32>} : memref<16x128xf32, #tpu.memory_space<vmem>>, vector<16x128xf32>,
    %c0_i32_4 = arith.constant 0 : i32
    %c32_i32 = arith.constant 32 : i32
    %7 = arith.addi %c0_i32_4, %c32_i32 : i32
    %c1_i32 = arith.constant 1 : i32
    scf.for %arg17 = %c0_i32_4 to %7 step %c1_i32  : i32 {
      %c1_i32_109 = arith.constant 1 : i32
      %207 = arith.muli %arg17, %c1_i32_109 : i32
      %c0_i32_110 = arith.constant 0 : i32
      %208 = arith.addi %c0_i32_110, %207 : i32
      %209 = arith.index_cast %208 : i32 to index
      %210 = memref.load %arg1[%209] : memref<32xi32, #tpu.memory_space<smem>>
      %211 = arith.index_cast %208 : i32 to index
      %212 = memref.load %arg2[%211] : memref<32xi32, #tpu.memory_space<smem>>
      %213 = arith.index_cast %210 : i32 to index
      %c0_111 = arith.constant 0 : index
      %214 = vector.load %arg15[%213, %c0_111] : memref<16x128xf32, #tpu.memory_space<vmem>>, vector<1x128xf32>
      %215 = arith.index_cast %208 : i32 to index
      %c0_112 = arith.constant 0 : index
      %216 = vector.load %arg4[%215, %c0_112] : memref<32x128xf32, #tpu.memory_space<vmem>>, vector<1x128xf32>
      %217 = arith.addf %214, %216 : vector<1x128xf32>
      %cst_113 = arith.constant 0.000000e+00 : f32
      %218 = vector.broadcast %cst_113 : f32 to vector<1x128xf32>
      %219 = arith.maximumf %217, %218 : vector<1x128xf32>
      %220 = arith.index_cast %212 : i32 to index
      %c0_114 = arith.constant 0 : index
      %221 = vector.load %arg16[%220, %c0_114] : memref<16x128xf32, #tpu.memory_space<vmem>>, vector<1x128xf32>
      %222 = arith.addf %221, %219 : vector<1x128xf32>
      %223 = arith.index_cast %212 : i32 to index
      %c0_115 = arith.constant 0 : index
      %224 = vector.load %arg16[%223, %c0_115] : memref<16x128xf32, #tpu.memory_space<vmem>>, vector<1x128xf32>
      tpu.vector_store %arg16[%223, %c0_115], %222 {strides = array<i32>} : memref<16x128xf32, #tpu.memory_space<vmem>>, vector<1x128xf32>,
    }
    %c32_i32_5 = arith.constant 32 : i32
    %cst_6 = arith.constant 1.000000e+00 : f32
    %8 = vector.broadcast %cst_6 : f32 to vector<16x128xf32>
    %9 = arith.mulf %8, %3 : vector<16x128xf32>
    %c0_7 = arith.constant 0 : index
    %c0_8 = arith.constant 0 : index
    %10 = vector.load %arg16[%c0_7, %c0_8] : memref<16x128xf32, #tpu.memory_space<vmem>>, vector<16x128xf32>
    %11 = arith.addf %9, %10 : vector<16x128xf32>
    %12 = arith.truncf %11 : vector<16x128xf32> to vector<16x128xbf16>
    %c0_9 = arith.constant 0 : index
    %c0_10 = arith.constant 0 : index
    %c0_11 = arith.constant 0 : index
    %13 = vector.load %arg7[%c0_9, %c0_10, %c0_11] : memref<1x128x128xbf16, #tpu.memory_space<vmem>>, vector<1x128x128xbf16>
    %14 = vector.shape_cast %13 : vector<1x128x128xbf16> to vector<128x128xbf16>
    %cst_12 = arith.constant dense<0.000000e+00> : vector<16x128xf32>
    %15 = tpu.matmul %12, %14, %cst_12 {dimension_numbers = #tpu.dot_dimension_numbers<[1], [0], [0], [1], [0, 0, 1, 1], [], []>} : vector<16x128xbf16>, vector<128x128xbf16>, vector<16x128xf32> -> vector<16x128xf32>
    %c0_13 = arith.constant 0 : index
    %c2 = arith.constant 2 : index
    %c0_14 = arith.constant 0 : index
    %16 = vector.load %arg13[%c0_13, %c2, %c0_14] : memref<1x12x128xf32, #tpu.memory_space<vmem>>, vector<1x1x128xf32>
    %17 = vector.shape_cast %16 : vector<1x1x128xf32> to vector<1x128xf32>
    %18 = vector.broadcast %17 : vector<1x128xf32> to vector<16x128xf32>
    %19 = arith.addf %15, %18 : vector<16x128xf32>
    %cst_15 = arith.constant 0.000000e+00 : f32
    %20 = vector.broadcast %cst_15 : f32 to vector<16x128xf32>
    %21 = arith.maximumf %19, %20 : vector<16x128xf32>
    %22 = arith.truncf %21 : vector<16x128xf32> to vector<16x128xbf16>
    %c0_16 = arith.constant 0 : index
    %c0_17 = arith.constant 0 : index
    %c0_18 = arith.constant 0 : index
    %23 = vector.load %arg8[%c0_16, %c0_17, %c0_18] : memref<1x128x128xbf16, #tpu.memory_space<vmem>>, vector<1x128x128xbf16>
    %24 = vector.shape_cast %23 : vector<1x128x128xbf16> to vector<128x128xbf16>
    %cst_19 = arith.constant dense<0.000000e+00> : vector<16x128xf32>
    %25 = tpu.matmul %22, %24, %cst_19 {dimension_numbers = #tpu.dot_dimension_numbers<[1], [0], [0], [1], [0, 0, 1, 1], [], []>} : vector<16x128xbf16>, vector<128x128xbf16>, vector<16x128xf32> -> vector<16x128xf32>
    %c0_20 = arith.constant 0 : index
    %c3 = arith.constant 3 : index
    %c0_21 = arith.constant 0 : index
    %26 = vector.load %arg13[%c0_20, %c3, %c0_21] : memref<1x12x128xf32, #tpu.memory_space<vmem>>, vector<1x1x128xf32>
    %27 = vector.shape_cast %26 : vector<1x1x128xf32> to vector<1x128xf32>
    %28 = vector.broadcast %27 : vector<1x128xf32> to vector<16x128xf32>
    %29 = arith.addf %25, %28 : vector<16x128xf32>
    %30 = arith.addf %29, %3 : vector<16x128xf32>
    %c0_22 = arith.constant 0 : index
    %c6 = arith.constant 6 : index
    %c0_23 = arith.constant 0 : index
    %31 = vector.load %arg13[%c0_22, %c6, %c0_23] : memref<1x12x128xf32, #tpu.memory_space<vmem>>, vector<1x1x128xf32>
    %32 = vector.shape_cast %31 : vector<1x1x128xf32> to vector<1x128xf32>
    %33 = vector.broadcast %32 : vector<1x128xf32> to vector<16x128xf32>
    %34 = arith.mulf %30, %33 : vector<16x128xf32>
    %c0_24 = arith.constant 0 : index
    %c7 = arith.constant 7 : index
    %c0_25 = arith.constant 0 : index
    %35 = vector.load %arg13[%c0_24, %c7, %c0_25] : memref<1x12x128xf32, #tpu.memory_space<vmem>>, vector<1x1x128xf32>
    %36 = vector.shape_cast %35 : vector<1x1x128xf32> to vector<1x128xf32>
    %37 = vector.broadcast %36 : vector<1x128xf32> to vector<16x128xf32>
    %38 = arith.addf %34, %37 : vector<16x128xf32>
    %c0_26 = arith.constant 0 : index
    %c0_27 = arith.constant 0 : index
    %c0_28 = arith.constant 0 : index
    %39 = vector.load %arg9[%c0_26, %c0_27, %c0_28] : memref<1x128x128xbf16, #tpu.memory_space<vmem>>, vector<1x128x128xbf16>
    %40 = vector.shape_cast %39 : vector<1x128x128xbf16> to vector<128x128xbf16>
    %cst_29 = arith.constant dense<0.000000e+00> : vector<16x128xf32>
    %41 = tpu.matmul %4, %40, %cst_29 {dimension_numbers = #tpu.dot_dimension_numbers<[1], [0], [0], [1], [0, 0, 1, 1], [], []>} : vector<16x128xbf16>, vector<128x128xbf16>, vector<16x128xf32> -> vector<16x128xf32>
    %c0_30 = arith.constant 0 : index
    %c0_31 = arith.constant 0 : index
    %c0_32 = arith.constant 0 : index
    %42 = vector.load %arg13[%c0_30, %c0_31, %c0_32] : memref<1x12x128xf32, #tpu.memory_space<vmem>>, vector<1x1x128xf32>
    %43 = vector.shape_cast %42 : vector<1x1x128xf32> to vector<1x128xf32>
    %44 = vector.broadcast %43 : vector<1x128xf32> to vector<16x128xf32>
    %45 = arith.addf %41, %44 : vector<16x128xf32>
    %c0_33 = arith.constant 0 : index
    %c0_34 = arith.constant 0 : index
    %46 = vector.load %arg5[%c0_33, %c0_34] : memref<16x1xi32, #tpu.memory_space<vmem>>, vector<16x1xi32>
    %c0_35 = arith.constant 0 : index
    %c0_36 = arith.constant 0 : index
    %47 = vector.load %arg6[%c0_35, %c0_36] : memref<1x16xi32, #tpu.memory_space<vmem>>, vector<1x16xi32>
    %48 = vector.broadcast %46 : vector<16x1xi32> to vector<16x16xi32>
    %49 = vector.broadcast %47 : vector<1x16xi32> to vector<16x16xi32>
    %50 = arith.cmpi eq, %48, %49 : vector<16x16xi32>
    %cst_37 = arith.constant 0.000000e+00 : f32
    %51 = vector.broadcast %cst_37 : f32 to vector<16x128xf32>
    %52 = vector.extract_strided_slice %45 {offsets = [0, 0], sizes = [16, 8], strides = [1, 1]} : vector<16x128xf32> to vector<16x8xf32>
    %53 = vector.extract_strided_slice %45 {offsets = [0, 32], sizes = [16, 8], strides = [1, 1]} : vector<16x128xf32> to vector<16x8xf32>
    %54 = vector.extract_strided_slice %45 {offsets = [0, 64], sizes = [16, 8], strides = [1, 1]} : vector<16x128xf32> to vector<16x8xf32>
    %55 = arith.truncf %52 : vector<16x8xf32> to vector<16x8xbf16>
    %56 = arith.truncf %53 : vector<16x8xf32> to vector<16x8xbf16>
    %cst_38 = arith.constant dense<0.000000e+00> : vector<16x16xf32>
    %57 = tpu.matmul %55, %56, %cst_38 {dimension_numbers = #tpu.dot_dimension_numbers<[1], [1], [0], [0], [0, 0, 1, 0], [], []>} : vector<16x8xbf16>, vector<16x8xbf16>, vector<16x16xf32> -> vector<16x16xf32>
    %cst_39 = arith.constant 0.353553385 : f32
    %58 = vector.broadcast %cst_39 : f32 to vector<16x16xf32>
    %59 = arith.mulf %57, %58 : vector<16x16xf32>
    %cst_40 = arith.constant -1.000000e+30 : f32
    %60 = vector.broadcast %cst_40 : f32 to vector<16x16xf32>
    %61 = arith.select %50, %59, %60 : vector<16x16xi1>, vector<16x16xf32>
    %cst_41 = arith.constant dense<0xFF800000> : vector<16xf32>
    %62 = vector.multi_reduction <maximumf>, %61, %cst_41 [1] : vector<16x16xf32> to vector<16xf32>
    %63 = vector.shape_cast %62 : vector<16xf32> to vector<16x1xf32>
    %64 = vector.broadcast %63 : vector<16x1xf32> to vector<16x16xf32>
    %65 = arith.subf %61, %64 : vector<16x16xf32>
    %66 = math.exp %65 : vector<16x16xf32>
    %cst_42 = arith.constant dense<0.000000e+00> : vector<16xf32>
    %67 = vector.multi_reduction <add>, %66, %cst_42 [1] : vector<16x16xf32> to vector<16xf32>
    %68 = vector.shape_cast %67 : vector<16xf32> to vector<16x1xf32>
    %69 = tpu.reciprocal %68 {approx = true} : vector<16x1xf32> -> vector<16x1xf32>
    %70 = vector.broadcast %69 : vector<16x1xf32> to vector<16x16xf32>
    %71 = arith.mulf %66, %70 : vector<16x16xf32>
    %72 = arith.truncf %71 : vector<16x16xf32> to vector<16x16xbf16>
    %73 = arith.truncf %54 : vector<16x8xf32> to vector<16x8xbf16>
    %cst_43 = arith.constant dense<0.000000e+00> : vector<16x8xf32>
    %74 = tpu.matmul %72, %73, %cst_43 {dimension_numbers = #tpu.dot_dimension_numbers<[1], [0], [0], [1], [0, 0, 1, 1], [], []>} : vector<16x16xbf16>, vector<16x8xbf16>, vector<16x8xf32> -> vector<16x8xf32>
    %75 = arith.truncf %74 : vector<16x8xf32> to vector<16x8xbf16>
    %c0_44 = arith.constant 0 : index
    %c0_45 = arith.constant 0 : index
    %c0_46 = arith.constant 0 : index
    %c0_47 = arith.constant 0 : index
    %76 = vector.load %arg10[%c0_44, %c0_45, %c0_46, %c0_47] : memref<1x4x8x128xbf16, #tpu.memory_space<vmem>>, vector<1x1x8x128xbf16>
    %77 = vector.shape_cast %76 : vector<1x1x8x128xbf16> to vector<8x128xbf16>
    %cst_48 = arith.constant dense<0.000000e+00> : vector<16x128xf32>
    %78 = tpu.matmul %75, %77, %cst_48 {dimension_numbers = #tpu.dot_dimension_numbers<[1], [0], [0], [1], [0, 0, 1, 1], [], []>} : vector<16x8xbf16>, vector<8x128xbf16>, vector<16x128xf32> -> vector<16x128xf32>
    %79 = arith.addf %51, %78 : vector<16x128xf32>
    %80 = vector.extract_strided_slice %45 {offsets = [0, 8], sizes = [16, 8], strides = [1, 1]} : vector<16x128xf32> to vector<16x8xf32>
    %81 = vector.extract_strided_slice %45 {offsets = [0, 40], sizes = [16, 8], strides = [1, 1]} : vector<16x128xf32> to vector<16x8xf32>
    %82 = vector.extract_strided_slice %45 {offsets = [0, 72], sizes = [16, 8], strides = [1, 1]} : vector<16x128xf32> to vector<16x8xf32>
    %83 = arith.truncf %80 : vector<16x8xf32> to vector<16x8xbf16>
    %84 = arith.truncf %81 : vector<16x8xf32> to vector<16x8xbf16>
    %cst_49 = arith.constant dense<0.000000e+00> : vector<16x16xf32>
    %85 = tpu.matmul %83, %84, %cst_49 {dimension_numbers = #tpu.dot_dimension_numbers<[1], [1], [0], [0], [0, 0, 1, 0], [], []>} : vector<16x8xbf16>, vector<16x8xbf16>, vector<16x16xf32> -> vector<16x16xf32>
    %cst_50 = arith.constant 0.353553385 : f32
    %86 = vector.broadcast %cst_50 : f32 to vector<16x16xf32>
    %87 = arith.mulf %85, %86 : vector<16x16xf32>
    %cst_51 = arith.constant -1.000000e+30 : f32
    %88 = vector.broadcast %cst_51 : f32 to vector<16x16xf32>
    %89 = arith.select %50, %87, %88 : vector<16x16xi1>, vector<16x16xf32>
    %cst_52 = arith.constant dense<0xFF800000> : vector<16xf32>
    %90 = vector.multi_reduction <maximumf>, %89, %cst_52 [1] : vector<16x16xf32> to vector<16xf32>
    %91 = vector.shape_cast %90 : vector<16xf32> to vector<16x1xf32>
    %92 = vector.broadcast %91 : vector<16x1xf32> to vector<16x16xf32>
    %93 = arith.subf %89, %92 : vector<16x16xf32>
    %94 = math.exp %93 : vector<16x16xf32>
    %cst_53 = arith.constant dense<0.000000e+00> : vector<16xf32>
    %95 = vector.multi_reduction <add>, %94, %cst_53 [1] : vector<16x16xf32> to vector<16xf32>
    %96 = vector.shape_cast %95 : vector<16xf32> to vector<16x1xf32>
    %97 = tpu.reciprocal %96 {approx = true} : vector<16x1xf32> -> vector<16x1xf32>
    %98 = vector.broadcast %97 : vector<16x1xf32> to vector<16x16xf32>
    %99 = arith.mulf %94, %98 : vector<16x16xf32>
    %100 = arith.truncf %99 : vector<16x16xf32> to vector<16x16xbf16>
    %101 = arith.truncf %82 : vector<16x8xf32> to vector<16x8xbf16>
    %cst_54 = arith.constant dense<0.000000e+00> : vector<16x8xf32>
    %102 = tpu.matmul %100, %101, %cst_54 {dimension_numbers = #tpu.dot_dimension_numbers<[1], [0], [0], [1], [0, 0, 1, 1], [], []>} : vector<16x16xbf16>, vector<16x8xbf16>, vector<16x8xf32> -> vector<16x8xf32>
    %103 = arith.truncf %102 : vector<16x8xf32> to vector<16x8xbf16>
    %c0_55 = arith.constant 0 : index
    %c1 = arith.constant 1 : index
    %c0_56 = arith.constant 0 : index
    %c0_57 = arith.constant 0 : index
    %104 = vector.load %arg10[%c0_55, %c1, %c0_56, %c0_57] : memref<1x4x8x128xbf16, #tpu.memory_space<vmem>>, vector<1x1x8x128xbf16>
    %105 = vector.shape_cast %104 : vector<1x1x8x128xbf16> to vector<8x128xbf16>
    %cst_58 = arith.constant dense<0.000000e+00> : vector<16x128xf32>
    %106 = tpu.matmul %103, %105, %cst_58 {dimension_numbers = #tpu.dot_dimension_numbers<[1], [0], [0], [1], [0, 0, 1, 1], [], []>} : vector<16x8xbf16>, vector<8x128xbf16>, vector<16x128xf32> -> vector<16x128xf32>
    %107 = arith.addf %79, %106 : vector<16x128xf32>
    %108 = vector.extract_strided_slice %45 {offsets = [0, 16], sizes = [16, 8], strides = [1, 1]} : vector<16x128xf32> to vector<16x8xf32>
    %109 = vector.extract_strided_slice %45 {offsets = [0, 48], sizes = [16, 8], strides = [1, 1]} : vector<16x128xf32> to vector<16x8xf32>
    %110 = vector.extract_strided_slice %45 {offsets = [0, 80], sizes = [16, 8], strides = [1, 1]} : vector<16x128xf32> to vector<16x8xf32>
    %111 = arith.truncf %108 : vector<16x8xf32> to vector<16x8xbf16>
    %112 = arith.truncf %109 : vector<16x8xf32> to vector<16x8xbf16>
    %cst_59 = arith.constant dense<0.000000e+00> : vector<16x16xf32>
    %113 = tpu.matmul %111, %112, %cst_59 {dimension_numbers = #tpu.dot_dimension_numbers<[1], [1], [0], [0], [0, 0, 1, 0], [], []>} : vector<16x8xbf16>, vector<16x8xbf16>, vector<16x16xf32> -> vector<16x16xf32>
    %cst_60 = arith.constant 0.353553385 : f32
    %114 = vector.broadcast %cst_60 : f32 to vector<16x16xf32>
    %115 = arith.mulf %113, %114 : vector<16x16xf32>
    %cst_61 = arith.constant -1.000000e+30 : f32
    %116 = vector.broadcast %cst_61 : f32 to vector<16x16xf32>
    %117 = arith.select %50, %115, %116 : vector<16x16xi1>, vector<16x16xf32>
    %cst_62 = arith.constant dense<0xFF800000> : vector<16xf32>
    %118 = vector.multi_reduction <maximumf>, %117, %cst_62 [1] : vector<16x16xf32> to vector<16xf32>
    %119 = vector.shape_cast %118 : vector<16xf32> to vector<16x1xf32>
    %120 = vector.broadcast %119 : vector<16x1xf32> to vector<16x16xf32>
    %121 = arith.subf %117, %120 : vector<16x16xf32>
    %122 = math.exp %121 : vector<16x16xf32>
    %cst_63 = arith.constant dense<0.000000e+00> : vector<16xf32>
    %123 = vector.multi_reduction <add>, %122, %cst_63 [1] : vector<16x16xf32> to vector<16xf32>
    %124 = vector.shape_cast %123 : vector<16xf32> to vector<16x1xf32>
    %125 = tpu.reciprocal %124 {approx = true} : vector<16x1xf32> -> vector<16x1xf32>
    %126 = vector.broadcast %125 : vector<16x1xf32> to vector<16x16xf32>
    %127 = arith.mulf %122, %126 : vector<16x16xf32>
    %128 = arith.truncf %127 : vector<16x16xf32> to vector<16x16xbf16>
    %129 = arith.truncf %110 : vector<16x8xf32> to vector<16x8xbf16>
    %cst_64 = arith.constant dense<0.000000e+00> : vector<16x8xf32>
    %130 = tpu.matmul %128, %129, %cst_64 {dimension_numbers = #tpu.dot_dimension_numbers<[1], [0], [0], [1], [0, 0, 1, 1], [], []>} : vector<16x16xbf16>, vector<16x8xbf16>, vector<16x8xf32> -> vector<16x8xf32>
    %131 = arith.truncf %130 : vector<16x8xf32> to vector<16x8xbf16>
    %c0_65 = arith.constant 0 : index
    %c2_66 = arith.constant 2 : index
    %c0_67 = arith.constant 0 : index
    %c0_68 = arith.constant 0 : index
    %132 = vector.load %arg10[%c0_65, %c2_66, %c0_67, %c0_68] : memref<1x4x8x128xbf16, #tpu.memory_space<vmem>>, vector<1x1x8x128xbf16>
    %133 = vector.shape_cast %132 : vector<1x1x8x128xbf16> to vector<8x128xbf16>
    %cst_69 = arith.constant dense<0.000000e+00> : vector<16x128xf32>
    %134 = tpu.matmul %131, %133, %cst_69 {dimension_numbers = #tpu.dot_dimension_numbers<[1], [0], [0], [1], [0, 0, 1, 1], [], []>} : vector<16x8xbf16>, vector<8x128xbf16>, vector<16x128xf32> -> vector<16x128xf32>
    %135 = arith.addf %107, %134 : vector<16x128xf32>
    %136 = vector.extract_strided_slice %45 {offsets = [0, 24], sizes = [16, 8], strides = [1, 1]} : vector<16x128xf32> to vector<16x8xf32>
    %137 = vector.extract_strided_slice %45 {offsets = [0, 56], sizes = [16, 8], strides = [1, 1]} : vector<16x128xf32> to vector<16x8xf32>
    %138 = vector.extract_strided_slice %45 {offsets = [0, 88], sizes = [16, 8], strides = [1, 1]} : vector<16x128xf32> to vector<16x8xf32>
    %139 = arith.truncf %136 : vector<16x8xf32> to vector<16x8xbf16>
    %140 = arith.truncf %137 : vector<16x8xf32> to vector<16x8xbf16>
    %cst_70 = arith.constant dense<0.000000e+00> : vector<16x16xf32>
    %141 = tpu.matmul %139, %140, %cst_70 {dimension_numbers = #tpu.dot_dimension_numbers<[1], [1], [0], [0], [0, 0, 1, 0], [], []>} : vector<16x8xbf16>, vector<16x8xbf16>, vector<16x16xf32> -> vector<16x16xf32>
    %cst_71 = arith.constant 0.353553385 : f32
    %142 = vector.broadcast %cst_71 : f32 to vector<16x16xf32>
    %143 = arith.mulf %141, %142 : vector<16x16xf32>
    %cst_72 = arith.constant -1.000000e+30 : f32
    %144 = vector.broadcast %cst_72 : f32 to vector<16x16xf32>
    %145 = arith.select %50, %143, %144 : vector<16x16xi1>, vector<16x16xf32>
    %cst_73 = arith.constant dense<0xFF800000> : vector<16xf32>
    %146 = vector.multi_reduction <maximumf>, %145, %cst_73 [1] : vector<16x16xf32> to vector<16xf32>
    %147 = vector.shape_cast %146 : vector<16xf32> to vector<16x1xf32>
    %148 = vector.broadcast %147 : vector<16x1xf32> to vector<16x16xf32>
    %149 = arith.subf %145, %148 : vector<16x16xf32>
    %150 = math.exp %149 : vector<16x16xf32>
    %cst_74 = arith.constant dense<0.000000e+00> : vector<16xf32>
    %151 = vector.multi_reduction <add>, %150, %cst_74 [1] : vector<16x16xf32> to vector<16xf32>
    %152 = vector.shape_cast %151 : vector<16xf32> to vector<16x1xf32>
    %153 = tpu.reciprocal %152 {approx = true} : vector<16x1xf32> -> vector<16x1xf32>
    %154 = vector.broadcast %153 : vector<16x1xf32> to vector<16x16xf32>
    %155 = arith.mulf %150, %154 : vector<16x16xf32>
    %156 = arith.truncf %155 : vector<16x16xf32> to vector<16x16xbf16>
    %157 = arith.truncf %138 : vector<16x8xf32> to vector<16x8xbf16>
    %cst_75 = arith.constant dense<0.000000e+00> : vector<16x8xf32>
    %158 = tpu.matmul %156, %157, %cst_75 {dimension_numbers = #tpu.dot_dimension_numbers<[1], [0], [0], [1], [0, 0, 1, 1], [], []>} : vector<16x16xbf16>, vector<16x8xbf16>, vector<16x8xf32> -> vector<16x8xf32>
    %159 = arith.truncf %158 : vector<16x8xf32> to vector<16x8xbf16>
    %c0_76 = arith.constant 0 : index
    %c3_77 = arith.constant 3 : index
    %c0_78 = arith.constant 0 : index
    %c0_79 = arith.constant 0 : index
    %160 = vector.load %arg10[%c0_76, %c3_77, %c0_78, %c0_79] : memref<1x4x8x128xbf16, #tpu.memory_space<vmem>>, vector<1x1x8x128xbf16>
    %161 = vector.shape_cast %160 : vector<1x1x8x128xbf16> to vector<8x128xbf16>
    %cst_80 = arith.constant dense<0.000000e+00> : vector<16x128xf32>
    %162 = tpu.matmul %159, %161, %cst_80 {dimension_numbers = #tpu.dot_dimension_numbers<[1], [0], [0], [1], [0, 0, 1, 1], [], []>} : vector<16x8xbf16>, vector<8x128xbf16>, vector<16x128xf32> -> vector<16x128xf32>
    %163 = arith.addf %135, %162 : vector<16x128xf32>
    %c0_81 = arith.constant 0 : index
    %c4 = arith.constant 4 : index
    %c0_82 = arith.constant 0 : index
    %164 = vector.load %arg13[%c0_81, %c4, %c0_82] : memref<1x12x128xf32, #tpu.memory_space<vmem>>, vector<1x1x128xf32>
    %165 = vector.shape_cast %164 : vector<1x1x128xf32> to vector<1x128xf32>
    %166 = vector.broadcast %165 : vector<1x128xf32> to vector<16x128xf32>
    %167 = arith.addf %163, %166 : vector<16x128xf32>
    %168 = arith.addf %167, %3 : vector<16x128xf32>
    %c0_83 = arith.constant 0 : index
    %c8 = arith.constant 8 : index
    %c0_84 = arith.constant 0 : index
    %169 = vector.load %arg13[%c0_83, %c8, %c0_84] : memref<1x12x128xf32, #tpu.memory_space<vmem>>, vector<1x1x128xf32>
    %170 = vector.shape_cast %169 : vector<1x1x128xf32> to vector<1x128xf32>
    %171 = vector.broadcast %170 : vector<1x128xf32> to vector<16x128xf32>
    %172 = arith.mulf %168, %171 : vector<16x128xf32>
    %c0_85 = arith.constant 0 : index
    %c9 = arith.constant 9 : index
    %c0_86 = arith.constant 0 : index
    %173 = vector.load %arg13[%c0_85, %c9, %c0_86] : memref<1x12x128xf32, #tpu.memory_space<vmem>>, vector<1x1x128xf32>
    %174 = vector.shape_cast %173 : vector<1x1x128xf32> to vector<1x128xf32>
    %175 = vector.broadcast %174 : vector<1x128xf32> to vector<16x128xf32>
    %176 = arith.addf %172, %175 : vector<16x128xf32>
    %177 = arith.addf %38, %176 : vector<16x128xf32>
    %178 = arith.truncf %177 : vector<16x128xf32> to vector<16x128xbf16>
    %c0_87 = arith.constant 0 : index
    %c0_88 = arith.constant 0 : index
    %c0_89 = arith.constant 0 : index
    %179 = vector.load %arg11[%c0_87, %c0_88, %c0_89] : memref<1x128x128xbf16, #tpu.memory_space<vmem>>, vector<1x128x128xbf16>
    %180 = vector.shape_cast %179 : vector<1x128x128xbf16> to vector<128x128xbf16>
    %cst_90 = arith.constant dense<0.000000e+00> : vector<16x128xf32>
    %181 = tpu.matmul %178, %180, %cst_90 {dimension_numbers = #tpu.dot_dimension_numbers<[1], [0], [0], [1], [0, 0, 1, 1], [], []>} : vector<16x128xbf16>, vector<128x128xbf16>, vector<16x128xf32> -> vector<16x128xf32>
    %c0_91 = arith.constant 0 : index
    %c1_92 = arith.constant 1 : index
    %c0_93 = arith.constant 0 : index
    %182 = vector.load %arg13[%c0_91, %c1_92, %c0_93] : memref<1x12x128xf32, #tpu.memory_space<vmem>>, vector<1x1x128xf32>
    %183 = vector.shape_cast %182 : vector<1x1x128xf32> to vector<1x128xf32>
    %184 = vector.broadcast %183 : vector<1x128xf32> to vector<16x128xf32>
    %185 = arith.addf %181, %184 : vector<16x128xf32>
    %cst_94 = arith.constant 0.000000e+00 : f32
    %186 = vector.broadcast %cst_94 : f32 to vector<16x128xf32>
    %187 = arith.maximumf %185, %186 : vector<16x128xf32>
    %188 = arith.truncf %187 : vector<16x128xf32> to vector<16x128xbf16>
    %c0_95 = arith.constant 0 : index
    %c0_96 = arith.constant 0 : index
    %c0_97 = arith.constant 0 : index
    %189 = vector.load %arg12[%c0_95, %c0_96, %c0_97] : memref<1x128x128xbf16, #tpu.memory_space<vmem>>, vector<1x128x128xbf16>
    %190 = vector.shape_cast %189 : vector<1x128x128xbf16> to vector<128x128xbf16>
    %cst_98 = arith.constant dense<0.000000e+00> : vector<16x128xf32>
    %191 = tpu.matmul %188, %190, %cst_98 {dimension_numbers = #tpu.dot_dimension_numbers<[1], [0], [0], [1], [0, 0, 1, 1], [], []>} : vector<16x128xbf16>, vector<128x128xbf16>, vector<16x128xf32> -> vector<16x128xf32>
    %c0_99 = arith.constant 0 : index
    %c5 = arith.constant 5 : index
    %c0_100 = arith.constant 0 : index
    %192 = vector.load %arg13[%c0_99, %c5, %c0_100] : memref<1x12x128xf32, #tpu.memory_space<vmem>>, vector<1x1x128xf32>
    %193 = vector.shape_cast %192 : vector<1x1x128xf32> to vector<1x128xf32>
    %194 = vector.broadcast %193 : vector<1x128xf32> to vector<16x128xf32>
    %195 = arith.addf %191, %194 : vector<16x128xf32>
    %196 = arith.addf %177, %195 : vector<16x128xf32>
    %c0_101 = arith.constant 0 : index
    %c10 = arith.constant 10 : index
    %c0_102 = arith.constant 0 : index
    %197 = vector.load %arg13[%c0_101, %c10, %c0_102] : memref<1x12x128xf32, #tpu.memory_space<vmem>>, vector<1x1x128xf32>
    %198 = vector.shape_cast %197 : vector<1x1x128xf32> to vector<1x128xf32>
    %199 = vector.broadcast %198 : vector<1x128xf32> to vector<16x128xf32>
    %200 = arith.mulf %196, %199 : vector<16x128xf32>
    %c0_103 = arith.constant 0 : index
    %c11 = arith.constant 11 : index
    %c0_104 = arith.constant 0 : index
    %201 = vector.load %arg13[%c0_103, %c11, %c0_104] : memref<1x12x128xf32, #tpu.memory_space<vmem>>, vector<1x1x128xf32>
    %202 = vector.shape_cast %201 : vector<1x1x128xf32> to vector<1x128xf32>
    %203 = vector.broadcast %202 : vector<1x128xf32> to vector<16x128xf32>
    %204 = arith.addf %200, %203 : vector<16x128xf32>
    %c0_105 = arith.constant 0 : index
    %c0_106 = arith.constant 0 : index
    %205 = vector.load %arg15[%c0_105, %c0_106] : memref<16x128xf32, #tpu.memory_space<vmem>>, vector<16x128xf32>
    tpu.vector_store %arg15[%c0_105, %c0_106], %204 {strides = array<i32>} : memref<16x128xf32, #tpu.memory_space<vmem>>, vector<16x128xf32>,
    %c0_107 = arith.constant 0 : index
    %c0_108 = arith.constant 0 : index
    %206 = vector.load %arg14[%c0_107, %c0_108] : memref<16x128xf32, #tpu.memory_space<vmem>>, vector<16x128xf32>
    tpu.vector_store %arg14[%c0_107, %c0_108], %204 {strides = array<i32>} : memref<16x128xf32, #tpu.memory_space<vmem>>, vector<16x128xf32>,
    return
  }
  func.func @transform_0(%arg0: i32, %arg1: memref<32xi32, #tpu.memory_space<smem>>, %arg2: memref<32xi32, #tpu.memory_space<smem>>) -> (i32, i32) {
    %c0_i32 = arith.constant 0 : i32
    %c0_i32_0 = arith.constant 0 : i32
    %c0_i32_1 = arith.constant 0 : i32
    return %c0_i32, %c0_i32_0 : i32, i32
  }
  func.func @transform_1(%arg0: i32, %arg1: memref<32xi32, #tpu.memory_space<smem>>, %arg2: memref<32xi32, #tpu.memory_space<smem>>) -> (i32, i32) {
    %c0_i32 = arith.constant 0 : i32
    %c0_i32_0 = arith.constant 0 : i32
    %c0_i32_1 = arith.constant 0 : i32
    return %c0_i32, %c0_i32_0 : i32, i32
  }
  func.func @transform_2(%arg0: i32, %arg1: memref<32xi32, #tpu.memory_space<smem>>, %arg2: memref<32xi32, #tpu.memory_space<smem>>) -> (i32, i32) {
    %c0_i32 = arith.constant 0 : i32
    %c0_i32_0 = arith.constant 0 : i32
    %c0_i32_1 = arith.constant 0 : i32
    return %c0_i32, %c0_i32_0 : i32, i32
  }
  func.func @transform_3(%arg0: i32, %arg1: memref<32xi32, #tpu.memory_space<smem>>, %arg2: memref<32xi32, #tpu.memory_space<smem>>) -> (i32, i32) {
    %c0_i32 = arith.constant 0 : i32
    %c0_i32_0 = arith.constant 0 : i32
    %c0_i32_1 = arith.constant 0 : i32
    return %c0_i32, %c0_i32_0 : i32, i32
  }
  func.func @transform_4(%arg0: i32, %arg1: memref<32xi32, #tpu.memory_space<smem>>, %arg2: memref<32xi32, #tpu.memory_space<smem>>) -> (i32, i32, i32) {
    %c0_i32 = arith.constant 0 : i32
    %c0_i32_0 = arith.constant 0 : i32
    %c0_i32_1 = arith.constant 0 : i32
    return %arg0, %c0_i32, %c0_i32_0 : i32, i32, i32
  }
  func.func @transform_5(%arg0: i32, %arg1: memref<32xi32, #tpu.memory_space<smem>>, %arg2: memref<32xi32, #tpu.memory_space<smem>>) -> (i32, i32, i32) {
    %c0_i32 = arith.constant 0 : i32
    %c0_i32_0 = arith.constant 0 : i32
    %c0_i32_1 = arith.constant 0 : i32
    return %arg0, %c0_i32, %c0_i32_0 : i32, i32, i32
  }
  func.func @transform_6(%arg0: i32, %arg1: memref<32xi32, #tpu.memory_space<smem>>, %arg2: memref<32xi32, #tpu.memory_space<smem>>) -> (i32, i32, i32) {
    %c0_i32 = arith.constant 0 : i32
    %c0_i32_0 = arith.constant 0 : i32
    %c0_i32_1 = arith.constant 0 : i32
    return %arg0, %c0_i32, %c0_i32_0 : i32, i32, i32
  }
  func.func @transform_7(%arg0: i32, %arg1: memref<32xi32, #tpu.memory_space<smem>>, %arg2: memref<32xi32, #tpu.memory_space<smem>>) -> (i32, i32, i32, i32) {
    %c0_i32 = arith.constant 0 : i32
    %c0_i32_0 = arith.constant 0 : i32
    %c0_i32_1 = arith.constant 0 : i32
    %c0_i32_2 = arith.constant 0 : i32
    return %arg0, %c0_i32, %c0_i32_0, %c0_i32_1 : i32, i32, i32, i32
  }
  func.func @transform_8(%arg0: i32, %arg1: memref<32xi32, #tpu.memory_space<smem>>, %arg2: memref<32xi32, #tpu.memory_space<smem>>) -> (i32, i32, i32) {
    %c0_i32 = arith.constant 0 : i32
    %c0_i32_0 = arith.constant 0 : i32
    %c0_i32_1 = arith.constant 0 : i32
    return %arg0, %c0_i32, %c0_i32_0 : i32, i32, i32
  }
  func.func @transform_9(%arg0: i32, %arg1: memref<32xi32, #tpu.memory_space<smem>>, %arg2: memref<32xi32, #tpu.memory_space<smem>>) -> (i32, i32, i32) {
    %c0_i32 = arith.constant 0 : i32
    %c0_i32_0 = arith.constant 0 : i32
    %c0_i32_1 = arith.constant 0 : i32
    return %arg0, %c0_i32, %c0_i32_0 : i32, i32, i32
  }
  func.func @transform_10(%arg0: i32, %arg1: memref<32xi32, #tpu.memory_space<smem>>, %arg2: memref<32xi32, #tpu.memory_space<smem>>) -> (i32, i32, i32) {
    %c0_i32 = arith.constant 0 : i32
    %c0_i32_0 = arith.constant 0 : i32
    %c0_i32_1 = arith.constant 0 : i32
    return %arg0, %c0_i32, %c0_i32_0 : i32, i32, i32
  }
  func.func @transform_11(%arg0: i32, %arg1: memref<32xi32, #tpu.memory_space<smem>>, %arg2: memref<32xi32, #tpu.memory_space<smem>>) -> (i32, i32) {
    %c0_i32 = arith.constant 0 : i32
    %c0_i32_0 = arith.constant 0 : i32
    %c0_i32_1 = arith.constant 0 : i32
    return %c0_i32, %c0_i32_0 : i32, i32
  }
}

module attributes {stable_mosaic.version = 11 : i64} {
  func.func @_head_pool_kernel(%arg0: i32, %arg1: memref<16xi32, #tpu.memory_space<smem>>, %arg2: memref<16x128xf32, #tpu.memory_space<vmem>>, %arg3: memref<128x128xbf16, #tpu.memory_space<vmem>>, %arg4: memref<128x128xbf16, #tpu.memory_space<vmem>>, %arg5: memref<128x128xbf16, #tpu.memory_space<vmem>>, %arg6: memref<3x128xf32, #tpu.memory_space<vmem>>, %arg7: memref<2x128xf32, #tpu.memory_space<vmem>>) attributes {dimension_semantics = [#tpu.dimension_semantics<arbitrary>], iteration_bounds = array<i64: 1>, scalar_prefetch = 1 : i64, scratch_operands = 0 : i64, tpu.core_type = #tpu.core_type<tc>, window_params = [{pipeline_mode = #tpu.pipeline_mode<synchronous>, transform_indices = @transform_0, window_bounds = array<i64: 16, 128>}, {pipeline_mode = #tpu.pipeline_mode<synchronous>, transform_indices = @transform_1, window_bounds = array<i64: 128, 128>}, {pipeline_mode = #tpu.pipeline_mode<synchronous>, transform_indices = @transform_2, window_bounds = array<i64: 128, 128>}, {pipeline_mode = #tpu.pipeline_mode<synchronous>, transform_indices = @transform_3, window_bounds = array<i64: 128, 128>}, {pipeline_mode = #tpu.pipeline_mode<synchronous>, transform_indices = @transform_4, window_bounds = array<i64: 3, 128>}, {pipeline_mode = #tpu.pipeline_mode<synchronous>, transform_indices = @transform_5, window_bounds = array<i64: 2, 128>}]} {
    %cst = arith.constant 0.000000e+00 : f32
    %0 = vector.broadcast %cst : f32 to vector<2x128xf32>
    %c0 = arith.constant 0 : index
    %c0_0 = arith.constant 0 : index
    %1 = vector.load %arg7[%c0, %c0_0] : memref<2x128xf32, #tpu.memory_space<vmem>>, vector<2x128xf32>
    tpu.vector_store %arg7[%c0, %c0_0], %0 {strides = array<i32>} : memref<2x128xf32, #tpu.memory_space<vmem>>, vector<2x128xf32>,
    %c0_i32 = arith.constant 0 : i32
    %c16_i32 = arith.constant 16 : i32
    %2 = arith.addi %c0_i32, %c16_i32 : i32
    %c1_i32 = arith.constant 1 : i32
    scf.for %arg8 = %c0_i32 to %2 step %c1_i32  : i32 {
      %c1_i32_21 = arith.constant 1 : i32
      %27 = arith.muli %arg8, %c1_i32_21 : i32
      %c0_i32_22 = arith.constant 0 : i32
      %28 = arith.addi %c0_i32_22, %27 : i32
      %29 = arith.index_cast %28 : i32 to index
      %30 = memref.load %arg1[%29] : memref<16xi32, #tpu.memory_space<smem>>
      %31 = arith.index_cast %30 : i32 to index
      %c0_23 = arith.constant 0 : index
      %32 = vector.load %arg7[%31, %c0_23] : memref<2x128xf32, #tpu.memory_space<vmem>>, vector<1x128xf32>
      %33 = arith.index_cast %28 : i32 to index
      %c0_24 = arith.constant 0 : index
      %34 = vector.load %arg2[%33, %c0_24] : memref<16x128xf32, #tpu.memory_space<vmem>>, vector<1x128xf32>
      %35 = arith.addf %32, %34 : vector<1x128xf32>
      %36 = arith.index_cast %30 : i32 to index
      %c0_25 = arith.constant 0 : index
      %37 = vector.load %arg7[%36, %c0_25] : memref<2x128xf32, #tpu.memory_space<vmem>>, vector<1x128xf32>
      tpu.vector_store %arg7[%36, %c0_25], %35 {strides = array<i32>} : memref<2x128xf32, #tpu.memory_space<vmem>>, vector<1x128xf32>,
    }
    %c16_i32_1 = arith.constant 16 : i32
    %c0_2 = arith.constant 0 : index
    %c0_3 = arith.constant 0 : index
    %3 = vector.load %arg7[%c0_2, %c0_3] : memref<2x128xf32, #tpu.memory_space<vmem>>, vector<2x128xf32>
    %4 = arith.truncf %3 : vector<2x128xf32> to vector<2x128xbf16>
    %c0_4 = arith.constant 0 : index
    %c0_5 = arith.constant 0 : index
    %5 = vector.load %arg3[%c0_4, %c0_5] : memref<128x128xbf16, #tpu.memory_space<vmem>>, vector<128x128xbf16>
    %cst_6 = arith.constant dense<0.000000e+00> : vector<2x128xf32>
    %6 = tpu.matmul %4, %5, %cst_6 {dimension_numbers = #tpu.dot_dimension_numbers<[1], [0], [0], [1], [0, 0, 1, 1], [], []>} : vector<2x128xbf16>, vector<128x128xbf16>, vector<2x128xf32> -> vector<2x128xf32>
    %c0_7 = arith.constant 0 : index
    %c0_8 = arith.constant 0 : index
    %7 = vector.load %arg6[%c0_7, %c0_8] : memref<3x128xf32, #tpu.memory_space<vmem>>, vector<1x128xf32>
    %8 = vector.broadcast %7 : vector<1x128xf32> to vector<2x128xf32>
    %9 = arith.addf %6, %8 : vector<2x128xf32>
    %cst_9 = arith.constant 0.000000e+00 : f32
    %10 = vector.broadcast %cst_9 : f32 to vector<2x128xf32>
    %11 = arith.maximumf %9, %10 : vector<2x128xf32>
    %12 = arith.truncf %11 : vector<2x128xf32> to vector<2x128xbf16>
    %c0_10 = arith.constant 0 : index
    %c0_11 = arith.constant 0 : index
    %13 = vector.load %arg4[%c0_10, %c0_11] : memref<128x128xbf16, #tpu.memory_space<vmem>>, vector<128x128xbf16>
    %cst_12 = arith.constant dense<0.000000e+00> : vector<2x128xf32>
    %14 = tpu.matmul %12, %13, %cst_12 {dimension_numbers = #tpu.dot_dimension_numbers<[1], [0], [0], [1], [0, 0, 1, 1], [], []>} : vector<2x128xbf16>, vector<128x128xbf16>, vector<2x128xf32> -> vector<2x128xf32>
    %c1 = arith.constant 1 : index
    %c0_13 = arith.constant 0 : index
    %15 = vector.load %arg6[%c1, %c0_13] : memref<3x128xf32, #tpu.memory_space<vmem>>, vector<1x128xf32>
    %16 = vector.broadcast %15 : vector<1x128xf32> to vector<2x128xf32>
    %17 = arith.addf %14, %16 : vector<2x128xf32>
    %cst_14 = arith.constant 0.000000e+00 : f32
    %18 = vector.broadcast %cst_14 : f32 to vector<2x128xf32>
    %19 = arith.maximumf %17, %18 : vector<2x128xf32>
    %20 = arith.truncf %19 : vector<2x128xf32> to vector<2x128xbf16>
    %c0_15 = arith.constant 0 : index
    %c0_16 = arith.constant 0 : index
    %21 = vector.load %arg5[%c0_15, %c0_16] : memref<128x128xbf16, #tpu.memory_space<vmem>>, vector<128x128xbf16>
    %cst_17 = arith.constant dense<0.000000e+00> : vector<2x128xf32>
    %22 = tpu.matmul %20, %21, %cst_17 {dimension_numbers = #tpu.dot_dimension_numbers<[1], [0], [0], [1], [0, 0, 1, 1], [], []>} : vector<2x128xbf16>, vector<128x128xbf16>, vector<2x128xf32> -> vector<2x128xf32>
    %c2 = arith.constant 2 : index
    %c0_18 = arith.constant 0 : index
    %23 = vector.load %arg6[%c2, %c0_18] : memref<3x128xf32, #tpu.memory_space<vmem>>, vector<1x128xf32>
    %24 = vector.broadcast %23 : vector<1x128xf32> to vector<2x128xf32>
    %25 = arith.addf %22, %24 : vector<2x128xf32>
    %c0_19 = arith.constant 0 : index
    %c0_20 = arith.constant 0 : index
    %26 = vector.load %arg7[%c0_19, %c0_20] : memref<2x128xf32, #tpu.memory_space<vmem>>, vector<2x128xf32>
    tpu.vector_store %arg7[%c0_19, %c0_20], %25 {strides = array<i32>} : memref<2x128xf32, #tpu.memory_space<vmem>>, vector<2x128xf32>,
    return
  }
  func.func @transform_0(%arg0: i32, %arg1: memref<16xi32, #tpu.memory_space<smem>>) -> (i32, i32) {
    %c0_i32 = arith.constant 0 : i32
    %c0_i32_0 = arith.constant 0 : i32
    %c0_i32_1 = arith.constant 0 : i32
    return %c0_i32, %c0_i32_0 : i32, i32
  }
  func.func @transform_1(%arg0: i32, %arg1: memref<16xi32, #tpu.memory_space<smem>>) -> (i32, i32) {
    %c0_i32 = arith.constant 0 : i32
    %c0_i32_0 = arith.constant 0 : i32
    %c0_i32_1 = arith.constant 0 : i32
    return %c0_i32, %c0_i32_0 : i32, i32
  }
  func.func @transform_2(%arg0: i32, %arg1: memref<16xi32, #tpu.memory_space<smem>>) -> (i32, i32) {
    %c0_i32 = arith.constant 0 : i32
    %c0_i32_0 = arith.constant 0 : i32
    %c0_i32_1 = arith.constant 0 : i32
    return %c0_i32, %c0_i32_0 : i32, i32
  }
  func.func @transform_3(%arg0: i32, %arg1: memref<16xi32, #tpu.memory_space<smem>>) -> (i32, i32) {
    %c0_i32 = arith.constant 0 : i32
    %c0_i32_0 = arith.constant 0 : i32
    %c0_i32_1 = arith.constant 0 : i32
    return %c0_i32, %c0_i32_0 : i32, i32
  }
  func.func @transform_4(%arg0: i32, %arg1: memref<16xi32, #tpu.memory_space<smem>>) -> (i32, i32) {
    %c0_i32 = arith.constant 0 : i32
    %c0_i32_0 = arith.constant 0 : i32
    %c0_i32_1 = arith.constant 0 : i32
    return %c0_i32, %c0_i32_0 : i32, i32
  }
  func.func @transform_5(%arg0: i32, %arg1: memref<16xi32, #tpu.memory_space<smem>>) -> (i32, i32) {
    %c0_i32 = arith.constant 0 : i32
    %c0_i32_0 = arith.constant 0 : i32
    %c0_i32_1 = arith.constant 0 : i32
    return %c0_i32, %c0_i32_0 : i32, i32
  }
}

</mosaic_0001>

<llo_original>
// kernel: forward.3
$region0: #{forward.3}
  #allocation0 [shape = 'u32[]', space=smem, size = 0x4, offset = 0x4, fixed_abs, tag = 'smem constant byte address 0x4 - core index']
  #allocation1 [shape = 'u32[144,128]{1,0:T(1,128)}', space=vmem, size = 0x12000, scoped, tag = 'internal scratch']
  %s0 = inlined_call_operand.hbm [shape: f32[16,32], index: 0, kind: input, shape index: {}]
  %s1 = inlined_call_operand.vmem [shape: f32[16,8], index: 1, kind: input, shape index: {}]
  %s2 = inlined_call_operand.vmem [shape: f32[32,4], index: 2, kind: input, shape index: {}]
  %s3 = inlined_call_operand.vmem [shape: f32[2,8], index: 3, kind: input, shape index: {}]
  %s4 = inlined_call_operand.vmem [shape: bf16[32,128], index: 4, kind: input, shape index: {}]
  %s5 = inlined_call_operand.hbm [shape: bf16[8,128], index: 5, kind: input, shape index: {}]
  %s6 = inlined_call_operand.hbm [shape: bf16[4,128], index: 6, kind: input, shape index: {}]
  %s7 = inlined_call_operand.hbm [shape: f32[2,128], index: 7, kind: input, shape index: {}]
  %s8 = inlined_call_operand.vmem [shape: f32[16,128], index: 8, kind: output, shape index: {0}]
  %s9 = inlined_call_operand.vmem [shape: f32[32,128], index: 9, kind: output, shape index: {1}]
  %10 = xla_tuple %s8, %s9
  %s11 = sld [smem:[#allocation0]]
  $region66: #{forward.3} parent=0
    _
  %s13 = ssub.s32 1, %s11
  %s14 = scalar_select 0, %s13, %s11
  $region1: #{forward.3} parent=0
    #allocation2 [shape = 'u8[8192]{0}', space=vmem, size = 0x2000, scoped, tag = 'input window, operand 0, single buffered']
    #allocation3 [shape = 's32[1]{0}', space=sflag, size = 0x4, scoped, tag = 'scoped memory for forward.3']
    #allocation4 [shape = 'u8[2048]{0}', space=vmem, size = 0x800, scoped, tag = 'input window, operand 5, single buffered']
    #allocation5 [shape = 's32[1]{0}', space=sflag, size = 0x4, scoped, tag = 'scoped memory for forward.3']
    #allocation6 [shape = 'u8[1024]{0}', space=vmem, size = 0x400, scoped, tag = 'input window, operand 6, single buffered']
    #allocation7 [shape = 'u8[1024]{0}', space=vmem, size = 0x400, scoped, tag = 'input window, operand 7, single buffered']
    #allocation8 [shape = 's32[1]{0}', space=sflag, size = 0x4, scoped, tag = 'scoped memory for forward.3']
    %15 = vsyncpa [#allocation3], 0
    %16 = vsyncpa [#allocation5], 0
    %17 = vsyncpa [#allocation8], 0
    // Predicated region
    $region2: #{forward.3} parent=1 // pred_check
      _
    $region3: #{forward.3} parent=1 // pred_check_branch
      %19 = sbr.rel (0) target = $region5
    $region4: #{forward.3} parent=1 // pred_region
      %s21 = ssub.s32 256, 256
      %22 = vsyncadd [#allocation3], %s21
      %s23 = sshll.u32 [#allocation2], 4
      %s24 = int_to_ptr.vmem [resolvable:$true] %s23
      %29 = dma.hbm_to_vmem [thread:$0]  %s0, 256, %s24, [#allocation3], 128, 128, 8
    $region5: #{forward.3} parent=1 // pred_fallthru
      _
    // Predicated region
    $region6: #{forward.3} parent=1 // pred_check
      _
    $region7: #{forward.3} parent=1 // pred_check_branch
      %31 = sbr.rel (0) target = $region9
    $region8: #{forward.3} parent=1 // pred_region
      _
    $region9: #{forward.3} parent=1 // pred_fallthru
      _
    // Predicated region
    $region10: #{forward.3} parent=1 // pred_check
      _
    $region11: #{forward.3} parent=1 // pred_check_branch
      %33 = sbr.rel (0) target = $region13
    $region12: #{forward.3} parent=1 // pred_region
      _
    $region13: #{forward.3} parent=1 // pred_fallthru
      _
    // Predicated region
    $region14: #{forward.3} parent=1 // pred_check
      _
    $region15: #{forward.3} parent=1 // pred_check_branch
      %35 = sbr.rel (0) target = $region17
    $region16: #{forward.3} parent=1 // pred_region
      _
    $region17: #{forward.3} parent=1 // pred_fallthru
      _
    // Predicated region
    $region18: #{forward.3} parent=1 // pred_check
      _
    $region19: #{forward.3} parent=1 // pred_check_branch
      %37 = sbr.rel (0) target = $region21
    $region20: #{forward.3} parent=1 // pred_region
      _
    $region21: #{forward.3} parent=1 // pred_fallthru
      _
    // Predicated region
    $region22: #{forward.3} parent=1 // pred_check
      _
    $region23: #{forward.3} parent=1 // pred_check_branch
      %39 = sbr.rel (0) target = $region25
    $region24: #{forward.3} parent=1 // pred_region
      %s41 = ssub.s32 64, 64
      %42 = vsyncadd [#allocation5], %s41
      %s44 = sshll.u32 [#allocation4], 4
      %s45 = int_to_ptr.vmem [resolvable:$true] %s44
      %47 = dma.hbm_to_vmem [thread:$0]  %s5, 64, %s45, [#allocation5]
    $region25: #{forward.3} parent=1 // pred_fallthru
      _
    // Predicated region
    $region26: #{forward.3} parent=1 // pred_check
      _
    $region27: #{forward.3} parent=1 // pred_check_branch
      %49 = sbr.rel (0) target = $region29
    $region28: #{forward.3} parent=1 // pred_region
      %s51 = ssub.s32 32, 32
      %52 = vsyncadd [#allocation5], %s51
      %s54 = sshll.u32 [#allocation6], 4
      %s55 = int_to_ptr.vmem [resolvable:$true] %s54
      %57 = dma.hbm_to_vmem [thread:$0]  %s6, 32, %s55, [#allocation5]
    $region29: #{forward.3} parent=1 // pred_fallthru
      _
    // Predicated region
    $region30: #{forward.3} parent=1 // pred_check
      _
    $region31: #{forward.3} parent=1 // pred_check_branch
      %59 = sbr.rel (0) target = $region33
    $region32: #{forward.3} parent=1 // pred_region
      %s61 = ssub.s32 32, 32
      %62 = vsyncadd [#allocation8], %s61
      %s64 = sshll.u32 [#allocation7], 4
      %s65 = int_to_ptr.vmem [resolvable:$true] %s64
      %67 = dma.hbm_to_vmem [thread:$0]  %s7, 32, %s65, [#allocation8]
    $region33: #{forward.3} parent=1 // pred_fallthru
      _
    // Predicated region
    $region34: #{forward.3} parent=1 // pred_check
      _
    $region35: #{forward.3} parent=1 // pred_check_branch
      %69 = sbr.rel (0) target = $region37
    $region36: #{forward.3} parent=1 // pred_region
      %70 = dma.done [#allocation3], 256
    $region37: #{forward.3} parent=1 // pred_fallthru
      _
    // Predicated region
    $region38: #{forward.3} parent=1 // pred_check
      _
    $region39: #{forward.3} parent=1 // pred_check_branch
      %72 = sbr.rel (0) target = $region41
    $region40: #{forward.3} parent=1 // pred_region
      %73 = dma.done [#allocation5], 64
    $region41: #{forward.3} parent=1 // pred_fallthru
      _
    // Predicated region
    $region42: #{forward.3} parent=1 // pred_check
      _
    $region43: #{forward.3} parent=1 // pred_check_branch
      %75 = sbr.rel (0) target = $region45
    $region44: #{forward.3} parent=1 // pred_region
      %76 = dma.done [#allocation5], 32
    $region45: #{forward.3} parent=1 // pred_fallthru
      _
    // Predicated region
    $region46: #{forward.3} parent=1 // pred_check
      _
    $region47: #{forward.3} parent=1 // pred_check_branch
      %78 = sbr.rel (0) target = $region49
    $region48: #{forward.3} parent=1 // pred_region
      %79 = dma.done [#allocation8], 32
    $region49: #{forward.3} parent=1 // pred_fallthru
      _
    %v81 = vld [vmem:[%s1] sm:$0xff]
    %v82 = vld [vmem:[%s1 + $0x8] sm:$0xff]
    %v83 = vld [vmem:[%s3] sm:$0x1]
    %v84 = vlaneseq
    %v85 = vshrl.u32 %v84, 7
    %v86 = vsub.s32 0, %v85
    %v87 = vrot.slane %v83, %v86
    %v88 = vmul.f32 %v81, %v87
    %v89 = vmul.f32 %v82, %v87
    %v90 = vld [vmem:[%s3 + $0x1] sm:$0x1]
    %v91 = vlaneseq
    %v92 = vshrl.u32 %v91, 7
    %v93 = vsub.s32 0, %v92
    %v94 = vrot.slane %v90, %v93
    %v95 = vadd.f32 %v88, %v94
    %v96 = vadd.f32 %v89, %v94
    %v97 = vld [vmem:[#allocation2] sm:$0xff]
    %v98 = vld [vmem:[#allocation2 + $0x8] sm:$0xff]
    %v99 = vpack.c.bf16 %v98, %v97
    %v100 = vld [vmem:[%s4] sm:$0xf]
    %v101 = vld [vmem:[%s4 + $0x4] sm:$0xf]
    %v102 = vld [vmem:[%s4 + $0x8] sm:$0xf]
    %v103 = vld [vmem:[%s4 + $0xc] sm:$0xf]
    %v104 = vpack.c.bf16 %v96, %v95
    %v105 = vld [vmem:[#allocation4] sm:$0xf]
    %vm106 = vcmask 64512
    %v108 = vsel %vm106, %v104, 0
    %vm110 = vcmask 1043456
    %v112 = vsel %vm110, %v105, 0
    %114 = vmatprep.subr.bf16.mxu0 0
    %115 = vmatpush1.bf16.msra.mxu0 %v112
    %116 = vmatprep.subr.bf16.mxu0 0
    %117 = vmatpush1.bf16.msra.mxu0 0
    %118 = vmatprep.subr.bf16.mxu0 0
    %119 = vmatpush1.bf16.msra.mxu0 0
    %120 = vmatprep.subr.bf16.mxu0 0
    %121 = vmatpush1.bf16.msra.mxu0 0
    %122 = vmatprep.subr.bf16.mxu0 0
    %123 = vmatpush1.bf16.msra.mxu0 0
    %124 = vmatprep.subr.bf16.mxu0 0
    %125 = vmatpush1.bf16.msra.mxu0 0
    %126 = vmatprep.subr.bf16.mxu0 0
    %127 = vmatpush1.bf16.msra.mxu0 0
    %128 = vmatprep.subr.bf16.mxu0 0
    %129 = vmatpush1.bf16.msra.mxu0 0
    %130 = vmatprep.subr.bf16.mxu0 0
    %131 = vmatpush1.bf16.msra.mxu0 0
    %132 = vmatprep.subr.bf16.mxu0 0
    %133 = vmatpush1.bf16.msra.mxu0 0
    %134 = vmatprep.subr.bf16.mxu0 0
    %135 = vmatpush1.bf16.msra.mxu0 0
    %136 = vmatprep.subr.bf16.mxu0 0
    %137 = vmatpush1.bf16.msra.mxu0 0
    %138 = vmatprep.subr.bf16.mxu0 0
    %139 = vmatpush1.bf16.msra.mxu0 0
    %140 = vmatprep.subr.bf16.mxu0 0
    %141 = vmatpush1.bf16.msra.mxu0 0
    %142 = vmatprep.subr.bf16.mxu0 0
    %143 = vmatpush1.bf16.msra.mxu0 0
    %144 = vmatprep.subr.bf16.mxu0 0
    %145 = vmatpush1.bf16.msra.mxu0 0
    %146 = vmatprep.mubr.bf16.mxu0 0
    %147 = vmatmul.mubr.bf16.gmra.mrb[0].mxu0 %v108
    %v148 = vpop.f32.mrb[0].mxu0
    %v149 = vadd.f32 0.0, %v148
    %v150 = vpop.f32.mrb[0].mxu0
    %v151 = vpop.f32.mrb[0].mxu0
    %v152 = vadd.f32 0.0, %v151
    %v153 = vpop.f32.mrb[0].mxu0
    %154 = vdwg.mxu0
    %v159 = vunpack.c.l.b16 %v100
    %v160 = vunpack.c.l.b16 %v101
    %v161 = vunpack.c.l.b16 %v102
    %v162 = vunpack.c.l.b16 %v103
    %v163 = vpack.c.b16 %v160, %v159
    %v164 = vpack.c.b16 %v162, %v161
    %vm167 = vcmask 261120
    %v169 = vsel %vm167, %v99, 0
    %171 = vmatprep.subr.bf16.mxu0 0
    %172 = vmatpush1.bf16.msra.mxu0 %v163
    %173 = vmatprep.subr.bf16.mxu0 0
    %174 = vmatpush1.bf16.msra.mxu0 %v164
    %175 = vmatprep.subr.bf16.mxu0 0
    %176 = vmatpush1.bf16.msra.mxu0 0
    %177 = vmatprep.subr.bf16.mxu0 0
    %178 = vmatpush1.bf16.msra.mxu0 0
    %179 = vmatprep.subr.bf16.mxu0 0
    %180 = vmatpush1.bf16.msra.mxu0 0
    %181 = vmatprep.subr.bf16.mxu0 0
    %182 = vmatpush1.bf16.msra.mxu0 0
    %183 = vmatprep.subr.bf16.mxu0 0
    %184 = vmatpush1.bf16.msra.mxu0 0
    %185 = vmatprep.subr.bf16.mxu0 0
    %186 = vmatpush1.bf16.msra.mxu0 0
    %187 = vmatprep.subr.bf16.mxu0 0
    %188 = vmatpush1.bf16.msra.mxu0 0
    %189 = vmatprep.subr.bf16.mxu0 0
    %190 = vmatpush1.bf16.msra.mxu0 0
    %191 = vmatprep.subr.bf16.mxu0 0
    %192 = vmatpush1.bf16.msra.mxu0 0
    %193 = vmatprep.subr.bf16.mxu0 0
    %194 = vmatpush1.bf16.msra.mxu0 0
    %195 = vmatprep.subr.bf16.mxu0 0
    %196 = vmatpush1.bf16.msra.mxu0 0
    %197 = vmatprep.subr.bf16.mxu0 0
    %198 = vmatpush1.bf16.msra.mxu0 0
    %199 = vmatprep.subr.bf16.mxu0 0
    %200 = vmatpush1.bf16.msra.mxu0 0
    %201 = vmatprep.subr.bf16.mxu0 0
    %202 = vmatpush1.bf16.msra.mxu0 0
    %203 = vmatprep.mubr.bf16.mxu0 0
    %204 = vmatmul.mubr.bf16.gmra.mrb[0].mxu0 %v169
    %v205 = vpop.f32.mrb[0].mxu0
    %v206 = vadd.f32 %v149, %v205
    %v207 = vpop.f32.mrb[0].mxu0
    %v208 = vpop.f32.mrb[0].mxu0
    %v209 = vadd.f32 %v152, %v208
    %v210 = vpop.f32.mrb[0].mxu0
    %211 = vdwg.mxu0
    %v212 = vld [vmem:[#allocation7] sm:$0x1]
    %v213 = vlaneseq
    %v214 = vshrl.u32 %v213, 7
    %v215 = vsub.s32 0, %v214
    %v216 = vrot.slane %v212, %v215
    %v217 = vadd.f32 %v206, %v216
    %v218 = vadd.f32 %v209, %v216
    %219 = vst [vmem:[%s8] sm:$0xff] %v217
    %220 = vst [vmem:[%s8 + $0x8] sm:$0xff] %v218
    %v221 = vld [vmem:[%s2] sm:$0xff]
    %v222 = vld [vmem:[%s2 + $0x8] sm:$0xff]
    %v223 = vld [vmem:[%s2 + $0x10] sm:$0xff]
    %v224 = vld [vmem:[%s2 + $0x18] sm:$0xff]
    %v225 = vpack.c.bf16 %v222, %v221
    %v226 = vpack.c.bf16 %v224, %v223
    %v227 = vld [vmem:[#allocation6] sm:$0x3]
    %v228 = vld [vmem:[#allocation7 + $0x1] sm:$0x1]
    %v229 = vlaneseq
    %v230 = vshrl.u32 %v229, 7
    %v231 = vsub.s32 0, %v230
    %v232 = vrot.slane %v228, %v231
    %vm233 = vcmask 31744
    %v235 = vsel %vm233, %v225, 0
    %v238 = vsel %vm233, %v226, 0
    %vm240 = vcmask 1041408
    %v242 = vsel %vm240, %v227, 0
    %244 = vmatprep.subr.bf16.mxu0 0
    %245 = vmatpush1.bf16.msra.mxu0 %v242
    %246 = vmatprep.subr.bf16.mxu0 0
    %247 = vmatpush1.bf16.msra.mxu0 0
    %248 = vmatprep.subr.bf16.mxu0 0
    %249 = vmatpush1.bf16.msra.mxu0 0
    %250 = vmatprep.subr.bf16.mxu0 0
    %251 = vmatpush1.bf16.msra.mxu0 0
    %252 = vmatprep.subr.bf16.mxu0 0
    %253 = vmatpush1.bf16.msra.mxu0 0
    %254 = vmatprep.subr.bf16.mxu0 0
    %255 = vmatpush1.bf16.msra.mxu0 0
    %256 = vmatprep.subr.bf16.mxu0 0
    %257 = vmatpush1.bf16.msra.mxu0 0
    %258 = vmatprep.subr.bf16.mxu0 0
    %259 = vmatpush1.bf16.msra.mxu0 0
    %260 = vmatprep.subr.bf16.mxu0 0
    %261 = vmatpush1.bf16.msra.mxu0 0
    %262 = vmatprep.subr.bf16.mxu0 0
    %263 = vmatpush1.bf16.msra.mxu0 0
    %264 = vmatprep.subr.bf16.mxu0 0
    %265 = vmatpush1.bf16.msra.mxu0 0
    %266 = vmatprep.subr.bf16.mxu0 0
    %267 = vmatpush1.bf16.msra.mxu0 0
    %268 = vmatprep.subr.bf16.mxu0 0
    %269 = vmatpush1.bf16.msra.mxu0 0
    %270 = vmatprep.subr.bf16.mxu0 0
    %271 = vmatpush1.bf16.msra.mxu0 0
    %272 = vmatprep.subr.bf16.mxu0 0
    %273 = vmatpush1.bf16.msra.mxu0 0
    %274 = vmatprep.subr.bf16.mxu0 0
    %275 = vmatpush1.bf16.msra.mxu0 0
    %276 = vmatprep.mubr.bf16.mxu0 0
    %277 = vmatmul.mubr.bf16.gmra.mrb[0].mxu0 %v235
    %v278 = vpop.f32.mrb[0].mxu0
    %v279 = vadd.f32 %v232, %v278
    %v280 = vpop.f32.mrb[0].mxu0
    %v281 = vpop.f32.mrb[0].mxu0
    %v282 = vadd.f32 %v232, %v281
    %v283 = vpop.f32.mrb[0].mxu0
    %284 = vmatprep.mubr.bf16.mxu0 0
    %285 = vmatmul.mubr.bf16.gmra.mrb[0].mxu0 %v238
    %v286 = vpop.f32.mrb[0].mxu0
    %v287 = vadd.f32 %v232, %v286
    %v288 = vpop.f32.mrb[0].mxu0
    %v289 = vpop.f32.mrb[0].mxu0
    %v290 = vadd.f32 %v232, %v289
    %v291 = vpop.f32.mrb[0].mxu0
    %292 = vdwg.mxu0
    %293 = vst [vmem:[%s9] sm:$0xff] %v279
    %294 = vst [vmem:[%s9 + $0x8] sm:$0xff] %v282
    %295 = vst [vmem:[%s9 + $0x10] sm:$0xff] %v287
    %296 = vst [vmem:[%s9 + $0x18] sm:$0xff] %v290
    // Predicated region
    $region50: #{forward.3} parent=1 // pred_check
      _
    $region51: #{forward.3} parent=1 // pred_check_branch
      %298 = sbr.rel (0) target = $region53
    $region52: #{forward.3} parent=1 // pred_region
      _
    $region53: #{forward.3} parent=1 // pred_fallthru
      _
    // Predicated region
    $region54: #{forward.3} parent=1 // pred_check
      _
    $region55: #{forward.3} parent=1 // pred_check_branch
      %300 = sbr.rel (0) target = $region57
    $region56: #{forward.3} parent=1 // pred_region
      _
    $region57: #{forward.3} parent=1 // pred_fallthru
      _
    // Predicated region
    $region58: #{forward.3} parent=1 // pred_check
      _
    $region59: #{forward.3} parent=1 // pred_check_branch
      %302 = sbr.rel (0) target = $region61
    $region60: #{forward.3} parent=1 // pred_region
      _
    $region61: #{forward.3} parent=1 // pred_fallthru
      _
    // Predicated region
    $region62: #{forward.3} parent=1 // pred_check
      _
    $region63: #{forward.3} parent=1 // pred_check_branch
      %304 = sbr.rel (0) target = $region65
    $region64: #{forward.3} parent=1 // pred_region
      _
    $region65: #{forward.3} parent=1 // pred_fallthru
      _
    %305 = vsyncpa [#allocation3], 1
    %306 = vsyncpa [#allocation5], 1
    %307 = vsyncpa [#allocation8], 1

// kernel: forward.5
$region0: #{forward.5}
  #allocation0 [shape = 'u32[]', space=smem, size = 0x4, offset = 0x4, fixed_abs, tag = 'smem constant byte address 0x4 - core index']
  #allocation1 [shape = 'u32[144,128]{1,0:T(1,128)}', space=vmem, size = 0x12000, scoped, tag = 'internal scratch']
  #allocation2 [shape = 's32[1]{0}', space=sflag, size = 0x4, scoped, tag = 'scoped memory for forward.5']
  #allocation3 [shape = 'u8[512]{0}', space=smem, size = 0x200, scoped, tag = 'prefetched SMEM operand 0']
  %s0 = inlined_call_operand.vmem [shape: s32[16], index: 0, kind: input, shape index: {}]
  %s1 = inlined_call_operand.vmem [shape: f32[16,128], index: 1, kind: input, shape index: {}]
  %s2 = inlined_call_operand.vmem [shape: bf16[128,128], index: 2, kind: input, shape index: {}]
  %s3 = inlined_call_operand.vmem [shape: bf16[128,128], index: 3, kind: input, shape index: {}]
  %s4 = inlined_call_operand.vmem [shape: bf16[128,128], index: 4, kind: input, shape index: {}]
  %s5 = inlined_call_operand.vmem [shape: f32[3,128], index: 5, kind: input, shape index: {}]
  %s6 = inlined_call_operand.hbm [shape: f32[2,128], index: 6, kind: output, shape index: {}]
  %s7 = sld [smem:[#allocation0]]
  $region37: #{forward.5} parent=0
    _
  %s9 = ssub.s32 1, %s7
  %s10 = scalar_select 0, %s9, %s7
  %s11 = sshll.u32 %s0, 4
  %s12 = int_to_ptr.vmem [resolvable:$true] %s11
  %14 = dma.vmem_to_smem %s12, 16, [#allocation3], [#allocation2]
  %15 = dma.done [#allocation2], 16
  %16 = sfence
  $region1: #{forward.5} parent=0
    #allocation4 [shape = 'u8[1024]{0}', space=vmem, size = 0x400, scoped, tag = 'output window, operand 0, single buffered']
    #allocation5 [shape = 's32[1]{0}', space=sflag, size = 0x4, scoped, tag = 'scoped memory for forward.5']
    %17 = vsyncpa [#allocation5], 0
    // Predicated region
    $region2: #{forward.5} parent=1 // pred_check
      _
    $region3: #{forward.5} parent=1 // pred_check_branch
      %19 = sbr.rel (0) target = $region5
    $region4: #{forward.5} parent=1 // pred_region
      _
    $region5: #{forward.5} parent=1 // pred_fallthru
      _
    // Predicated region
    $region6: #{forward.5} parent=1 // pred_check
      _
    $region7: #{forward.5} parent=1 // pred_check_branch
      %21 = sbr.rel (0) target = $region9
    $region8: #{forward.5} parent=1 // pred_region
      _
    $region9: #{forward.5} parent=1 // pred_fallthru
      _
    // Predicated region
    $region10: #{forward.5} parent=1 // pred_check
      _
    $region11: #{forward.5} parent=1 // pred_check_branch
      %23 = sbr.rel (0) target = $region13
    $region12: #{forward.5} parent=1 // pred_region
      _
    $region13: #{forward.5} parent=1 // pred_fallthru
      _
    // Predicated region
    $region14: #{forward.5} parent=1 // pred_check
      _
    $region15: #{forward.5} parent=1 // pred_check_branch
      %25 = sbr.rel (0) target = $region17
    $region16: #{forward.5} parent=1 // pred_region
      _
    $region17: #{forward.5} parent=1 // pred_fallthru
      _
    // Predicated region
    $region18: #{forward.5} parent=1 // pred_check
      _
    $region19: #{forward.5} parent=1 // pred_check_branch
      %27 = sbr.rel (0) target = $region21
    $region20: #{forward.5} parent=1 // pred_region
      _
    $region21: #{forward.5} parent=1 // pred_fallthru
      _
    %29 = vst [vmem:[#allocation4] sm:$0x3] 0.0
    loop: start=0, step=1, limit=16
    $region22: #{forward.5} parent=1 // loop_pre_header
      _
    $region23: #{forward.5} parent=1 // loop_header
      %s31 = sphi 0, %s35
      %p32 = scmp.ge.s32.totalorder %s31, 16
    $region24: #{forward.5} parent=1 // loop_header_branch
      %34 = sbr.rel (%p32) target = $region28
    $region25: #{forward.5} parent=1 // loop_body
      %s36 = sld [smem:[#allocation3 + %s31]]
      %s37 = scalar_lea.vmem [#allocation4], %s36
      %v38 = vld [vmem:[%s37] sm:$0x1]
      %s39 = scalar_lea.vmem %s1, %s31
      %v40 = vld [vmem:[%s39] sm:$0x1]
      %v41 = vadd.f32 %v38, %v40
      %42 = vst [vmem:[%s37] sm:$0x1] %v41
    $region26: #{forward.5} parent=1 // loop_footer
      %s35 = sadd.s32 1, %s31
    $region27: #{forward.5} parent=1 // loop_footer_branch
      %30 = sbr.rel target = $region23
    $region28: #{forward.5} parent=1 // loop_exit
      _
    %v43 = vld [vmem:[#allocation4] sm:$0x3]
    %v44 = vpack.c.bf16 %v43, %v43
    %v45 = vld [vmem:[%s2] sm:$0xf]
    %v46 = vld [vmem:[%s2 + $0x4] sm:$0xf]
    %v47 = vld [vmem:[%s2 + $0x8] sm:$0xf]
    %v48 = vld [vmem:[%s2 + $0xc] sm:$0xf]
    %v49 = vld [vmem:[%s2 + $0x10] sm:$0xf]
    %v50 = vld [vmem:[%s2 + $0x14] sm:$0xf]
    %v51 = vld [vmem:[%s2 + $0x18] sm:$0xf]
    %v52 = vld [vmem:[%s2 + $0x1c] sm:$0xf]
    %v53 = vld [vmem:[%s2 + $0x20] sm:$0xf]
    %v54 = vld [vmem:[%s2 + $0x24] sm:$0xf]
    %v55 = vld [vmem:[%s2 + $0x28] sm:$0xf]
    %v56 = vld [vmem:[%s2 + $0x2c] sm:$0xf]
    %v57 = vld [vmem:[%s2 + $0x30] sm:$0xf]
    %v58 = vld [vmem:[%s2 + $0x34] sm:$0xf]
    %v59 = vld [vmem:[%s2 + $0x38] sm:$0xf]
    %v60 = vld [vmem:[%s2 + $0x3c] sm:$0xf]
    %v61 = vld [vmem:[%s5] sm:$0x1]
    %v62 = vlaneseq
    %v63 = vshrl.u32 %v62, 7
    %v64 = vsub.s32 0, %v63
    %v65 = vrot.slane %v61, %v64
    %v82 = vunpack.c.l.b16 %v45
    %v83 = vunpack.c.l.b16 %v46
    %v84 = vunpack.c.l.b16 %v47
    %v85 = vunpack.c.l.b16 %v48
    %v86 = vunpack.c.l.b16 %v49
    %v87 = vunpack.c.l.b16 %v50
    %v88 = vunpack.c.l.b16 %v51
    %v89 = vunpack.c.l.b16 %v52
    %v90 = vunpack.c.l.b16 %v53
    %v91 = vunpack.c.l.b16 %v54
    %v92 = vunpack.c.l.b16 %v55
    %v93 = vunpack.c.l.b16 %v56
    %v94 = vunpack.c.l.b16 %v57
    %v95 = vunpack.c.l.b16 %v58
    %v96 = vunpack.c.l.b16 %v59
    %v97 = vunpack.c.l.b16 %v60
    %v98 = vpack.c.b16 %v83, %v82
    %v99 = vpack.c.b16 %v85, %v84
    %v100 = vpack.c.b16 %v87, %v86
    %v101 = vpack.c.b16 %v89, %v88
    %v102 = vpack.c.b16 %v91, %v90
    %v103 = vpack.c.b16 %v93, %v92
    %v104 = vpack.c.b16 %v95, %v94
    %v105 = vpack.c.b16 %v97, %v96
    %114 = vmatprep.subr.bf16.mxu0 0
    %115 = vmatpush1.bf16.msra.mxu0 %v98
    %116 = vmatprep.subr.bf16.mxu0 0
    %117 = vmatpush1.bf16.msra.mxu0 %v99
    %118 = vmatprep.subr.bf16.mxu0 0
    %119 = vmatpush1.bf16.msra.mxu0 %v100
    %120 = vmatprep.subr.bf16.mxu0 0
    %121 = vmatpush1.bf16.msra.mxu0 %v101
    %122 = vmatprep.subr.bf16.mxu0 0
    %123 = vmatpush1.bf16.msra.mxu0 %v102
    %124 = vmatprep.subr.bf16.mxu0 0
    %125 = vmatpush1.bf16.msra.mxu0 %v103
    %126 = vmatprep.subr.bf16.mxu0 0
    %127 = vmatpush1.bf16.msra.mxu0 %v104
    %128 = vmatprep.subr.bf16.mxu0 0
    %129 = vmatpush1.bf16.msra.mxu0 %v105
    %130 = vmatprep.subr.bf16.mxu0 0
    %131 = vmatpush1.bf16.msra.mxu0 0
    %132 = vmatprep.subr.bf16.mxu0 0
    %133 = vmatpush1.bf16.msra.mxu0 0
    %134 = vmatprep.subr.bf16.mxu0 0
    %135 = vmatpush1.bf16.msra.mxu0 0
    %136 = vmatprep.subr.bf16.mxu0 0
    %137 = vmatpush1.bf16.msra.mxu0 0
    %138 = vmatprep.subr.bf16.mxu0 0
    %139 = vmatpush1.bf16.msra.mxu0 0
    %140 = vmatprep.subr.bf16.mxu0 0
    %141 = vmatpush1.bf16.msra.mxu0 0
    %142 = vmatprep.subr.bf16.mxu0 0
    %143 = vmatpush1.bf16.msra.mxu0 0
    %144 = vmatprep.subr.bf16.mxu0 0
    %145 = vmatpush1.bf16.msra.mxu0 0
    %146 = vmatprep.mubr.bf16.mxu0 0
    %147 = vmatmul.mubr.bf16.gmra.mrb[0].mxu0 %v44
    %v148 = vpop.f32.mrb[0].mxu0
    %v149 = vadd.f32 %v65, %v148
    %v150 = vpop.f32.mrb[0].mxu0
    %v151 = vpop.f32.mrb[0].mxu0
    %v152 = vpop.f32.mrb[0].mxu0
    %153 = vdwg.mxu0
    %v154 = vmax.f32 %v149, 0.0
    %v155 = vpack.c.bf16 %v154, %v154
    %v156 = vld [vmem:[%s3] sm:$0xf]
    %v157 = vld [vmem:[%s3 + $0x4] sm:$0xf]
    %v158 = vld [vmem:[%s3 + $0x8] sm:$0xf]
    %v159 = vld [vmem:[%s3 + $0xc] sm:$0xf]
    %v160 = vld [vmem:[%s3 + $0x10] sm:$0xf]
    %v161 = vld [vmem:[%s3 + $0x14] sm:$0xf]
    %v162 = vld [vmem:[%s3 + $0x18] sm:$0xf]
    %v163 = vld [vmem:[%s3 + $0x1c] sm:$0xf]
    %v164 = vld [vmem:[%s3 + $0x20] sm:$0xf]
    %v165 = vld [vmem:[%s3 + $0x24] sm:$0xf]
    %v166 = vld [vmem:[%s3 + $0x28] sm:$0xf]
    %v167 = vld [vmem:[%s3 + $0x2c] sm:$0xf]
    %v168 = vld [vmem:[%s3 + $0x30] sm:$0xf]
    %v169 = vld [vmem:[%s3 + $0x34] sm:$0xf]
    %v170 = vld [vmem:[%s3 + $0x38] sm:$0xf]
    %v171 = vld [vmem:[%s3 + $0x3c] sm:$0xf]
    %v172 = vld [vmem:[%s5 + $0x1] sm:$0x1]
    %v173 = vlaneseq
    %v174 = vshrl.u32 %v173, 7
    %v175 = vsub.s32 0, %v174
    %v176 = vrot.slane %v172, %v175
    %v193 = vunpack.c.l.b16 %v156
    %v194 = vunpack.c.l.b16 %v157
    %v195 = vunpack.c.l.b16 %v158
    %v196 = vunpack.c.l.b16 %v159
    %v197 = vunpack.c.l.b16 %v160
    %v198 = vunpack.c.l.b16 %v161
    %v199 = vunpack.c.l.b16 %v162
    %v200 = vunpack.c.l.b16 %v163
    %v201 = vunpack.c.l.b16 %v164
    %v202 = vunpack.c.l.b16 %v165
    %v203 = vunpack.c.l.b16 %v166
    %v204 = vunpack.c.l.b16 %v167
    %v205 = vunpack.c.l.b16 %v168
    %v206 = vunpack.c.l.b16 %v169
    %v207 = vunpack.c.l.b16 %v170
    %v208 = vunpack.c.l.b16 %v171
    %v209 = vpack.c.b16 %v194, %v193
    %v210 = vpack.c.b16 %v196, %v195
    %v211 = vpack.c.b16 %v198, %v197
    %v212 = vpack.c.b16 %v200, %v199
    %v213 = vpack.c.b16 %v202, %v201
    %v214 = vpack.c.b16 %v204, %v203
    %v215 = vpack.c.b16 %v206, %v205
    %v216 = vpack.c.b16 %v208, %v207
    %225 = vmatprep.subr.bf16.mxu0 0
    %226 = vmatpush1.bf16.msra.mxu0 %v209
    %227 = vmatprep.subr.bf16.mxu0 0
    %228 = vmatpush1.bf16.msra.mxu0 %v210
    %229 = vmatprep.subr.bf16.mxu0 0
    %230 = vmatpush1.bf16.msra.mxu0 %v211
    %231 = vmatprep.subr.bf16.mxu0 0
    %232 = vmatpush1.bf16.msra.mxu0 %v212
    %233 = vmatprep.subr.bf16.mxu0 0
    %234 = vmatpush1.bf16.msra.mxu0 %v213
    %235 = vmatprep.subr.bf16.mxu0 0
    %236 = vmatpush1.bf16.msra.mxu0 %v214
    %237 = vmatprep.subr.bf16.mxu0 0
    %238 = vmatpush1.bf16.msra.mxu0 %v215
    %239 = vmatprep.subr.bf16.mxu0 0
    %240 = vmatpush1.bf16.msra.mxu0 %v216
    %241 = vmatprep.subr.bf16.mxu0 0
    %242 = vmatpush1.bf16.msra.mxu0 0
    %243 = vmatprep.subr.bf16.mxu0 0
    %244 = vmatpush1.bf16.msra.mxu0 0
    %245 = vmatprep.subr.bf16.mxu0 0
    %246 = vmatpush1.bf16.msra.mxu0 0
    %247 = vmatprep.subr.bf16.mxu0 0
    %248 = vmatpush1.bf16.msra.mxu0 0
    %249 = vmatprep.subr.bf16.mxu0 0
    %250 = vmatpush1.bf16.msra.mxu0 0
    %251 = vmatprep.subr.bf16.mxu0 0
    %252 = vmatpush1.bf16.msra.mxu0 0
    %253 = vmatprep.subr.bf16.mxu0 0
    %254 = vmatpush1.bf16.msra.mxu0 0
    %255 = vmatprep.subr.bf16.mxu0 0
    %256 = vmatpush1.bf16.msra.mxu0 0
    %257 = vmatprep.mubr.bf16.mxu0 0
    %258 = vmatmul.mubr.bf16.gmra.mrb[0].mxu0 %v155
    %v259 = vpop.f32.mrb[0].mxu0
    %v260 = vadd.f32 %v176, %v259
    %v261 = vpop.f32.mrb[0].mxu0
    %v262 = vpop.f32.mrb[0].mxu0
    %v263 = vpop.f32.mrb[0].mxu0
    %264 = vdwg.mxu0
    %v265 = vmax.f32 %v260, 0.0
    %v266 = vpack.c.bf16 %v265, %v265
    %v267 = vld [vmem:[%s4] sm:$0xf]
    %v268 = vld [vmem:[%s4 + $0x4] sm:$0xf]
    %v269 = vld [vmem:[%s4 + $0x8] sm:$0xf]
    %v270 = vld [vmem:[%s4 + $0xc] sm:$0xf]
    %v271 = vld [vmem:[%s4 + $0x10] sm:$0xf]
    %v272 = vld [vmem:[%s4 + $0x14] sm:$0xf]
    %v273 = vld [vmem:[%s4 + $0x18] sm:$0xf]
    %v274 = vld [vmem:[%s4 + $0x1c] sm:$0xf]
    %v275 = vld [vmem:[%s4 + $0x20] sm:$0xf]
    %v276 = vld [vmem:[%s4 + $0x24] sm:$0xf]
    %v277 = vld [vmem:[%s4 + $0x28] sm:$0xf]
    %v278 = vld [vmem:[%s4 + $0x2c] sm:$0xf]
    %v279 = vld [vmem:[%s4 + $0x30] sm:$0xf]
    %v280 = vld [vmem:[%s4 + $0x34] sm:$0xf]
    %v281 = vld [vmem:[%s4 + $0x38] sm:$0xf]
    %v282 = vld [vmem:[%s4 + $0x3c] sm:$0xf]
    %v283 = vld [vmem:[%s5 + $0x2] sm:$0x1]
    %v284 = vlaneseq
    %v285 = vshrl.u32 %v284, 7
    %v286 = vsub.s32 0, %v285
    %v287 = vrot.slane %v283, %v286
    %v304 = vunpack.c.l.b16 %v267
    %v305 = vunpack.c.l.b16 %v268
    %v306 = vunpack.c.l.b16 %v269
    %v307 = vunpack.c.l.b16 %v270
    %v308 = vunpack.c.l.b16 %v271
    %v309 = vunpack.c.l.b16 %v272
    %v310 = vunpack.c.l.b16 %v273
    %v311 = vunpack.c.l.b16 %v274
    %v312 = vunpack.c.l.b16 %v275
    %v313 = vunpack.c.l.b16 %v276
    %v314 = vunpack.c.l.b16 %v277
    %v315 = vunpack.c.l.b16 %v278
    %v316 = vunpack.c.l.b16 %v279
    %v317 = vunpack.c.l.b16 %v280
    %v318 = vunpack.c.l.b16 %v281
    %v319 = vunpack.c.l.b16 %v282
    %v320 = vpack.c.b16 %v305, %v304
    %v321 = vpack.c.b16 %v307, %v306
    %v322 = vpack.c.b16 %v309, %v308
    %v323 = vpack.c.b16 %v311, %v310
    %v324 = vpack.c.b16 %v313, %v312
    %v325 = vpack.c.b16 %v315, %v314
    %v326 = vpack.c.b16 %v317, %v316
    %v327 = vpack.c.b16 %v319, %v318
    %336 = vmatprep.subr.bf16.mxu0 0
    %337 = vmatpush1.bf16.msra.mxu0 %v320
    %338 = vmatprep.subr.bf16.mxu0 0
    %339 = vmatpush1.bf16.msra.mxu0 %v321
    %340 = vmatprep.subr.bf16.mxu0 0
    %341 = vmatpush1.bf16.msra.mxu0 %v322
    %342 = vmatprep.subr.bf16.mxu0 0
    %343 = vmatpush1.bf16.msra.mxu0 %v323
    %344 = vmatprep.subr.bf16.mxu0 0
    %345 = vmatpush1.bf16.msra.mxu0 %v324
    %346 = vmatprep.subr.bf16.mxu0 0
    %347 = vmatpush1.bf16.msra.mxu0 %v325
    %348 = vmatprep.subr.bf16.mxu0 0
    %349 = vmatpush1.bf16.msra.mxu0 %v326
    %350 = vmatprep.subr.bf16.mxu0 0
    %351 = vmatpush1.bf16.msra.mxu0 %v327
    %352 = vmatprep.subr.bf16.mxu0 0
    %353 = vmatpush1.bf16.msra.mxu0 0
    %354 = vmatprep.subr.bf16.mxu0 0
    %355 = vmatpush1.bf16.msra.mxu0 0
    %356 = vmatprep.subr.bf16.mxu0 0
    %357 = vmatpush1.bf16.msra.mxu0 0
    %358 = vmatprep.subr.bf16.mxu0 0
    %359 = vmatpush1.bf16.msra.mxu0 0
    %360 = vmatprep.subr.bf16.mxu0 0
    %361 = vmatpush1.bf16.msra.mxu0 0
    %362 = vmatprep.subr.bf16.mxu0 0
    %363 = vmatpush1.bf16.msra.mxu0 0
    %364 = vmatprep.subr.bf16.mxu0 0
    %365 = vmatpush1.bf16.msra.mxu0 0
    %366 = vmatprep.subr.bf16.mxu0 0
    %367 = vmatpush1.bf16.msra.mxu0 0
    %368 = vmatprep.mubr.bf16.mxu0 0
    %369 = vmatmul.mubr.bf16.gmra.mrb[0].mxu0 %v266
    %v370 = vpop.f32.mrb[0].mxu0
    %v371 = vadd.f32 %v287, %v370
    %v372 = vpop.f32.mrb[0].mxu0
    %v373 = vpop.f32.mrb[0].mxu0
    %v374 = vpop.f32.mrb[0].mxu0
    %375 = vdwg.mxu0
    %376 = vst [vmem:[#allocation4] sm:$0x3] %v371
    // Predicated region
    $region29: #{forward.5} parent=1 // pred_check
      _
    $region30: #{forward.5} parent=1 // pred_check_branch
      %378 = sbr.rel (0) target = $region32
    $region31: #{forward.5} parent=1 // pred_region
      %s380 = ssub.s32 32, 32
      %381 = vsyncadd [#allocation5], %s380
      %s383 = sshll.u32 [#allocation4], 4
      %s384 = int_to_ptr.vmem [resolvable:$true] %s383
      %386 = dma.vmem_to_hbm [thread:$0]  %s384, 32, %s6, [#allocation5]
    $region32: #{forward.5} parent=1 // pred_fallthru
      _
    // Predicated region
    $region33: #{forward.5} parent=1 // pred_check
      _
    $region34: #{forward.5} parent=1 // pred_check_branch
      %388 = sbr.rel (0) target = $region36
    $region35: #{forward.5} parent=1 // pred_region
      %389 = dma.done [#allocation5], 32
    $region36: #{forward.5} parent=1 // pred_fallthru
      _
    %390 = vsyncpa [#allocation5], 1

// kernel: forward.4
$region0: #{forward.4}
  #allocation0 [shape = 'u32[]', space=smem, size = 0x4, offset = 0x4, fixed_abs, tag = 'smem constant byte address 0x4 - core index']
  #allocation1 [shape = 'u32[144,128]{1,0:T(1,128)}', space=vmem, size = 0x12000, scoped, tag = 'internal scratch']
  #allocation2 [shape = 'f32[16,128]{1,0:T(8,128)}', space=vmem, size = 0x2000, scoped, tag = 'scratch operand']
  #allocation3 [shape = 'f32[16,128]{1,0:T(8,128)}', space=vmem, size = 0x2000, scoped, tag = 'scratch operand']
  #allocation4 [shape = 's32[1]{0}', space=sflag, size = 0x4, scoped, tag = 'scoped memory for forward.4']
  #allocation5 [shape = 'u8[512]{0}', space=smem, size = 0x200, scoped, tag = 'prefetched SMEM operand 0']
  #allocation6 [shape = 'u8[512]{0}', space=smem, size = 0x200, scoped, tag = 'prefetched SMEM operand 1']
  %s0 = inlined_call_operand.hbm [shape: s32[32], index: 0, kind: input, shape index: {}]
  %s1 = inlined_call_operand.hbm [shape: s32[32], index: 1, kind: input, shape index: {}]
  %s2 = inlined_call_operand.vmem [shape: f32[16,128], index: 2, kind: input, shape index: {}]
  %s3 = inlined_call_operand.vmem [shape: f32[32,128], index: 3, kind: input, shape index: {}]
  %s4 = inlined_call_operand.vmem [shape: s32[16,1], index: 4, kind: input, shape index: {}]
  %s5 = inlined_call_operand.hbm [shape: s32[1,16], index: 5, kind: input, shape index: {}]
  %s6 = inlined_call_operand.vmem [shape: bf16[2,128,128], index: 6, kind: input, shape index: {}]
  %s7 = inlined_call_operand.vmem [shape: bf16[2,128,128], index: 7, kind: input, shape index: {}]
  %s8 = inlined_call_operand.hbm [shape: bf16[2,128,128], index: 8, kind: input, shape index: {}]
  %s9 = inlined_call_operand.hbm [shape: bf16[2,4,8,128], index: 9, kind: input, shape index: {}]
  %s10 = inlined_call_operand.hbm [shape: bf16[2,128,128], index: 10, kind: input, shape index: {}]
  %s11 = inlined_call_operand.hbm [shape: bf16[2,128,128], index: 11, kind: input, shape index: {}]
  %s12 = inlined_call_operand.vmem [shape: f32[2,12,128], index: 12, kind: input, shape index: {}]
  %s13 = inlined_call_operand.vmem [shape: f32[16,128], index: 13, kind: output, shape index: {}]
  %s14 = sld [smem:[#allocation0]]
  $region108: #{forward.4} parent=0
    _
  %s16 = ssub.s32 1, %s14
  %s17 = scalar_select 0, %s16, %s14
  %19 = dma.hbm_to_smem %s0, 16, [#allocation5], [#allocation4]
  %21 = dma.hbm_to_smem %s1, 16, [#allocation6], [#allocation4]
  %22 = dma.done [#allocation4], 32
  %23 = sfence
  $region1: #{forward.4} parent=0
    #allocation7 [shape = 'u8[512]{0}', space=vmem, size = 0x400, scoped, tag = 'input window, operand 5, single buffered']
    #allocation8 [shape = 's32[2]{0}', space=sflag, size = 0x8, scoped, tag = 'scoped memory for forward.4']
    #allocation9 [shape = 'u8[65536]{0}', space=vmem, size = 0x10000, scoped, tag = 'input window, operand 8']
    #allocation10 [shape = 's32[2]{0}', space=sflag, size = 0x8, scoped, tag = 'scoped memory for forward.4']
    #allocation11 [shape = 'u8[16384]{0}', space=vmem, size = 0x4000, scoped, tag = 'input window, operand 9']
    #allocation12 [shape = 'u8[65536]{0}', space=vmem, size = 0x10000, scoped, tag = 'input window, operand 10']
    #allocation13 [shape = 's32[2]{0}', space=sflag, size = 0x8, scoped, tag = 'scoped memory for forward.4']
    #allocation14 [shape = 'u8[65536]{0}', space=vmem, size = 0x10000, scoped, tag = 'input window, operand 11']
    %24 = vsyncpa [#allocation8], 0
    %25 = vsyncpa [#allocation10], 0
    %s26 = scalar_lea.sflag [#allocation10], 1
    %27 = vsyncpa %s26, 0
    %28 = vsyncpa [#allocation13], 0
    %s29 = scalar_lea.sflag [#allocation13], 1
    %30 = vsyncpa %s29, 0
    loop: start=0, step=1, limit=4
    $region2: #{forward.4} parent=1 // loop_pre_header
      _
    $region3: #{forward.4} parent=1 // loop_header
      %s32 = sphi 0, %s36
      %p33 = scmp.ge.s32.totalorder %s32, 4
      %s40 = sphi 0, %s40
      %s42 = sphi 0, %s40
      %s43 = sphi 0, %s42
      %s57 = sphi 0, %s43
      %s61 = sphi 0, %s61
      %s63 = sphi 0, %s61
      %s64 = sphi 0, %s63
      %s78 = sphi 0, %s64
      %s82 = sphi 0, %s82
      %s84 = sphi 0, %s82
      %s85 = sphi 0, %s84
      %s99 = sphi 0, %s85
      %s103 = sphi 0, %s103
      %s105 = sphi 0, %s103
      %s106 = sphi 0, %s105
      %s120 = sphi 0, %s106
      %s126 = sphi 0, %s128
      %s129 = sphi 0, %s126
      %s130 = sphi 0, %s129
      %s146 = sphi 0, %s130
      %s152 = sphi 0, %s154
      %s155 = sphi 0, %s152
      %s156 = sphi 0, %s155
      %s172 = sphi 0, %s156
      %s178 = sphi 0, %s180
      %s181 = sphi 0, %s178
      %s182 = sphi 0, %s181
      %s198 = sphi 0, %s182
      %s204 = sphi 0, %s206
      %s207 = sphi 0, %s204
      %s208 = sphi 0, %s207
      %s224 = sphi 0, %s208
      %s230 = sphi 0, %s232
      %s233 = sphi 0, %s230
      %s234 = sphi 0, %s233
      %s250 = sphi 0, %s234
      %s256 = sphi 0, %s258
      %s259 = sphi 0, %s256
      %s260 = sphi 0, %s259
      %s276 = sphi 0, %s260
      %s282 = sphi 0, %s284
      %s285 = sphi 0, %s282
      %s286 = sphi 0, %s285
      %s302 = sphi 0, %s286
      %s306 = sphi 0, %s306
      %s308 = sphi 0, %s306
      %s309 = sphi 0, %s308
      %s323 = sphi 0, %s309
    $region4: #{forward.4} parent=1 // loop_header_branch
      %35 = sbr.rel (%p33) target = $region8
    $region5: #{forward.4} parent=1 // loop_body
      %s37 = ssub.s32 %s32, 1
      %s38 = ssub.s32 %s32, 2
      %s39 = sadd.s32 %s32, 1
      %s41 = sadd.s32 %s40, 1
      %p44 = scmp.eq.s32.totalorder %s32, 1
      %p45 = scmp.ne.s32.totalorder %s40, %s42
      %p46 = scmp.eq.s32.totalorder %s32, 0
      %p47 = por %p45, %p46
      %p48 = scmp.ne.s32.totalorder %s40, %s42
      %p49 = scmp.eq.s32.totalorder %s37, 1
      %p50 = por %p48, %p49
      %p51 = scmp.ne.s32.totalorder %s42, %s43
      %p52 = scmp.eq.s32.totalorder %s37, 0
      %p53 = por %p51, %p52
      %p54 = scmp.ne.s32.totalorder %s42, %s43
      %p55 = scmp.eq.s32.totalorder %s38, 1
      %p56 = por %p54, %p55
      %p58 = scmp.ne.s32.totalorder %s43, %s57
      %p59 = scmp.eq.s32.totalorder %s38, 0
      %p60 = por %p58, %p59
      %s62 = sadd.s32 %s61, 1
      %p65 = scmp.eq.s32.totalorder %s32, 1
      %p66 = scmp.ne.s32.totalorder %s61, %s63
      %p67 = scmp.eq.s32.totalorder %s32, 0
      %p68 = por %p66, %p67
      %p69 = scmp.ne.s32.totalorder %s61, %s63
      %p70 = scmp.eq.s32.totalorder %s37, 1
      %p71 = por %p69, %p70
      %p72 = scmp.ne.s32.totalorder %s63, %s64
      %p73 = scmp.eq.s32.totalorder %s37, 0
      %p74 = por %p72, %p73
      %p75 = scmp.ne.s32.totalorder %s63, %s64
      %p76 = scmp.eq.s32.totalorder %s38, 1
      %p77 = por %p75, %p76
      %p79 = scmp.ne.s32.totalorder %s64, %s78
      %p80 = scmp.eq.s32.totalorder %s38, 0
      %p81 = por %p79, %p80
      %s83 = sadd.s32 %s82, 1
      %p86 = scmp.eq.s32.totalorder %s32, 1
      %p87 = scmp.ne.s32.totalorder %s82, %s84
      %p88 = scmp.eq.s32.totalorder %s32, 0
      %p89 = por %p87, %p88
      %p90 = scmp.ne.s32.totalorder %s82, %s84
      %p91 = scmp.eq.s32.totalorder %s37, 1
      %p92 = por %p90, %p91
      %p93 = scmp.ne.s32.totalorder %s84, %s85
      %p94 = scmp.eq.s32.totalorder %s37, 0
      %p95 = por %p93, %p94
      %p96 = scmp.ne.s32.totalorder %s84, %s85
      %p97 = scmp.eq.s32.totalorder %s38, 1
      %p98 = por %p96, %p97
      %p100 = scmp.ne.s32.totalorder %s85, %s99
      %p101 = scmp.eq.s32.totalorder %s38, 0
      %p102 = por %p100, %p101
      %s104 = sadd.s32 %s103, 1
      %p107 = scmp.eq.s32.totalorder %s32, 1
      %p108 = scmp.ne.s32.totalorder %s103, %s105
      %p109 = scmp.eq.s32.totalorder %s32, 0
      %p110 = por %p108, %p109
      %p111 = scmp.ne.s32.totalorder %s103, %s105
      %p112 = scmp.eq.s32.totalorder %s37, 1
      %p113 = por %p111, %p112
      %p114 = scmp.ne.s32.totalorder %s105, %s106
      %p115 = scmp.eq.s32.totalorder %s37, 0
      %p116 = por %p114, %p115
      %p117 = scmp.ne.s32.totalorder %s105, %s106
      %p118 = scmp.eq.s32.totalorder %s38, 1
      %p119 = por %p117, %p118
      %p121 = scmp.ne.s32.totalorder %s106, %s120
      %p122 = scmp.eq.s32.totalorder %s38, 0
      %p123 = por %p121, %p122
      %s124 = ssub.s32 %s32, %s39
      %p125 = scmp.eq.s32.totalorder %s124, 0
      %s127 = sadd.s32 %s126, 1
      %s128 = scalar_select %p125, %s126, %s127
      %p131 = pneg %p125
      %p132 = scmp.eq.s32.totalorder %s32, 1
      %p133 = por %p131, %p132
      %p134 = scmp.ne.s32.totalorder %s126, %s129
      %p135 = scmp.eq.s32.totalorder %s32, 0
      %p136 = por %p134, %p135
      %p137 = scmp.ne.s32.totalorder %s126, %s129
      %p138 = scmp.eq.s32.totalorder %s37, 1
      %p139 = por %p137, %p138
      %p140 = scmp.ne.s32.totalorder %s129, %s130
      %p141 = scmp.eq.s32.totalorder %s37, 0
      %p142 = por %p140, %p141
      %p143 = scmp.ne.s32.totalorder %s129, %s130
      %p144 = scmp.eq.s32.totalorder %s38, 1
      %p145 = por %p143, %p144
      %p147 = scmp.ne.s32.totalorder %s130, %s146
      %p148 = scmp.eq.s32.totalorder %s38, 0
      %p149 = por %p147, %p148
      %s150 = ssub.s32 %s32, %s39
      %p151 = scmp.eq.s32.totalorder %s150, 0
      %s153 = sadd.s32 %s152, 1
      %s154 = scalar_select %p151, %s152, %s153
      %p157 = pneg %p151
      %p158 = scmp.eq.s32.totalorder %s32, 1
      %p159 = por %p157, %p158
      %p160 = scmp.ne.s32.totalorder %s152, %s155
      %p161 = scmp.eq.s32.totalorder %s32, 0
      %p162 = por %p160, %p161
      %p163 = scmp.ne.s32.totalorder %s152, %s155
      %p164 = scmp.eq.s32.totalorder %s37, 1
      %p165 = por %p163, %p164
      %p166 = scmp.ne.s32.totalorder %s155, %s156
      %p167 = scmp.eq.s32.totalorder %s37, 0
      %p168 = por %p166, %p167
      %p169 = scmp.ne.s32.totalorder %s155, %s156
      %p170 = scmp.eq.s32.totalorder %s38, 1
      %p171 = por %p169, %p170
      %p173 = scmp.ne.s32.totalorder %s156, %s172
      %p174 = scmp.eq.s32.totalorder %s38, 0
      %p175 = por %p173, %p174
      %s176 = ssub.s32 %s32, %s39
      %p177 = scmp.eq.s32.totalorder %s176, 0
      %s179 = sadd.s32 %s178, 1
      %s180 = scalar_select %p177, %s178, %s179
      %p183 = pneg %p177
      %p184 = scmp.eq.s32.totalorder %s32, 1
      %p185 = por %p183, %p184
      %p186 = scmp.ne.s32.totalorder %s178, %s181
      %p187 = scmp.eq.s32.totalorder %s32, 0
      %p188 = por %p186, %p187
      %p189 = scmp.ne.s32.totalorder %s178, %s181
      %p190 = scmp.eq.s32.totalorder %s37, 1
      %p191 = por %p189, %p190
      %p192 = scmp.ne.s32.totalorder %s181, %s182
      %p193 = scmp.eq.s32.totalorder %s37, 0
      %p194 = por %p192, %p193
      %p195 = scmp.ne.s32.totalorder %s181, %s182
      %p196 = scmp.eq.s32.totalorder %s38, 1
      %p197 = por %p195, %p196
      %p199 = scmp.ne.s32.totalorder %s182, %s198
      %p200 = scmp.eq.s32.totalorder %s38, 0
      %p201 = por %p199, %p200
      %s202 = ssub.s32 %s32, %s39
      %p203 = scmp.eq.s32.totalorder %s202, 0
      %s205 = sadd.s32 %s204, 1
      %s206 = scalar_select %p203, %s204, %s205
      %p209 = pneg %p203
      %p210 = scmp.eq.s32.totalorder %s32, 1
      %p211 = por %p209, %p210
      %p212 = scmp.ne.s32.totalorder %s204, %s207
      %p213 = scmp.eq.s32.totalorder %s32, 0
      %p214 = por %p212, %p213
      %p215 = scmp.ne.s32.totalorder %s204, %s207
      %p216 = scmp.eq.s32.totalorder %s37, 1
      %p217 = por %p215, %p216
      %p218 = scmp.ne.s32.totalorder %s207, %s208
      %p219 = scmp.eq.s32.totalorder %s37, 0
      %p220 = por %p218, %p219
      %p221 = scmp.ne.s32.totalorder %s207, %s208
      %p222 = scmp.eq.s32.totalorder %s38, 1
      %p223 = por %p221, %p222
      %p225 = scmp.ne.s32.totalorder %s208, %s224
      %p226 = scmp.eq.s32.totalorder %s38, 0
      %p227 = por %p225, %p226
      %s228 = ssub.s32 %s32, %s39
      %p229 = scmp.eq.s32.totalorder %s228, 0
      %s231 = sadd.s32 %s230, 1
      %s232 = scalar_select %p229, %s230, %s231
      %p235 = pneg %p229
      %p236 = scmp.eq.s32.totalorder %s32, 1
      %p237 = por %p235, %p236
      %p238 = scmp.ne.s32.totalorder %s230, %s233
      %p239 = scmp.eq.s32.totalorder %s32, 0
      %p240 = por %p238, %p239
      %p241 = scmp.ne.s32.totalorder %s230, %s233
      %p242 = scmp.eq.s32.totalorder %s37, 1
      %p243 = por %p241, %p242
      %p244 = scmp.ne.s32.totalorder %s233, %s234
      %p245 = scmp.eq.s32.totalorder %s37, 0
      %p246 = por %p244, %p245
      %p247 = scmp.ne.s32.totalorder %s233, %s234
      %p248 = scmp.eq.s32.totalorder %s38, 1
      %p249 = por %p247, %p248
      %p251 = scmp.ne.s32.totalorder %s234, %s250
      %p252 = scmp.eq.s32.totalorder %s38, 0
      %p253 = por %p251, %p252
      %s254 = ssub.s32 %s32, %s39
      %p255 = scmp.eq.s32.totalorder %s254, 0
      %s257 = sadd.s32 %s256, 1
      %s258 = scalar_select %p255, %s256, %s257
      %p261 = pneg %p255
      %p262 = scmp.eq.s32.totalorder %s32, 1
      %p263 = por %p261, %p262
      %p264 = scmp.ne.s32.totalorder %s256, %s259
      %p265 = scmp.eq.s32.totalorder %s32, 0
      %p266 = por %p264, %p265
      %p267 = scmp.ne.s32.totalorder %s256, %s259
      %p268 = scmp.eq.s32.totalorder %s37, 1
      %p269 = por %p267, %p268
      %p270 = scmp.ne.s32.totalorder %s259, %s260
      %p271 = scmp.eq.s32.totalorder %s37, 0
      %p272 = por %p270, %p271
      %p273 = scmp.ne.s32.totalorder %s259, %s260
      %p274 = scmp.eq.s32.totalorder %s38, 1
      %p275 = por %p273, %p274
      %p277 = scmp.ne.s32.totalorder %s260, %s276
      %p278 = scmp.eq.s32.totalorder %s38, 0
      %p279 = por %p277, %p278
      %s280 = ssub.s32 %s32, %s39
      %p281 = scmp.eq.s32.totalorder %s280, 0
      %s283 = sadd.s32 %s282, 1
      %s284 = scalar_select %p281, %s282, %s283
      %p287 = pneg %p281
      %p288 = scmp.eq.s32.totalorder %s32, 1
      %p289 = por %p287, %p288
      %p290 = scmp.ne.s32.totalorder %s282, %s285
      %p291 = scmp.eq.s32.totalorder %s32, 0
      %p292 = por %p290, %p291
      %p293 = scmp.ne.s32.totalorder %s282, %s285
      %p294 = scmp.eq.s32.totalorder %s37, 1
      %p295 = por %p293, %p294
      %p296 = scmp.ne.s32.totalorder %s285, %s286
      %p297 = scmp.eq.s32.totalorder %s37, 0
      %p298 = por %p296, %p297
      %p299 = scmp.ne.s32.totalorder %s285, %s286
      %p300 = scmp.eq.s32.totalorder %s38, 1
      %p301 = por %p299, %p300
      %p303 = scmp.ne.s32.totalorder %s286, %s302
      %p304 = scmp.eq.s32.totalorder %s38, 0
      %p305 = por %p303, %p304
      %s307 = sadd.s32 %s306, 1
      %p310 = scmp.eq.s32.totalorder %s32, 1
      %p311 = scmp.ne.s32.totalorder %s306, %s308
      %p312 = scmp.eq.s32.totalorder %s32, 0
      %p313 = por %p311, %p312
      %p314 = scmp.ne.s32.totalorder %s306, %s308
      %p315 = scmp.eq.s32.totalorder %s37, 1
      %p316 = por %p314, %p315
      %p317 = scmp.ne.s32.totalorder %s308, %s309
      %p318 = scmp.eq.s32.totalorder %s37, 0
      %p319 = por %p317, %p318
      %p320 = scmp.ne.s32.totalorder %s308, %s309
      %p321 = scmp.eq.s32.totalorder %s38, 1
      %p322 = por %p320, %p321
      %p324 = scmp.ne.s32.totalorder %s309, %s323
      %p325 = scmp.eq.s32.totalorder %s38, 0
      %p326 = por %p324, %p325
      %p327 = scmp.le.s32.totalorder 1, %s32
      %p328 = scmp.lt.s32.totalorder %s32, 3
      %p329 = pnand %p327, %p328
      %p330 = pneg %p329
      // Predicated region
      $region9: #{forward.4} parent=5 // pred_check
        _
      $region10: #{forward.4} parent=5 // pred_check_branch
        %332 = sbr.rel (%p329) target = $region12
      $region11: #{forward.4} parent=5 // pred_region
        %s333 = ssub.s32 %s32, 1
        // Predicated region
        $region13: #{forward.4} parent=11 // pred_check
          %p334 = pneg %p53
        $region14: #{forward.4} parent=11 // pred_check_branch
          %336 = sbr.rel (%p334) target = $region16
        $region15: #{forward.4} parent=11 // pred_region
          _
        $region16: #{forward.4} parent=11 // pred_fallthru
          _
        // Predicated region
        $region17: #{forward.4} parent=11 // pred_check
          %p337 = pneg %p74
        $region18: #{forward.4} parent=11 // pred_check_branch
          %339 = sbr.rel (%p337) target = $region20
        $region19: #{forward.4} parent=11 // pred_region
          _
        $region20: #{forward.4} parent=11 // pred_fallthru
          _
        // Predicated region
        $region21: #{forward.4} parent=11 // pred_check
          %p340 = pneg %p95
        $region22: #{forward.4} parent=11 // pred_check_branch
          %342 = sbr.rel (%p340) target = $region24
        $region23: #{forward.4} parent=11 // pred_region
          _
        $region24: #{forward.4} parent=11 // pred_fallthru
          _
        // Predicated region
        $region25: #{forward.4} parent=11 // pred_check
          %p343 = pneg %p116
        $region26: #{forward.4} parent=11 // pred_check_branch
          %345 = sbr.rel (%p343) target = $region28
        $region27: #{forward.4} parent=11 // pred_region
          %s347 = ssub.s32 16, 16
          %348 = vsyncadd [#allocation8], %s347
          %s350 = sshll.u32 [#allocation7], 4
          %s351 = int_to_ptr.vmem [resolvable:$true] %s350
          %353 = dma.hbm_to_vmem [thread:$0]  %s5, 16, %s351, [#allocation8]
        $region28: #{forward.4} parent=11 // pred_fallthru
          _
      $region12: #{forward.4} parent=5 // pred_fallthru
        _
      %p354 = scmp.lt.s32.totalorder %s32, 2
      // Predicated region
      $region29: #{forward.4} parent=5 // pred_check
        %p355 = pneg %p354
      $region30: #{forward.4} parent=5 // pred_check_branch
        %357 = sbr.rel (%p355) target = $region32
      $region31: #{forward.4} parent=5 // pred_region
        // Predicated region
        $region33: #{forward.4} parent=31 // pred_check
          %p358 = pneg %p136
        $region34: #{forward.4} parent=31 // pred_check_branch
          %360 = sbr.rel (%p358) target = $region36
        $region35: #{forward.4} parent=31 // pred_region
          %p361 = scmp.lt.s32.totalorder %s32, 1
          %s362 = scalar_select %p361, %s32, 1
          %s363 = smul.addr %s362, 16
          %s364 = smul.addr %s363, 4
          %s365 = scalar_lea.vmem %s6, %s364
        $region36: #{forward.4} parent=31 // pred_fallthru
          _
        // Predicated region
        $region37: #{forward.4} parent=31 // pred_check
          %p366 = pneg %p162
        $region38: #{forward.4} parent=31 // pred_check_branch
          %368 = sbr.rel (%p366) target = $region40
        $region39: #{forward.4} parent=31 // pred_region
          %p369 = scmp.lt.s32.totalorder %s32, 1
          %s370 = scalar_select %p369, %s32, 1
          %s371 = smul.addr %s370, 16
          %s372 = smul.addr %s371, 4
          %s373 = scalar_lea.vmem %s7, %s372
        $region40: #{forward.4} parent=31 // pred_fallthru
          _
        // Predicated region
        $region41: #{forward.4} parent=31 // pred_check
          %p374 = pneg %p188
        $region42: #{forward.4} parent=31 // pred_check_branch
          %376 = sbr.rel (%p374) target = $region44
        $region43: #{forward.4} parent=31 // pred_region
          %s377 = sand.u32 %s32, 1
          %s378 = scalar_lea.sflag [#allocation10], %s377
          %s379 = sand.u32 %s178, 1
          %s380 = smul.addr %s379, 64
          %s381 = scalar_lea.vmem [#allocation9], %s380
          %s383 = ssub.s32 1024, 1024
          %384 = vsyncadd %s378, %s383
          %s385 = smul.addr %s32, 16
          %s386 = smul.addr %s385, 64
          %s387 = scalar_lea.hbm %s8, %s386
          %s388 = sshll.u32 %s381, 4
          %s389 = int_to_ptr.vmem [resolvable:$true] %s388
          %394 = dma.hbm_to_vmem [thread:$0]  %s387, 1024, %s389, %s378, 64, 64, 4
        $region44: #{forward.4} parent=31 // pred_fallthru
          _
        // Predicated region
        $region45: #{forward.4} parent=31 // pred_check
          %p395 = pneg %p214
        $region46: #{forward.4} parent=31 // pred_check_branch
          %397 = sbr.rel (%p395) target = $region48
        $region47: #{forward.4} parent=31 // pred_region
          %s398 = sand.u32 %s32, 1
          %s399 = scalar_lea.sflag [#allocation10], %s398
          %s400 = sand.u32 %s204, 1
          %s401 = smul.addr %s400, 16
          %s402 = scalar_lea.vmem [#allocation11], %s401
          %s404 = ssub.s32 256, 256
          %405 = vsyncadd %s399, %s404
          %s406 = smul.addr %s32, 4
          %s407 = smul.addr %s406, 64
          %s408 = scalar_lea.hbm %s9, %s407
          %s409 = sshll.u32 %s402, 4
          %s410 = int_to_ptr.vmem [resolvable:$true] %s409
          %415 = dma.hbm_to_vmem [thread:$0]  %s408, 256, %s410, %s399, 64, 64, 4
        $region48: #{forward.4} parent=31 // pred_fallthru
          _
        // Predicated region
        $region49: #{forward.4} parent=31 // pred_check
          %p416 = pneg %p240
        $region50: #{forward.4} parent=31 // pred_check_branch
          %418 = sbr.rel (%p416) target = $region52
        $region51: #{forward.4} parent=31 // pred_region
          %s419 = sand.u32 %s32, 1
          %s420 = scalar_lea.sflag [#allocation13], %s419
          %s421 = sand.u32 %s230, 1
          %s422 = smul.addr %s421, 64
          %s423 = scalar_lea.vmem [#allocation12], %s422
          %s425 = ssub.s32 1024, 1024
          %426 = vsyncadd %s420, %s425
          %s427 = smul.addr %s32, 16
          %s428 = smul.addr %s427, 64
          %s429 = scalar_lea.hbm %s10, %s428
          %s430 = sshll.u32 %s423, 4
          %s431 = int_to_ptr.vmem [resolvable:$true] %s430
          %436 = dma.hbm_to_vmem [thread:$0]  %s429, 1024, %s431, %s420, 64, 64, 4
        $region52: #{forward.4} parent=31 // pred_fallthru
          _
        // Predicated region
        $region53: #{forward.4} parent=31 // pred_check
          %p437 = pneg %p266
        $region54: #{forward.4} parent=31 // pred_check_branch
          %439 = sbr.rel (%p437) target = $region56
        $region55: #{forward.4} parent=31 // pred_region
          %s440 = sand.u32 %s32, 1
          %s441 = scalar_lea.sflag [#allocation13], %s440
          %s442 = sand.u32 %s256, 1
          %s443 = smul.addr %s442, 64
          %s444 = scalar_lea.vmem [#allocation14], %s443
          %s446 = ssub.s32 1024, 1024
          %447 = vsyncadd %s441, %s446
          %s448 = smul.addr %s32, 16
          %s449 = smul.addr %s448, 64
          %s450 = scalar_lea.hbm %s11, %s449
          %s451 = sshll.u32 %s444, 4
          %s452 = int_to_ptr.vmem [resolvable:$true] %s451
          %457 = dma.hbm_to_vmem [thread:$0]  %s450, 1024, %s452, %s441, 64, 64, 4
        $region56: #{forward.4} parent=31 // pred_fallthru
          _
        // Predicated region
        $region57: #{forward.4} parent=31 // pred_check
          %p458 = pneg %p292
        $region58: #{forward.4} parent=31 // pred_check_branch
          %460 = sbr.rel (%p458) target = $region60
        $region59: #{forward.4} parent=31 // pred_region
          %p461 = scmp.lt.s32.totalorder %s32, 1
          %s462 = scalar_select %p461, %s32, 1
          %s463 = smul.addr %s462, 2
          %s464 = smul.addr %s463, 8
          %s465 = scalar_lea.vmem %s12, %s464
        $region60: #{forward.4} parent=31 // pred_fallthru
          _
      $region32: #{forward.4} parent=5 // pred_fallthru
        _
      %p466 = scmp.le.s32.totalorder 1, %s32
      %p467 = scmp.lt.s32.totalorder %s32, 3
      %p468 = pnand %p466, %p467
      %p469 = pneg %p468
      // Predicated region
      $region61: #{forward.4} parent=5 // pred_check
        _
      $region62: #{forward.4} parent=5 // pred_check_branch
        %471 = sbr.rel (%p468) target = $region64
      $region63: #{forward.4} parent=5 // pred_region
        %s472 = ssub.s32 %s32, 1
        // Predicated region
        $region65: #{forward.4} parent=63 // pred_check
          %p473 = pneg %p116
        $region66: #{forward.4} parent=63 // pred_check_branch
          %475 = sbr.rel (%p473) target = $region68
        $region67: #{forward.4} parent=63 // pred_region
          %476 = dma.done [#allocation8], 16
        $region68: #{forward.4} parent=63 // pred_fallthru
          _
        %s477 = sand.u32 %s37, 1
        %s478 = scalar_lea.sflag [#allocation10], %s477
        %s479 = sand.u32 %s181, 1
        %s480 = smul.addr %s479, 64
        %s481 = scalar_lea.vmem [#allocation9], %s480
        // Predicated region
        $region69: #{forward.4} parent=63 // pred_check
          %p482 = pneg %p194
        $region70: #{forward.4} parent=63 // pred_check_branch
          %484 = sbr.rel (%p482) target = $region72
        $region71: #{forward.4} parent=63 // pred_region
          %485 = dma.done %s478, 1024
        $region72: #{forward.4} parent=63 // pred_fallthru
          _
        %s486 = sand.u32 %s37, 1
        %s487 = scalar_lea.sflag [#allocation10], %s486
        %s488 = sand.u32 %s207, 1
        %s489 = smul.addr %s488, 16
        %s490 = scalar_lea.vmem [#allocation11], %s489
        // Predicated region
        $region73: #{forward.4} parent=63 // pred_check
          %p491 = pneg %p220
        $region74: #{forward.4} parent=63 // pred_check_branch
          %493 = sbr.rel (%p491) target = $region76
        $region75: #{forward.4} parent=63 // pred_region
          %494 = dma.done %s487, 256
        $region76: #{forward.4} parent=63 // pred_fallthru
          _
        %s495 = sand.u32 %s37, 1
        %s496 = scalar_lea.sflag [#allocation13], %s495
        %s497 = sand.u32 %s233, 1
        %s498 = smul.addr %s497, 64
        %s499 = scalar_lea.vmem [#allocation12], %s498
        // Predicated region
        $region77: #{forward.4} parent=63 // pred_check
          %p500 = pneg %p246
        $region78: #{forward.4} parent=63 // pred_check_branch
          %502 = sbr.rel (%p500) target = $region80
        $region79: #{forward.4} parent=63 // pred_region
          %503 = dma.done %s496, 1024
        $region80: #{forward.4} parent=63 // pred_fallthru
          _
        %s504 = sand.u32 %s37, 1
        %s505 = scalar_lea.sflag [#allocation13], %s504
        %s506 = sand.u32 %s259, 1
        %s507 = smul.addr %s506, 64
        %s508 = scalar_lea.vmem [#allocation14], %s507
        // Predicated region
        $region81: #{forward.4} parent=63 // pred_check
          %p509 = pneg %p272
        $region82: #{forward.4} parent=63 // pred_check_branch
          %511 = sbr.rel (%p509) target = $region84
        $region83: #{forward.4} parent=63 // pred_region
          %512 = dma.done %s505, 1024
        $region84: #{forward.4} parent=63 // pred_fallthru
          _
        %p513 = pneg %p53
        %p514 = pneg %p50
        %p515 = pneg %p74
        %p516 = pneg %p71
        %p517 = pneg %p95
        %p518 = pneg %p92
        %p519 = pneg %p116
        %p520 = pneg %p113
        %p521 = scmp.lt.s32.totalorder %s37, 1
        %s522 = scalar_select %p521, %s37, 1
        %s523 = smul.addr %s522, 16
        %s524 = smul.addr %s523, 4
        %s525 = scalar_lea.vmem %s6, %s524
        %p526 = pneg %p142
        %p527 = pneg %p139
        %p528 = scmp.lt.s32.totalorder %s37, 1
        %s529 = scalar_select %p528, %s37, 1
        %s530 = smul.addr %s529, 16
        %s531 = smul.addr %s530, 4
        %s532 = scalar_lea.vmem %s7, %s531
        %p533 = pneg %p168
        %p534 = pneg %p165
        %s535 = sand.u32 %s37, 1
        %s536 = scalar_lea.sflag [#allocation10], %s535
        %s537 = sand.u32 %s181, 1
        %s538 = smul.addr %s537, 64
        %s539 = scalar_lea.vmem [#allocation9], %s538
        %p540 = pneg %p194
        %p541 = pneg %p191
        %s542 = sand.u32 %s37, 1
        %s543 = scalar_lea.sflag [#allocation10], %s542
        %s544 = sand.u32 %s207, 1
        %s545 = smul.addr %s544, 16
        %s546 = scalar_lea.vmem [#allocation11], %s545
        %p547 = pneg %p220
        %p548 = pneg %p217
        %s549 = sand.u32 %s37, 1
        %s550 = scalar_lea.sflag [#allocation13], %s549
        %s551 = sand.u32 %s233, 1
        %s552 = smul.addr %s551, 64
        %s553 = scalar_lea.vmem [#allocation12], %s552
        %p554 = pneg %p246
        %p555 = pneg %p243
        %s556 = sand.u32 %s37, 1
        %s557 = scalar_lea.sflag [#allocation13], %s556
        %s558 = sand.u32 %s259, 1
        %s559 = smul.addr %s558, 64
        %s560 = scalar_lea.vmem [#allocation14], %s559
        %p561 = pneg %p272
        %p562 = pneg %p269
        %p563 = scmp.lt.s32.totalorder %s37, 1
        %s564 = scalar_select %p563, %s37, 1
        %s565 = smul.addr %s564, 2
        %s566 = smul.addr %s565, 8
        %s567 = scalar_lea.vmem %s12, %s566
        %p568 = pneg %p298
        %p569 = pneg %p295
        %p570 = pneg %p319
        %p571 = pneg %p316
        %p572 = scmp.lt.s32.totalorder %s37, 1
        %s573 = scalar_select %p572, %s37, 1
        %s574 = smul.addr %s573, 16
        %s575 = smul.addr %s574, 4
        %s576 = scalar_lea.vmem %s6, %s575
        %p577 = scmp.lt.s32.totalorder %s37, 1
        %s578 = scalar_select %p577, %s37, 1
        %s579 = smul.addr %s578, 16
        %s580 = smul.addr %s579, 4
        %s581 = scalar_lea.vmem %s7, %s580
        %p582 = scmp.lt.s32.totalorder %s37, 1
        %s583 = scalar_select %p582, %s37, 1
        %s584 = smul.addr %s583, 2
        %s585 = smul.addr %s584, 8
        %s586 = scalar_lea.vmem %s12, %s585
        %p588 = scmp.eq.s32.totalorder %s37, 0
        // Predicated region
        $region85: #{forward.4} parent=63 // pred_check
          %p589 = pneg %p588
        $region86: #{forward.4} parent=63 // pred_check_branch
          %591 = sbr.rel (%p589) target = $region88
        $region87: #{forward.4} parent=63 // pred_region
          %v592 = vld [vmem:[%s2] sm:$0xff]
          %v593 = vld [vmem:[%s2 + $0x8] sm:$0xff]
          %594 = vst [vmem:[#allocation2] sm:$0xff] %v592
          %595 = vst [vmem:[#allocation2 + $0x8] sm:$0xff] %v593
        $region88: #{forward.4} parent=63 // pred_fallthru
          _
        %v596 = vld [vmem:[#allocation2] sm:$0xff]
        %v597 = vld [vmem:[#allocation2 + $0x8] sm:$0xff]
        %v598 = vpack.c.bf16 %v597, %v596
        %599 = vst [vmem:[#allocation3] sm:$0xff] 0.0
        %600 = vst [vmem:[#allocation3 + $0x8] sm:$0xff] 0.0
        loop: start=0, step=1, limit=32
        $region89: #{forward.4} parent=63 // loop_pre_header
          _
        $region90: #{forward.4} parent=63 // loop_header
          %s602 = sphi 0, %s606
          %p603 = scmp.ge.s32.totalorder %s602, 32
        $region91: #{forward.4} parent=63 // loop_header_branch
          %605 = sbr.rel (%p603) target = $region95
        $region92: #{forward.4} parent=63 // loop_body
          %s607 = sld [smem:[#allocation5 + %s602]]
          %s608 = sld [smem:[#allocation6 + %s602]]
          %s609 = scalar_lea.vmem [#allocation2], %s607
          %v610 = vld [vmem:[%s609] sm:$0x1]
          %s611 = scalar_lea.vmem %s3, %s602
          %v612 = vld [vmem:[%s611] sm:$0x1]
          %v613 = vadd.f32 %v610, %v612
          %v614 = vmax.f32 %v613, 0.0
          %s615 = scalar_lea.vmem [#allocation3], %s608
          %v616 = vld [vmem:[%s615] sm:$0x1]
          %v617 = vadd.f32 %v616, %v614
          %618 = vst [vmem:[%s615] sm:$0x1] %v617
        $region93: #{forward.4} parent=63 // loop_footer
          %s606 = sadd.s32 1, %s602
        $region94: #{forward.4} parent=63 // loop_footer_branch
          %601 = sbr.rel target = $region90
        $region95: #{forward.4} parent=63 // loop_exit
          _
        %v619 = vld [vmem:[#allocation3] sm:$0xff]
        %v620 = vld [vmem:[#allocation3 + $0x8] sm:$0xff]
        %v621 = vadd.f32 %v596, %v619
        %v622 = vadd.f32 %v597, %v620
        %v623 = vpack.c.bf16 %v622, %v621
        %v624 = vld [vmem:[%s576] sm:$0xf]
        %v625 = vld [vmem:[%s576 + $0x4] sm:$0xf]
        %v626 = vld [vmem:[%s576 + $0x8] sm:$0xf]
        %v627 = vld [vmem:[%s576 + $0xc] sm:$0xf]
        %v628 = vld [vmem:[%s576 + $0x10] sm:$0xf]
        %v629 = vld [vmem:[%s576 + $0x14] sm:$0xf]
        %v630 = vld [vmem:[%s576 + $0x18] sm:$0xf]
        %v631 = vld [vmem:[%s576 + $0x1c] sm:$0xf]
        %v632 = vld [vmem:[%s576 + $0x20] sm:$0xf]
        %v633 = vld [vmem:[%s576 + $0x24] sm:$0xf]
        %v634 = vld [vmem:[%s576 + $0x28] sm:$0xf]
        %v635 = vld [vmem:[%s576 + $0x2c] sm:$0xf]
        %v636 = vld [vmem:[%s576 + $0x30] sm:$0xf]
        %v637 = vld [vmem:[%s576 + $0x34] sm:$0xf]
        %v638 = vld [vmem:[%s576 + $0x38] sm:$0xf]
        %v639 = vld [vmem:[%s576 + $0x3c] sm:$0xf]
        %v640 = vld [vmem:[%s586 + $0x2] sm:$0x1]
        %v641 = vlaneseq
        %v642 = vshrl.u32 %v641, 7
        %v643 = vsub.s32 0, %v642
        %v644 = vrot.slane %v640, %v643
        %v661 = vunpack.c.l.b16 %v624
        %v662 = vunpack.c.l.b16 %v625
        %v663 = vunpack.c.l.b16 %v626
        %v664 = vunpack.c.l.b16 %v627
        %v665 = vunpack.c.l.b16 %v628
        %v666 = vunpack.c.l.b16 %v629
        %v667 = vunpack.c.l.b16 %v630
        %v668 = vunpack.c.l.b16 %v631
        %v669 = vunpack.c.l.b16 %v632
        %v670 = vunpack.c.l.b16 %v633
        %v671 = vunpack.c.l.b16 %v634
        %v672 = vunpack.c.l.b16 %v635
        %v673 = vunpack.c.l.b16 %v636
        %v674 = vunpack.c.l.b16 %v637
        %v675 = vunpack.c.l.b16 %v638
        %v676 = vunpack.c.l.b16 %v639
        %v677 = vpack.c.b16 %v662, %v661
        %v678 = vpack.c.b16 %v664, %v663
        %v679 = vpack.c.b16 %v666, %v665
        %v680 = vpack.c.b16 %v668, %v667
        %v681 = vpack.c.b16 %v670, %v669
        %v682 = vpack.c.b16 %v672, %v671
        %v683 = vpack.c.b16 %v674, %v673
        %v684 = vpack.c.b16 %v676, %v675
        %693 = vmatprep.subr.bf16.mxu0 0
        %694 = vmatpush1.bf16.msra.mxu0 %v677
        %695 = vmatprep.subr.bf16.mxu0 0
        %696 = vmatpush1.bf16.msra.mxu0 %v678
        %697 = vmatprep.subr.bf16.mxu0 0
        %698 = vmatpush1.bf16.msra.mxu0 %v679
        %699 = vmatprep.subr.bf16.mxu0 0
        %700 = vmatpush1.bf16.msra.mxu0 %v680
        %701 = vmatprep.subr.bf16.mxu0 0
        %702 = vmatpush1.bf16.msra.mxu0 %v681
        %703 = vmatprep.subr.bf16.mxu0 0
        %704 = vmatpush1.bf16.msra.mxu0 %v682
        %705 = vmatprep.subr.bf16.mxu0 0
        %706 = vmatpush1.bf16.msra.mxu0 %v683
        %707 = vmatprep.subr.bf16.mxu0 0
        %708 = vmatpush1.bf16.msra.mxu0 %v684
        %709 = vmatprep.subr.bf16.mxu0 0
        %710 = vmatpush1.bf16.msra.mxu0 0
        %711 = vmatprep.subr.bf16.mxu0 0
        %712 = vmatpush1.bf16.msra.mxu0 0
        %713 = vmatprep.subr.bf16.mxu0 0
        %714 = vmatpush1.bf16.msra.mxu0 0
        %715 = vmatprep.subr.bf16.mxu0 0
        %716 = vmatpush1.bf16.msra.mxu0 0
        %717 = vmatprep.subr.bf16.mxu0 0
        %718 = vmatpush1.bf16.msra.mxu0 0
        %719 = vmatprep.subr.bf16.mxu0 0
        %720 = vmatpush1.bf16.msra.mxu0 0
        %721 = vmatprep.subr.bf16.mxu0 0
        %722 = vmatpush1.bf16.msra.mxu0 0
        %723 = vmatprep.subr.bf16.mxu0 0
        %724 = vmatpush1.bf16.msra.mxu0 0
        %725 = vmatprep.mubr.bf16.mxu0 0
        %726 = vmatmul.mubr.bf16.gmra.mrb[0].mxu0 %v623
        %v727 = vpop.f32.mrb[0].mxu0
        %v728 = vadd.f32 %v644, %v727
        %v729 = vpop.f32.mrb[0].mxu0
        %v730 = vpop.f32.mrb[0].mxu0
        %v731 = vadd.f32 %v644, %v730
        %v732 = vpop.f32.mrb[0].mxu0
        %733 = vdwg.mxu0
        %v734 = vmax.f32 %v728, 0.0
        %v735 = vmax.f32 %v731, 0.0
        %v736 = vpack.c.bf16 %v735, %v734
        %v737 = vld [vmem:[%s581] sm:$0xf]
        %v738 = vld [vmem:[%s581 + $0x4] sm:$0xf]
        %v739 = vld [vmem:[%s581 + $0x8] sm:$0xf]
        %v740 = vld [vmem:[%s581 + $0xc] sm:$0xf]
        %v741 = vld [vmem:[%s581 + $0x10] sm:$0xf]
        %v742 = vld [vmem:[%s581 + $0x14] sm:$0xf]
        %v743 = vld [vmem:[%s581 + $0x18] sm:$0xf]
        %v744 = vld [vmem:[%s581 + $0x1c] sm:$0xf]
        %v745 = vld [vmem:[%s581 + $0x20] sm:$0xf]
        %v746 = vld [vmem:[%s581 + $0x24] sm:$0xf]
        %v747 = vld [vmem:[%s581 + $0x28] sm:$0xf]
        %v748 = vld [vmem:[%s581 + $0x2c] sm:$0xf]
        %v749 = vld [vmem:[%s581 + $0x30] sm:$0xf]
        %v750 = vld [vmem:[%s581 + $0x34] sm:$0xf]
        %v751 = vld [vmem:[%s581 + $0x38] sm:$0xf]
        %v752 = vld [vmem:[%s581 + $0x3c] sm:$0xf]
        %v753 = vld [vmem:[%s586 + $0x3] sm:$0x1]
        %v754 = vlaneseq
        %v755 = vshrl.u32 %v754, 7
        %v756 = vsub.s32 0, %v755
        %v757 = vrot.slane %v753, %v756
        %v774 = vunpack.c.l.b16 %v737
        %v775 = vunpack.c.l.b16 %v738
        %v776 = vunpack.c.l.b16 %v739
        %v777 = vunpack.c.l.b16 %v740
        %v778 = vunpack.c.l.b16 %v741
        %v779 = vunpack.c.l.b16 %v742
        %v780 = vunpack.c.l.b16 %v743
        %v781 = vunpack.c.l.b16 %v744
        %v782 = vunpack.c.l.b16 %v745
        %v783 = vunpack.c.l.b16 %v746
        %v784 = vunpack.c.l.b16 %v747
        %v785 = vunpack.c.l.b16 %v748
        %v786 = vunpack.c.l.b16 %v749
        %v787 = vunpack.c.l.b16 %v750
        %v788 = vunpack.c.l.b16 %v751
        %v789 = vunpack.c.l.b16 %v752
        %v790 = vpack.c.b16 %v775, %v774
        %v791 = vpack.c.b16 %v777, %v776
        %v792 = vpack.c.b16 %v779, %v778
        %v793 = vpack.c.b16 %v781, %v780
        %v794 = vpack.c.b16 %v783, %v782
        %v795 = vpack.c.b16 %v785, %v784
        %v796 = vpack.c.b16 %v787, %v786
        %v797 = vpack.c.b16 %v789, %v788
        %806 = vmatprep.subr.bf16.mxu0 0
        %807 = vmatpush1.bf16.msra.mxu0 %v790
        %808 = vmatprep.subr.bf16.mxu0 0
        %809 = vmatpush1.bf16.msra.mxu0 %v791
        %810 = vmatprep.subr.bf16.mxu0 0
        %811 = vmatpush1.bf16.msra.mxu0 %v792
        %812 = vmatprep.subr.bf16.mxu0 0
        %813 = vmatpush1.bf16.msra.mxu0 %v793
        %814 = vmatprep.subr.bf16.mxu0 0
        %815 = vmatpush1.bf16.msra.mxu0 %v794
        %816 = vmatprep.subr.bf16.mxu0 0
        %817 = vmatpush1.bf16.msra.mxu0 %v795
        %818 = vmatprep.subr.bf16.mxu0 0
        %819 = vmatpush1.bf16.msra.mxu0 %v796
        %820 = vmatprep.subr.bf16.mxu0 0
        %821 = vmatpush1.bf16.msra.mxu0 %v797
        %822 = vmatprep.subr.bf16.mxu0 0
        %823 = vmatpush1.bf16.msra.mxu0 0
        %824 = vmatprep.subr.bf16.mxu0 0
        %825 = vmatpush1.bf16.msra.mxu0 0
        %826 = vmatprep.subr.bf16.mxu0 0
        %827 = vmatpush1.bf16.msra.mxu0 0
        %828 = vmatprep.subr.bf16.mxu0 0
        %829 = vmatpush1.bf16.msra.mxu0 0
        %830 = vmatprep.subr.bf16.mxu0 0
        %831 = vmatpush1.bf16.msra.mxu0 0
        %832 = vmatprep.subr.bf16.mxu0 0
        %833 = vmatpush1.bf16.msra.mxu0 0
        %834 = vmatprep.subr.bf16.mxu0 0
        %835 = vmatpush1.bf16.msra.mxu0 0
        %836 = vmatprep.subr.bf16.mxu0 0
        %837 = vmatpush1.bf16.msra.mxu0 0
        %838 = vmatprep.mubr.bf16.mxu0 0
        %839 = vmatmul.mubr.bf16.gmra.mrb[0].mxu0 %v736
        %v840 = vpop.f32.mrb[0].mxu0
        %v841 = vadd.f32 %v757, %v840
        %v842 = vpop.f32.mrb[0].mxu0
        %v843 = vpop.f32.mrb[0].mxu0
        %v844 = vadd.f32 %v757, %v843
        %v845 = vpop.f32.mrb[0].mxu0
        %846 = vdwg.mxu0
        %v847 = vadd.f32 %v841, %v596
        %v848 = vadd.f32 %v844, %v597
        %v849 = vld [vmem:[%s586 + $0x6] sm:$0x1]
        %v850 = vlaneseq
        %v851 = vshrl.u32 %v850, 7
        %v852 = vsub.s32 0, %v851
        %v853 = vrot.slane %v849, %v852
        %v854 = vmul.f32 %v847, %v853
        %v855 = vmul.f32 %v848, %v853
        %v856 = vld [vmem:[%s586 + $0x7] sm:$0x1]
        %v857 = vlaneseq
        %v858 = vshrl.u32 %v857, 7
        %v859 = vsub.s32 0, %v858
        %v860 = vrot.slane %v856, %v859
        %v861 = vadd.f32 %v854, %v860
        %v862 = vadd.f32 %v855, %v860
        %v863 = vld [vmem:[%s481] sm:$0xf]
        %v864 = vld [vmem:[%s481 + $0x4] sm:$0xf]
        %v865 = vld [vmem:[%s481 + $0x8] sm:$0xf]
        %v866 = vld [vmem:[%s481 + $0xc] sm:$0xf]
        %v867 = vld [vmem:[%s481 + $0x10] sm:$0xf]
        %v868 = vld [vmem:[%s481 + $0x14] sm:$0xf]
        %v869 = vld [vmem:[%s481 + $0x18] sm:$0xf]
        %v870 = vld [vmem:[%s481 + $0x1c] sm:$0xf]
        %v871 = vld [vmem:[%s481 + $0x20] sm:$0xf]
        %v872 = vld [vmem:[%s481 + $0x24] sm:$0xf]
        %v873 = vld [vmem:[%s481 + $0x28] sm:$0xf]
        %v874 = vld [vmem:[%s481 + $0x2c] sm:$0xf]
        %v875 = vld [vmem:[%s481 + $0x30] sm:$0xf]
        %v876 = vld [vmem:[%s481 + $0x34] sm:$0xf]
        %v877 = vld [vmem:[%s481 + $0x38] sm:$0xf]
        %v878 = vld [vmem:[%s481 + $0x3c] sm:$0xf]
        %v879 = vld [vmem:[%s586] sm:$0x1]
        %v880 = vlaneseq
        %v881 = vshrl.u32 %v880, 7
        %v882 = vsub.s32 0, %v881
        %v883 = vrot.slane %v879, %v882
        %v900 = vunpack.c.l.b16 %v863
        %v901 = vunpack.c.l.b16 %v864
        %v902 = vunpack.c.l.b16 %v865
        %v903 = vunpack.c.l.b16 %v866
        %v904 = vunpack.c.l.b16 %v867
        %v905 = vunpack.c.l.b16 %v868
        %v906 = vunpack.c.l.b16 %v869
        %v907 = vunpack.c.l.b16 %v870
        %v908 = vunpack.c.l.b16 %v871
        %v909 = vunpack.c.l.b16 %v872
        %v910 = vunpack.c.l.b16 %v873
        %v911 = vunpack.c.l.b16 %v874
        %v912 = vunpack.c.l.b16 %v875
        %v913 = vunpack.c.l.b16 %v876
        %v914 = vunpack.c.l.b16 %v877
        %v915 = vunpack.c.l.b16 %v878
        %v916 = vpack.c.b16 %v901, %v900
        %v917 = vpack.c.b16 %v903, %v902
        %v918 = vpack.c.b16 %v905, %v904
        %v919 = vpack.c.b16 %v907, %v906
        %v920 = vpack.c.b16 %v909, %v908
        %v921 = vpack.c.b16 %v911, %v910
        %v922 = vpack.c.b16 %v913, %v912
        %v923 = vpack.c.b16 %v915, %v914
        %932 = vmatprep.subr.bf16.mxu0 0
        %933 = vmatpush1.bf16.msra.mxu0 %v916
        %934 = vmatprep.subr.bf16.mxu0 0
        %935 = vmatpush1.bf16.msra.mxu0 %v917
        %936 = vmatprep.subr.bf16.mxu0 0
        %937 = vmatpush1.bf16.msra.mxu0 %v918
        %938 = vmatprep.subr.bf16.mxu0 0
        %939 = vmatpush1.bf16.msra.mxu0 %v919
        %940 = vmatprep.subr.bf16.mxu0 0
        %941 = vmatpush1.bf16.msra.mxu0 %v920
        %942 = vmatprep.subr.bf16.mxu0 0
        %943 = vmatpush1.bf16.msra.mxu0 %v921
        %944 = vmatprep.subr.bf16.mxu0 0
        %945 = vmatpush1.bf16.msra.mxu0 %v922
        %946 = vmatprep.subr.bf16.mxu0 0
        %947 = vmatpush1.bf16.msra.mxu0 %v923
        %948 = vmatprep.subr.bf16.mxu0 0
        %949 = vmatpush1.bf16.msra.mxu0 0
        %950 = vmatprep.subr.bf16.mxu0 0
        %951 = vmatpush1.bf16.msra.mxu0 0
        %952 = vmatprep.subr.bf16.mxu0 0
        %953 = vmatpush1.bf16.msra.mxu0 0
        %954 = vmatprep.subr.bf16.mxu0 0
        %955 = vmatpush1.bf16.msra.mxu0 0
        %956 = vmatprep.subr.bf16.mxu0 0
        %957 = vmatpush1.bf16.msra.mxu0 0
        %958 = vmatprep.subr.bf16.mxu0 0
        %959 = vmatpush1.bf16.msra.mxu0 0
        %960 = vmatprep.subr.bf16.mxu0 0
        %961 = vmatpush1.bf16.msra.mxu0 0
        %962 = vmatprep.subr.bf16.mxu0 0
        %963 = vmatpush1.bf16.msra.mxu0 0
        %964 = vmatprep.mubr.bf16.mxu0 0
        %965 = vmatmul.mubr.bf16.gmra.mrb[0].mxu0 %v598
        %v966 = vpop.f32.mrb[0].mxu0
        %v967 = vadd.f32 %v883, %v966
        %v968 = vpop.f32.mrb[0].mxu0
        %v969 = vpop.f32.mrb[0].mxu0
        %v970 = vadd.f32 %v883, %v969
        %v971 = vpop.f32.mrb[0].mxu0
        %972 = vdwg.mxu0
        %v973 = vld [vmem:[%s4] sm:$0xff]
        %v974 = vld [vmem:[%s4 + $0x8] sm:$0xff]
        %v975 = vld [vmem:[#allocation7] sm:$0x1]
        %976 = vset.pattern.permute.xlu0 0
        %977 = vperm.xlu0 %976, %v973
        %v978 = vpop.permute.xlu0 %977
        %979 = vset.pattern.permute.xlu0 0
        %980 = vperm.xlu0 %979, %v974
        %v981 = vpop.permute.xlu0 %980
        %v982 = vlaneseq
        %v983 = vshrl.u32 %v982, 7
        %v984 = vsub.s32 0, %v983
        %v985 = vrot.slane %v975, %v984
        %vm986 = vcmp.eq.s32.totalorder %v978, %v985
        %vm987 = vcmp.eq.s32.totalorder %v981, %v985
        %v988 = vpack.c.bf16 %v970, %v967
        %990 = vrot.lane.b32.xlu0 %v988, 96
        %v991 = vpop.permute.xlu0 %990
        %vm992 = vcmask 64512
        %v994 = vsel %vm992, %v988, 0
        %v997 = vsel %vm992, %v991, 0
        %999 = vmatprep.subr.bf16.mxu0 0
        %1000 = vmatpush1.bf16.xpose.msra.mxu0 %v997
        %1001 = vmatprep.subr.bf16.mxu0 0
        %1002 = vmatpush1.bf16.xpose.msra.mxu0 0
        %1003 = vmatprep.subr.bf16.mxu0 0
        %1004 = vmatpush1.bf16.xpose.msra.mxu0 0
        %1005 = vmatprep.subr.bf16.mxu0 0
        %1006 = vmatpush1.bf16.xpose.msra.mxu0 0
        %1007 = vmatprep.subr.bf16.mxu0 0
        %1008 = vmatpush1.bf16.xpose.msra.mxu0 0
        %1009 = vmatprep.subr.bf16.mxu0 0
        %1010 = vmatpush1.bf16.xpose.msra.mxu0 0
        %1011 = vmatprep.subr.bf16.mxu0 0
        %1012 = vmatpush1.bf16.xpose.msra.mxu0 0
        %1013 = vmatprep.subr.bf16.mxu0 0
        %1014 = vmatpush1.bf16.xpose.msra.mxu0 0
        %1015 = vmatprep.subr.bf16.mxu0 0
        %1016 = vmatpush1.bf16.xpose.msra.mxu0 0
        %1017 = vmatprep.subr.bf16.mxu0 0
        %1018 = vmatpush1.bf16.xpose.msra.mxu0 0
        %1019 = vmatprep.subr.bf16.mxu0 0
        %1020 = vmatpush1.bf16.xpose.msra.mxu0 0
        %1021 = vmatprep.subr.bf16.mxu0 0
        %1022 = vmatpush1.bf16.xpose.msra.mxu0 0
        %1023 = vmatprep.subr.bf16.mxu0 0
        %1024 = vmatpush1.bf16.xpose.msra.mxu0 0
        %1025 = vmatprep.subr.bf16.mxu0 0
        %1026 = vmatpush1.bf16.xpose.msra.mxu0 0
        %1027 = vmatprep.subr.bf16.mxu0 0
        %1028 = vmatpush1.bf16.xpose.msra.mxu0 0
        %1029 = vmatprep.subr.bf16.mxu0 0
        %1030 = vmatpush1.bf16.xpose.msra.mxu0 0
        %1031 = vmatprep.mubr.bf16.mxu0 0
        %1032 = vmatmul.mubr.bf16.gmra.mrb[0].mxu0 %v994
        %v1033 = vpop.f32.mrb[0].mxu0
        %v1034 = vadd.f32 0.0, %v1033
        %v1035 = vpop.f32.mrb[0].mxu0
        %v1036 = vpop.f32.mrb[0].mxu0
        %v1037 = vadd.f32 0.0, %v1036
        %v1038 = vpop.f32.mrb[0].mxu0
        %1039 = vdwg.mxu0
        %v1040 = vmul.f32 %v1034, 0.35355338
        %v1041 = vmul.f32 %v1037, 0.35355338
        %v1042 = vsel %vm986, %v1040, -1e+30
        %v1043 = vsel %vm987, %v1041, -1e+30
        %vm1044 = vcmask 130048
        %v1045 = vsel %vm1044, %v1042, -inf
        %1046 = vmax.xlane.f32.xlu0 %v1045
        %v1047 = vpop.xlane.xlu0 %1046
        %v1048 = vsel %vm1044, %v1043, -inf
        %1049 = vmax.xlane.f32.xlu0 %v1048
        %v1050 = vpop.xlane.xlu0 %1049
        %v1051 = vsub.f32 %v1042, %v1047
        %v1052 = vsub.f32 %v1043, %v1050
        %v1053 = vmul.f32 %v1051, 1.442695
        %v1054 = vpow.pop %v1053
        %v1055 = vmul.f32 %v1052, 1.442695
        %v1056 = vpow.pop %v1055
        %v1057 = vsel %vm1044, %v1054, 0.0
        %1058 = vadd.xlane.f32.xlu0 %v1057
        %v1059 = vpop.xlane.xlu0 %1058
        %v1060 = vsel %vm1044, %v1056, 0.0
        %1061 = vadd.xlane.f32.xlu0 %v1060
        %v1062 = vpop.xlane.xlu0 %1061
        %v1063 = vrcp.pop %v1059
        %v1064 = vrcp.pop %v1062
        %v1065 = vmul.f32 %v1054, %v1063
        %v1066 = vmul.f32 %v1056, %v1064
        %v1067 = vpack.c.bf16 %v1066, %v1065
        %1068 = vrot.lane.b32.xlu0 %v988, 64
        %v1069 = vpop.permute.xlu0 %1068
        %v1072 = vsel %vm1044, %v1067, 0
        %1074 = vmatprep.subr.bf16.mxu0 0
        %1075 = vmatpush1.bf16.msra.mxu0 %v1069
        %1076 = vmatprep.subr.bf16.mxu0 0
        %1077 = vmatpush1.bf16.msra.mxu0 0
        %1078 = vmatprep.subr.bf16.mxu0 0
        %1079 = vmatpush1.bf16.msra.mxu0 0
        %1080 = vmatprep.subr.bf16.mxu0 0
        %1081 = vmatpush1.bf16.msra.mxu0 0
        %1082 = vmatprep.subr.bf16.mxu0 0
        %1083 = vmatpush1.bf16.msra.mxu0 0
        %1084 = vmatprep.subr.bf16.mxu0 0
        %1085 = vmatpush1.bf16.msra.mxu0 0
        %1086 = vmatprep.subr.bf16.mxu0 0
        %1087 = vmatpush1.bf16.msra.mxu0 0
        %1088 = vmatprep.subr.bf16.mxu0 0
        %1089 = vmatpush1.bf16.msra.mxu0 0
        %1090 = vmatprep.subr.bf16.mxu0 0
        %1091 = vmatpush1.bf16.msra.mxu0 0
        %1092 = vmatprep.subr.bf16.mxu0 0
        %1093 = vmatpush1.bf16.msra.mxu0 0
        %1094 = vmatprep.subr.bf16.mxu0 0
        %1095 = vmatpush1.bf16.msra.mxu0 0
        %1096 = vmatprep.subr.bf16.mxu0 0
        %1097 = vmatpush1.bf16.msra.mxu0 0
        %1098 = vmatprep.subr.bf16.mxu0 0
        %1099 = vmatpush1.bf16.msra.mxu0 0
        %1100 = vmatprep.subr.bf16.mxu0 0
        %1101 = vmatpush1.bf16.msra.mxu0 0
        %1102 = vmatprep.subr.bf16.mxu0 0
        %1103 = vmatpush1.bf16.msra.mxu0 0
        %1104 = vmatprep.subr.bf16.mxu0 0
        %1105 = vmatpush1.bf16.msra.mxu0 0
        %1106 = vmatprep.mubr.bf16.mxu0 0
        %1107 = vmatmul.mubr.bf16.gmra.mrb[0].mxu0 %v1072
        %v1108 = vpop.f32.mrb[0].mxu0
        %v1109 = vadd.f32 0.0, %v1108
        %v1110 = vpop.f32.mrb[0].mxu0
        %v1111 = vpop.f32.mrb[0].mxu0
        %v1112 = vadd.f32 0.0, %v1111
        %v1113 = vpop.f32.mrb[0].mxu0
        %1114 = vdwg.mxu0
        %v1115 = vpack.c.bf16 %v1112, %v1109
        %v1116 = vld [vmem:[%s490] sm:$0xf]
        %1117 = vrot.lane.b32.xlu0 %v988, 120
        %v1118 = vpop.permute.xlu0 %1117
        %1119 = vrot.lane.b32.xlu0 %v988, 88
        %v1120 = vpop.permute.xlu0 %1119
        %v1122 = vsel %vm992, %v1118, 0
        %v1125 = vsel %vm992, %v1120, 0
        %1127 = vmatprep.subr.bf16.mxu0 0
        %1128 = vmatpush1.bf16.xpose.msra.mxu0 %v1125
        %1129 = vmatprep.subr.bf16.mxu0 0
        %1130 = vmatpush1.bf16.xpose.msra.mxu0 0
        %1131 = vmatprep.subr.bf16.mxu0 0
        %1132 = vmatpush1.bf16.xpose.msra.mxu0 0
        %1133 = vmatprep.subr.bf16.mxu0 0
        %1134 = vmatpush1.bf16.xpose.msra.mxu0 0
        %1135 = vmatprep.subr.bf16.mxu0 0
        %1136 = vmatpush1.bf16.xpose.msra.mxu0 0
        %1137 = vmatprep.subr.bf16.mxu0 0
        %1138 = vmatpush1.bf16.xpose.msra.mxu0 0
        %1139 = vmatprep.subr.bf16.mxu0 0
        %1140 = vmatpush1.bf16.xpose.msra.mxu0 0
        %1141 = vmatprep.subr.bf16.mxu0 0
        %1142 = vmatpush1.bf16.xpose.msra.mxu0 0
        %1143 = vmatprep.subr.bf16.mxu0 0
        %1144 = vmatpush1.bf16.xpose.msra.mxu0 0
        %1145 = vmatprep.subr.bf16.mxu0 0
        %1146 = vmatpush1.bf16.xpose.msra.mxu0 0
        %1147 = vmatprep.subr.bf16.mxu0 0
        %1148 = vmatpush1.bf16.xpose.msra.mxu0 0
        %1149 = vmatprep.subr.bf16.mxu0 0
        %1150 = vmatpush1.bf16.xpose.msra.mxu0 0
        %1151 = vmatprep.subr.bf16.mxu0 0
        %1152 = vmatpush1.bf16.xpose.msra.mxu0 0
        %1153 = vmatprep.subr.bf16.mxu0 0
        %1154 = vmatpush1.bf16.xpose.msra.mxu0 0
        %1155 = vmatprep.subr.bf16.mxu0 0
        %1156 = vmatpush1.bf16.xpose.msra.mxu0 0
        %1157 = vmatprep.subr.bf16.mxu0 0
        %1158 = vmatpush1.bf16.xpose.msra.mxu0 0
        %1159 = vmatprep.mubr.bf16.mxu0 0
        %1160 = vmatmul.mubr.bf16.gmra.mrb[0].mxu0 %v1122
        %v1161 = vpop.f32.mrb[0].mxu0
        %v1162 = vadd.f32 0.0, %v1161
        %v1163 = vpop.f32.mrb[0].mxu0
        %v1164 = vpop.f32.mrb[0].mxu0
        %v1165 = vadd.f32 0.0, %v1164
        %v1166 = vpop.f32.mrb[0].mxu0
        %1167 = vdwg.mxu0
        %v1168 = vmul.f32 %v1162, 0.35355338
        %v1169 = vmul.f32 %v1165, 0.35355338
        %v1170 = vsel %vm986, %v1168, -1e+30
        %v1171 = vsel %vm987, %v1169, -1e+30
        %v1172 = vsel %vm1044, %v1170, -inf
        %1173 = vmax.xlane.f32.xlu0 %v1172
        %v1174 = vpop.xlane.xlu0 %1173
        %v1175 = vsel %vm1044, %v1171, -inf
        %1176 = vmax.xlane.f32.xlu0 %v1175
        %v1177 = vpop.xlane.xlu0 %1176
        %v1178 = vsub.f32 %v1170, %v1174
        %v1179 = vsub.f32 %v1171, %v1177
        %v1180 = vmul.f32 %v1178, 1.442695
        %v1181 = vpow.pop %v1180
        %v1182 = vmul.f32 %v1179, 1.442695
        %v1183 = vpow.pop %v1182
        %v1184 = vsel %vm1044, %v1181, 0.0
        %1185 = vadd.xlane.f32.xlu0 %v1184
        %v1186 = vpop.xlane.xlu0 %1185
        %v1187 = vsel %vm1044, %v1183, 0.0
        %1188 = vadd.xlane.f32.xlu0 %v1187
        %v1189 = vpop.xlane.xlu0 %1188
        %v1190 = vrcp.pop %v1186
        %v1191 = vrcp.pop %v1189
        %v1192 = vmul.f32 %v1181, %v1190
        %v1193 = vmul.f32 %v1183, %v1191
        %v1194 = vpack.c.bf16 %v1193, %v1192
        %1195 = vrot.lane.b32.xlu0 %v988, 56
        %v1196 = vpop.permute.xlu0 %1195
        %v1199 = vsel %vm1044, %v1194, 0
        %1201 = vmatprep.subr.bf16.mxu0 0
        %1202 = vmatpush1.bf16.msra.mxu0 %v1196
        %1203 = vmatprep.subr.bf16.mxu0 0
        %1204 = vmatpush1.bf16.msra.mxu0 0
        %1205 = vmatprep.subr.bf16.mxu0 0
        %1206 = vmatpush1.bf16.msra.mxu0 0
        %1207 = vmatprep.subr.bf16.mxu0 0
        %1208 = vmatpush1.bf16.msra.mxu0 0
        %1209 = vmatprep.subr.bf16.mxu0 0
        %1210 = vmatpush1.bf16.msra.mxu0 0
        %1211 = vmatprep.subr.bf16.mxu0 0
        %1212 = vmatpush1.bf16.msra.mxu0 0
        %1213 = vmatprep.subr.bf16.mxu0 0
        %1214 = vmatpush1.bf16.msra.mxu0 0
        %1215 = vmatprep.subr.bf16.mxu0 0
        %1216 = vmatpush1.bf16.msra.mxu0 0
        %1217 = vmatprep.subr.bf16.mxu0 0
        %1218 = vmatpush1.bf16.msra.mxu0 0
        %1219 = vmatprep.subr.bf16.mxu0 0
        %1220 = vmatpush1.bf16.msra.mxu0 0
        %1221 = vmatprep.subr.bf16.mxu0 0
        %1222 = vmatpush1.bf16.msra.mxu0 0
        %1223 = vmatprep.subr.bf16.mxu0 0
        %1224 = vmatpush1.bf16.msra.mxu0 0
        %1225 = vmatprep.subr.bf16.mxu0 0
        %1226 = vmatpush1.bf16.msra.mxu0 0
        %1227 = vmatprep.subr.bf16.mxu0 0
        %1228 = vmatpush1.bf16.msra.mxu0 0
        %1229 = vmatprep.subr.bf16.mxu0 0
        %1230 = vmatpush1.bf16.msra.mxu0 0
        %1231 = vmatprep.subr.bf16.mxu0 0
        %1232 = vmatpush1.bf16.msra.mxu0 0
        %1233 = vmatprep.mubr.bf16.mxu0 0
        %1234 = vmatmul.mubr.bf16.gmra.mrb[0].mxu0 %v1199
        %v1235 = vpop.f32.mrb[0].mxu0
        %v1236 = vadd.f32 0.0, %v1235
        %v1237 = vpop.f32.mrb[0].mxu0
        %v1238 = vpop.f32.mrb[0].mxu0
        %v1239 = vadd.f32 0.0, %v1238
        %v1240 = vpop.f32.mrb[0].mxu0
        %1241 = vdwg.mxu0
        %v1242 = vpack.c.bf16 %v1239, %v1236
        %s1243 = scalar_lea.vmem %s490, 4 [#allocation11]
        %v1244 = vld [vmem:[%s1243] sm:$0xf]
        %v1246 = vsel %vm992, %v1242, 0
        %vm1248 = vcmask 1043456
        %v1250 = vsel %vm1248, %v1244, 0
        %1252 = vmatprep.subr.bf16.mxu0 0
        %1253 = vmatpush1.bf16.msra.mxu0 %v1250
        %1254 = vmatprep.subr.bf16.mxu0 0
        %1255 = vmatpush1.bf16.msra.mxu0 0
        %1256 = vmatprep.subr.bf16.mxu0 0
        %1257 = vmatpush1.bf16.msra.mxu0 0
        %1258 = vmatprep.subr.bf16.mxu0 0
        %1259 = vmatpush1.bf16.msra.mxu0 0
        %1260 = vmatprep.subr.bf16.mxu0 0
        %1261 = vmatpush1.bf16.msra.mxu0 0
        %1262 = vmatprep.subr.bf16.mxu0 0
        %1263 = vmatpush1.bf16.msra.mxu0 0
        %1264 = vmatprep.subr.bf16.mxu0 0
        %1265 = vmatpush1.bf16.msra.mxu0 0
        %1266 = vmatprep.subr.bf16.mxu0 0
        %1267 = vmatpush1.bf16.msra.mxu0 0
        %1268 = vmatprep.subr.bf16.mxu0 0
        %1269 = vmatpush1.bf16.msra.mxu0 0
        %1270 = vmatprep.subr.bf16.mxu0 0
        %1271 = vmatpush1.bf16.msra.mxu0 0
        %1272 = vmatprep.subr.bf16.mxu0 0
        %1273 = vmatpush1.bf16.msra.mxu0 0
        %1274 = vmatprep.subr.bf16.mxu0 0
        %1275 = vmatpush1.bf16.msra.mxu0 0
        %1276 = vmatprep.subr.bf16.mxu0 0
        %1277 = vmatpush1.bf16.msra.mxu0 0
        %1278 = vmatprep.subr.bf16.mxu0 0
        %1279 = vmatpush1.bf16.msra.mxu0 0
        %1280 = vmatprep.subr.bf16.mxu0 0
        %1281 = vmatpush1.bf16.msra.mxu0 0
        %1282 = vmatprep.subr.bf16.mxu0 0
        %1283 = vmatpush1.bf16.msra.mxu0 0
        %1284 = vmatprep.mubr.bf16.mxu0 0
        %1285 = vmatmul.mubr.bf16.gmra.mrb[0].mxu0 %v1246
        %v1286 = vpop.f32.mrb[0].mxu0
        %v1287 = vadd.f32 0.0, %v1286
        %v1288 = vpop.f32.mrb[0].mxu0
        %v1289 = vpop.f32.mrb[0].mxu0
        %v1290 = vadd.f32 0.0, %v1289
        %v1291 = vpop.f32.mrb[0].mxu0
        %1292 = vdwg.mxu0
        %v1294 = vsel %vm992, %v1115, 0
        %v1297 = vsel %vm1248, %v1116, 0
        %1299 = vmatprep.subr.bf16.mxu0 0
        %1300 = vmatpush1.bf16.msra.mxu0 %v1297
        %1301 = vmatprep.subr.bf16.mxu0 0
        %1302 = vmatpush1.bf16.msra.mxu0 0
        %1303 = vmatprep.subr.bf16.mxu0 0
        %1304 = vmatpush1.bf16.msra.mxu0 0
        %1305 = vmatprep.subr.bf16.mxu0 0
        %1306 = vmatpush1.bf16.msra.mxu0 0
        %1307 = vmatprep.subr.bf16.mxu0 0
        %1308 = vmatpush1.bf16.msra.mxu0 0
        %1309 = vmatprep.subr.bf16.mxu0 0
        %1310 = vmatpush1.bf16.msra.mxu0 0
        %1311 = vmatprep.subr.bf16.mxu0 0
        %1312 = vmatpush1.bf16.msra.mxu0 0
        %1313 = vmatprep.subr.bf16.mxu0 0
        %1314 = vmatpush1.bf16.msra.mxu0 0
        %1315 = vmatprep.subr.bf16.mxu0 0
        %1316 = vmatpush1.bf16.msra.mxu0 0
        %1317 = vmatprep.subr.bf16.mxu0 0
        %1318 = vmatpush1.bf16.msra.mxu0 0
        %1319 = vmatprep.subr.bf16.mxu0 0
        %1320 = vmatpush1.bf16.msra.mxu0 0
        %1321 = vmatprep.subr.bf16.mxu0 0
        %1322 = vmatpush1.bf16.msra.mxu0 0
        %1323 = vmatprep.subr.bf16.mxu0 0
        %1324 = vmatpush1.bf16.msra.mxu0 0
        %1325 = vmatprep.subr.bf16.mxu0 0
        %1326 = vmatpush1.bf16.msra.mxu0 0
        %1327 = vmatprep.subr.bf16.mxu0 0
        %1328 = vmatpush1.bf16.msra.mxu0 0
        %1329 = vmatprep.subr.bf16.mxu0 0
        %1330 = vmatpush1.bf16.msra.mxu0 0
        %1331 = vmatprep.mubr.bf16.mxu0 0
        %1332 = vmatmul.mubr.bf16.gmra.mrb[0].mxu0 %v1294
        %v1333 = vpop.f32.mrb[0].mxu0
        %v1334 = vadd.f32 %v1287, %v1333
        %v1335 = vpop.f32.mrb[0].mxu0
        %v1336 = vpop.f32.mrb[0].mxu0
        %v1337 = vadd.f32 %v1290, %v1336
        %v1338 = vpop.f32.mrb[0].mxu0
        %1339 = vdwg.mxu0
        %1340 = vrot.lane.b32.xlu0 %v988, 112
        %v1341 = vpop.permute.xlu0 %1340
        %1342 = vrot.lane.b32.xlu0 %v988, 80
        %v1343 = vpop.permute.xlu0 %1342
        %v1345 = vsel %vm992, %v1341, 0
        %v1348 = vsel %vm992, %v1343, 0
        %1350 = vmatprep.subr.bf16.mxu0 0
        %1351 = vmatpush1.bf16.xpose.msra.mxu0 %v1348
        %1352 = vmatprep.subr.bf16.mxu0 0
        %1353 = vmatpush1.bf16.xpose.msra.mxu0 0
        %1354 = vmatprep.subr.bf16.mxu0 0
        %1355 = vmatpush1.bf16.xpose.msra.mxu0 0
        %1356 = vmatprep.subr.bf16.mxu0 0
        %1357 = vmatpush1.bf16.xpose.msra.mxu0 0
        %1358 = vmatprep.subr.bf16.mxu0 0
        %1359 = vmatpush1.bf16.xpose.msra.mxu0 0
        %1360 = vmatprep.subr.bf16.mxu0 0
        %1361 = vmatpush1.bf16.xpose.msra.mxu0 0
        %1362 = vmatprep.subr.bf16.mxu0 0
        %1363 = vmatpush1.bf16.xpose.msra.mxu0 0
        %1364 = vmatprep.subr.bf16.mxu0 0
        %1365 = vmatpush1.bf16.xpose.msra.mxu0 0
        %1366 = vmatprep.subr.bf16.mxu0 0
        %1367 = vmatpush1.bf16.xpose.msra.mxu0 0
        %1368 = vmatprep.subr.bf16.mxu0 0
        %1369 = vmatpush1.bf16.xpose.msra.mxu0 0
        %1370 = vmatprep.subr.bf16.mxu0 0
        %1371 = vmatpush1.bf16.xpose.msra.mxu0 0
        %1372 = vmatprep.subr.bf16.mxu0 0
        %1373 = vmatpush1.bf16.xpose.msra.mxu0 0
        %1374 = vmatprep.subr.bf16.mxu0 0
        %1375 = vmatpush1.bf16.xpose.msra.mxu0 0
        %1376 = vmatprep.subr.bf16.mxu0 0
        %1377 = vmatpush1.bf16.xpose.msra.mxu0 0
        %1378 = vmatprep.subr.bf16.mxu0 0
        %1379 = vmatpush1.bf16.xpose.msra.mxu0 0
        %1380 = vmatprep.subr.bf16.mxu0 0
        %1381 = vmatpush1.bf16.xpose.msra.mxu0 0
        %1382 = vmatprep.mubr.bf16.mxu0 0
        %1383 = vmatmul.mubr.bf16.gmra.mrb[0].mxu0 %v1345
        %v1384 = vpop.f32.mrb[0].mxu0
        %v1385 = vadd.f32 0.0, %v1384
        %v1386 = vpop.f32.mrb[0].mxu0
        %v1387 = vpop.f32.mrb[0].mxu0
        %v1388 = vadd.f32 0.0, %v1387
        %v1389 = vpop.f32.mrb[0].mxu0
        %1390 = vdwg.mxu0
        %v1391 = vmul.f32 %v1385, 0.35355338
        %v1392 = vmul.f32 %v1388, 0.35355338
        %v1393 = vsel %vm986, %v1391, -1e+30
        %v1394 = vsel %vm987, %v1392, -1e+30
        %v1395 = vsel %vm1044, %v1393, -inf
        %1396 = vmax.xlane.f32.xlu0 %v1395
        %v1397 = vpop.xlane.xlu0 %1396
        %v1398 = vsel %vm1044, %v1394, -inf
        %1399 = vmax.xlane.f32.xlu0 %v1398
        %v1400 = vpop.xlane.xlu0 %1399
        %v1401 = vsub.f32 %v1393, %v1397
        %v1402 = vsub.f32 %v1394, %v1400
        %v1403 = vmul.f32 %v1401, 1.442695
        %v1404 = vpow.pop %v1403
        %v1405 = vmul.f32 %v1402, 1.442695
        %v1406 = vpow.pop %v1405
        %v1407 = vsel %vm1044, %v1404, 0.0
        %1408 = vadd.xlane.f32.xlu0 %v1407
        %v1409 = vpop.xlane.xlu0 %1408
        %v1410 = vsel %vm1044, %v1406, 0.0
        %1411 = vadd.xlane.f32.xlu0 %v1410
        %v1412 = vpop.xlane.xlu0 %1411
        %v1413 = vrcp.pop %v1409
        %v1414 = vrcp.pop %v1412
        %v1415 = vmul.f32 %v1404, %v1413
        %v1416 = vmul.f32 %v1406, %v1414
        %v1417 = vpack.c.bf16 %v1416, %v1415
        %1418 = vrot.lane.b32.xlu0 %v988, 48
        %v1419 = vpop.permute.xlu0 %1418
        %v1422 = vsel %vm1044, %v1417, 0
        %1424 = vmatprep.subr.bf16.mxu0 0
        %1425 = vmatpush1.bf16.msra.mxu0 %v1419
        %1426 = vmatprep.subr.bf16.mxu0 0
        %1427 = vmatpush1.bf16.msra.mxu0 0
        %1428 = vmatprep.subr.bf16.mxu0 0
        %1429 = vmatpush1.bf16.msra.mxu0 0
        %1430 = vmatprep.subr.bf16.mxu0 0
        %1431 = vmatpush1.bf16.msra.mxu0 0
        %1432 = vmatprep.subr.bf16.mxu0 0
        %1433 = vmatpush1.bf16.msra.mxu0 0
        %1434 = vmatprep.subr.bf16.mxu0 0
        %1435 = vmatpush1.bf16.msra.mxu0 0
        %1436 = vmatprep.subr.bf16.mxu0 0
        %1437 = vmatpush1.bf16.msra.mxu0 0
        %1438 = vmatprep.subr.bf16.mxu0 0
        %1439 = vmatpush1.bf16.msra.mxu0 0
        %1440 = vmatprep.subr.bf16.mxu0 0
        %1441 = vmatpush1.bf16.msra.mxu0 0
        %1442 = vmatprep.subr.bf16.mxu0 0
        %1443 = vmatpush1.bf16.msra.mxu0 0
        %1444 = vmatprep.subr.bf16.mxu0 0
        %1445 = vmatpush1.bf16.msra.mxu0 0
        %1446 = vmatprep.subr.bf16.mxu0 0
        %1447 = vmatpush1.bf16.msra.mxu0 0
        %1448 = vmatprep.subr.bf16.mxu0 0
        %1449 = vmatpush1.bf16.msra.mxu0 0
        %1450 = vmatprep.subr.bf16.mxu0 0
        %1451 = vmatpush1.bf16.msra.mxu0 0
        %1452 = vmatprep.subr.bf16.mxu0 0
        %1453 = vmatpush1.bf16.msra.mxu0 0
        %1454 = vmatprep.subr.bf16.mxu0 0
        %1455 = vmatpush1.bf16.msra.mxu0 0
        %1456 = vmatprep.mubr.bf16.mxu0 0
        %1457 = vmatmul.mubr.bf16.gmra.mrb[0].mxu0 %v1422
        %v1458 = vpop.f32.mrb[0].mxu0
        %v1459 = vadd.f32 0.0, %v1458
        %v1460 = vpop.f32.mrb[0].mxu0
        %v1461 = vpop.f32.mrb[0].mxu0
        %v1462 = vadd.f32 0.0, %v1461
        %v1463 = vpop.f32.mrb[0].mxu0
        %1464 = vdwg.mxu0
        %v1465 = vpack.c.bf16 %v1462, %v1459
        %s1466 = scalar_lea.vmem %s490, 8 [#allocation11]
        %v1467 = vld [vmem:[%s1466] sm:$0xf]
        %v1469 = vsel %vm992, %v1465, 0
        %v1472 = vsel %vm1248, %v1467, 0
        %1474 = vmatprep.subr.bf16.mxu0 0
        %1475 = vmatpush1.bf16.msra.mxu0 %v1472
        %1476 = vmatprep.subr.bf16.mxu0 0
        %1477 = vmatpush1.bf16.msra.mxu0 0
        %1478 = vmatprep.subr.bf16.mxu0 0
        %1479 = vmatpush1.bf16.msra.mxu0 0
        %1480 = vmatprep.subr.bf16.mxu0 0
        %1481 = vmatpush1.bf16.msra.mxu0 0
        %1482 = vmatprep.subr.bf16.mxu0 0
        %1483 = vmatpush1.bf16.msra.mxu0 0
        %1484 = vmatprep.subr.bf16.mxu0 0
        %1485 = vmatpush1.bf16.msra.mxu0 0
        %1486 = vmatprep.subr.bf16.mxu0 0
        %1487 = vmatpush1.bf16.msra.mxu0 0
        %1488 = vmatprep.subr.bf16.mxu0 0
        %1489 = vmatpush1.bf16.msra.mxu0 0
        %1490 = vmatprep.subr.bf16.mxu0 0
        %1491 = vmatpush1.bf16.msra.mxu0 0
        %1492 = vmatprep.subr.bf16.mxu0 0
        %1493 = vmatpush1.bf16.msra.mxu0 0
        %1494 = vmatprep.subr.bf16.mxu0 0
        %1495 = vmatpush1.bf16.msra.mxu0 0
        %1496 = vmatprep.subr.bf16.mxu0 0
        %1497 = vmatpush1.bf16.msra.mxu0 0
        %1498 = vmatprep.subr.bf16.mxu0 0
        %1499 = vmatpush1.bf16.msra.mxu0 0
        %1500 = vmatprep.subr.bf16.mxu0 0
        %1501 = vmatpush1.bf16.msra.mxu0 0
        %1502 = vmatprep.subr.bf16.mxu0 0
        %1503 = vmatpush1.bf16.msra.mxu0 0
        %1504 = vmatprep.subr.bf16.mxu0 0
        %1505 = vmatpush1.bf16.msra.mxu0 0
        %1506 = vmatprep.mubr.bf16.mxu0 0
        %1507 = vmatmul.mubr.bf16.gmra.mrb[0].mxu0 %v1469
        %v1508 = vpop.f32.mrb[0].mxu0
        %v1509 = vadd.f32 0.0, %v1508
        %v1510 = vpop.f32.mrb[0].mxu0
        %v1511 = vpop.f32.mrb[0].mxu0
        %v1512 = vadd.f32 0.0, %v1511
        %v1513 = vpop.f32.mrb[0].mxu0
        %1514 = vdwg.mxu0
        %v1515 = vadd.f32 %v1334, %v1509
        %v1516 = vadd.f32 %v1337, %v1512
        %1517 = vrot.lane.b32.xlu0 %v988, 104
        %v1518 = vpop.permute.xlu0 %1517
        %1519 = vrot.lane.b32.xlu0 %v988, 72
        %v1520 = vpop.permute.xlu0 %1519
        %v1522 = vsel %vm992, %v1518, 0
        %v1525 = vsel %vm992, %v1520, 0
        %1527 = vmatprep.subr.bf16.mxu0 0
        %1528 = vmatpush1.bf16.xpose.msra.mxu0 %v1525
        %1529 = vmatprep.subr.bf16.mxu0 0
        %1530 = vmatpush1.bf16.xpose.msra.mxu0 0
        %1531 = vmatprep.subr.bf16.mxu0 0
        %1532 = vmatpush1.bf16.xpose.msra.mxu0 0
        %1533 = vmatprep.subr.bf16.mxu0 0
        %1534 = vmatpush1.bf16.xpose.msra.mxu0 0
        %1535 = vmatprep.subr.bf16.mxu0 0
        %1536 = vmatpush1.bf16.xpose.msra.mxu0 0
        %1537 = vmatprep.subr.bf16.mxu0 0
        %1538 = vmatpush1.bf16.xpose.msra.mxu0 0
        %1539 = vmatprep.subr.bf16.mxu0 0
        %1540 = vmatpush1.bf16.xpose.msra.mxu0 0
        %1541 = vmatprep.subr.bf16.mxu0 0
        %1542 = vmatpush1.bf16.xpose.msra.mxu0 0
        %1543 = vmatprep.subr.bf16.mxu0 0
        %1544 = vmatpush1.bf16.xpose.msra.mxu0 0
        %1545 = vmatprep.subr.bf16.mxu0 0
        %1546 = vmatpush1.bf16.xpose.msra.mxu0 0
        %1547 = vmatprep.subr.bf16.mxu0 0
        %1548 = vmatpush1.bf16.xpose.msra.mxu0 0
        %1549 = vmatprep.subr.bf16.mxu0 0
        %1550 = vmatpush1.bf16.xpose.msra.mxu0 0
        %1551 = vmatprep.subr.bf16.mxu0 0
        %1552 = vmatpush1.bf16.xpose.msra.mxu0 0
        %1553 = vmatprep.subr.bf16.mxu0 0
        %1554 = vmatpush1.bf16.xpose.msra.mxu0 0
        %1555 = vmatprep.subr.bf16.mxu0 0
        %1556 = vmatpush1.bf16.xpose.msra.mxu0 0
        %1557 = vmatprep.subr.bf16.mxu0 0
        %1558 = vmatpush1.bf16.xpose.msra.mxu0 0
        %1559 = vmatprep.mubr.bf16.mxu0 0
        %1560 = vmatmul.mubr.bf16.gmra.mrb[0].mxu0 %v1522
        %v1561 = vpop.f32.mrb[0].mxu0
        %v1562 = vadd.f32 0.0, %v1561
        %v1563 = vpop.f32.mrb[0].mxu0
        %v1564 = vpop.f32.mrb[0].mxu0
        %v1565 = vadd.f32 0.0, %v1564
        %v1566 = vpop.f32.mrb[0].mxu0
        %1567 = vdwg.mxu0
        %v1568 = vmul.f32 %v1562, 0.35355338
        %v1569 = vmul.f32 %v1565, 0.35355338
        %v1570 = vsel %vm986, %v1568, -1e+30
        %v1571 = vsel %vm987, %v1569, -1e+30
        %v1572 = vsel %vm1044, %v1570, -inf
        %1573 = vmax.xlane.f32.xlu0 %v1572
        %v1574 = vpop.xlane.xlu0 %1573
        %v1575 = vsel %vm1044, %v1571, -inf
        %1576 = vmax.xlane.f32.xlu0 %v1575
        %v1577 = vpop.xlane.xlu0 %1576
        %v1578 = vsub.f32 %v1570, %v1574
        %v1579 = vsub.f32 %v1571, %v1577
        %v1580 = vmul.f32 %v1578, 1.442695
        %v1581 = vpow.pop %v1580
        %v1582 = vmul.f32 %v1579, 1.442695
        %v1583 = vpow.pop %v1582
        %v1584 = vsel %vm1044, %v1581, 0.0
        %1585 = vadd.xlane.f32.xlu0 %v1584
        %v1586 = vpop.xlane.xlu0 %1585
        %v1587 = vsel %vm1044, %v1583, 0.0
        %1588 = vadd.xlane.f32.xlu0 %v1587
        %v1589 = vpop.xlane.xlu0 %1588
        %v1590 = vrcp.pop %v1586
        %v1591 = vrcp.pop %v1589
        %v1592 = vmul.f32 %v1581, %v1590
        %v1593 = vmul.f32 %v1583, %v1591
        %v1594 = vpack.c.bf16 %v1593, %v1592
        %1595 = vrot.lane.b32.xlu0 %v988, 40
        %v1596 = vpop.permute.xlu0 %1595
        %v1599 = vsel %vm1044, %v1594, 0
        %1601 = vmatprep.subr.bf16.mxu0 0
        %1602 = vmatpush1.bf16.msra.mxu0 %v1596
        %1603 = vmatprep.subr.bf16.mxu0 0
        %1604 = vmatpush1.bf16.msra.mxu0 0
        %1605 = vmatprep.subr.bf16.mxu0 0
        %1606 = vmatpush1.bf16.msra.mxu0 0
        %1607 = vmatprep.subr.bf16.mxu0 0
        %1608 = vmatpush1.bf16.msra.mxu0 0
        %1609 = vmatprep.subr.bf16.mxu0 0
        %1610 = vmatpush1.bf16.msra.mxu0 0
        %1611 = vmatprep.subr.bf16.mxu0 0
        %1612 = vmatpush1.bf16.msra.mxu0 0
        %1613 = vmatprep.subr.bf16.mxu0 0
        %1614 = vmatpush1.bf16.msra.mxu0 0
        %1615 = vmatprep.subr.bf16.mxu0 0
        %1616 = vmatpush1.bf16.msra.mxu0 0
        %1617 = vmatprep.subr.bf16.mxu0 0
        %1618 = vmatpush1.bf16.msra.mxu0 0
        %1619 = vmatprep.subr.bf16.mxu0 0
        %1620 = vmatpush1.bf16.msra.mxu0 0
        %1621 = vmatprep.subr.bf16.mxu0 0
        %1622 = vmatpush1.bf16.msra.mxu0 0
        %1623 = vmatprep.subr.bf16.mxu0 0
        %1624 = vmatpush1.bf16.msra.mxu0 0
        %1625 = vmatprep.subr.bf16.mxu0 0
        %1626 = vmatpush1.bf16.msra.mxu0 0
        %1627 = vmatprep.subr.bf16.mxu0 0
        %1628 = vmatpush1.bf16.msra.mxu0 0
        %1629 = vmatprep.subr.bf16.mxu0 0
        %1630 = vmatpush1.bf16.msra.mxu0 0
        %1631 = vmatprep.subr.bf16.mxu0 0
        %1632 = vmatpush1.bf16.msra.mxu0 0
        %1633 = vmatprep.mubr.bf16.mxu0 0
        %1634 = vmatmul.mubr.bf16.gmra.mrb[0].mxu0 %v1599
        %v1635 = vpop.f32.mrb[0].mxu0
        %v1636 = vadd.f32 0.0, %v1635
        %v1637 = vpop.f32.mrb[0].mxu0
        %v1638 = vpop.f32.mrb[0].mxu0
        %v1639 = vadd.f32 0.0, %v1638
        %v1640 = vpop.f32.mrb[0].mxu0
        %1641 = vdwg.mxu0
        %v1642 = vpack.c.bf16 %v1639, %v1636
        %s1643 = scalar_lea.vmem %s490, 12 [#allocation11]
        %v1644 = vld [vmem:[%s1643] sm:$0xf]
        %v1646 = vsel %vm992, %v1642, 0
        %v1649 = vsel %vm1248, %v1644, 0
        %1651 = vmatprep.subr.bf16.mxu0 0
        %1652 = vmatpush1.bf16.msra.mxu0 %v1649
        %1653 = vmatprep.subr.bf16.mxu0 0
        %1654 = vmatpush1.bf16.msra.mxu0 0
        %1655 = vmatprep.subr.bf16.mxu0 0
        %1656 = vmatpush1.bf16.msra.mxu0 0
        %1657 = vmatprep.subr.bf16.mxu0 0
        %1658 = vmatpush1.bf16.msra.mxu0 0
        %1659 = vmatprep.subr.bf16.mxu0 0
        %1660 = vmatpush1.bf16.msra.mxu0 0
        %1661 = vmatprep.subr.bf16.mxu0 0
        %1662 = vmatpush1.bf16.msra.mxu0 0
        %1663 = vmatprep.subr.bf16.mxu0 0
        %1664 = vmatpush1.bf16.msra.mxu0 0
        %1665 = vmatprep.subr.bf16.mxu0 0
        %1666 = vmatpush1.bf16.msra.mxu0 0
        %1667 = vmatprep.subr.bf16.mxu0 0
        %1668 = vmatpush1.bf16.msra.mxu0 0
        %1669 = vmatprep.subr.bf16.mxu0 0
        %1670 = vmatpush1.bf16.msra.mxu0 0
        %1671 = vmatprep.subr.bf16.mxu0 0
        %1672 = vmatpush1.bf16.msra.mxu0 0
        %1673 = vmatprep.subr.bf16.mxu0 0
        %1674 = vmatpush1.bf16.msra.mxu0 0
        %1675 = vmatprep.subr.bf16.mxu0 0
        %1676 = vmatpush1.bf16.msra.mxu0 0
        %1677 = vmatprep.subr.bf16.mxu0 0
        %1678 = vmatpush1.bf16.msra.mxu0 0
        %1679 = vmatprep.subr.bf16.mxu0 0
        %1680 = vmatpush1.bf16.msra.mxu0 0
        %1681 = vmatprep.subr.bf16.mxu0 0
        %1682 = vmatpush1.bf16.msra.mxu0 0
        %1683 = vmatprep.mubr.bf16.mxu0 0
        %1684 = vmatmul.mubr.bf16.gmra.mrb[0].mxu0 %v1646
        %v1685 = vpop.f32.mrb[0].mxu0
        %v1686 = vadd.f32 0.0, %v1685
        %v1687 = vpop.f32.mrb[0].mxu0
        %v1688 = vpop.f32.mrb[0].mxu0
        %v1689 = vadd.f32 0.0, %v1688
        %v1690 = vpop.f32.mrb[0].mxu0
        %1691 = vdwg.mxu0
        %v1692 = vadd.f32 %v1515, %v1686
        %v1693 = vadd.f32 %v1516, %v1689
        %v1694 = vld [vmem:[%s586 + $0x4] sm:$0x1]
        %v1695 = vlaneseq
        %v1696 = vshrl.u32 %v1695, 7
        %v1697 = vsub.s32 0, %v1696
        %v1698 = vrot.slane %v1694, %v1697
        %v1699 = vadd.f32 %v1692, %v1698
        %v1700 = vadd.f32 %v1693, %v1698
        %v1701 = vadd.f32 %v1699, %v596
        %v1702 = vadd.f32 %v1700, %v597
        %v1703 = vld [vmem:[%s586 + $0x8] sm:$0x1]
        %v1704 = vlaneseq
        %v1705 = vshrl.u32 %v1704, 7
        %v1706 = vsub.s32 0, %v1705
        %v1707 = vrot.slane %v1703, %v1706
        %v1708 = vmul.f32 %v1701, %v1707
        %v1709 = vmul.f32 %v1702, %v1707
        %v1710 = vld [vmem:[%s586 + $0x9] sm:$0x1]
        %v1711 = vlaneseq
        %v1712 = vshrl.u32 %v1711, 7
        %v1713 = vsub.s32 0, %v1712
        %v1714 = vrot.slane %v1710, %v1713
        %v1715 = vadd.f32 %v1708, %v1714
        %v1716 = vadd.f32 %v1709, %v1714
        %v1717 = vadd.f32 %v861, %v1715
        %v1718 = vadd.f32 %v862, %v1716
        %v1719 = vpack.c.bf16 %v1718, %v1717
        %v1720 = vld [vmem:[%s499] sm:$0xf]
        %v1721 = vld [vmem:[%s499 + $0x4] sm:$0xf]
        %v1722 = vld [vmem:[%s499 + $0x8] sm:$0xf]
        %v1723 = vld [vmem:[%s499 + $0xc] sm:$0xf]
        %v1724 = vld [vmem:[%s499 + $0x10] sm:$0xf]
        %v1725 = vld [vmem:[%s499 + $0x14] sm:$0xf]
        %v1726 = vld [vmem:[%s499 + $0x18] sm:$0xf]
        %v1727 = vld [vmem:[%s499 + $0x1c] sm:$0xf]
        %v1728 = vld [vmem:[%s499 + $0x20] sm:$0xf]
        %v1729 = vld [vmem:[%s499 + $0x24] sm:$0xf]
        %v1730 = vld [vmem:[%s499 + $0x28] sm:$0xf]
        %v1731 = vld [vmem:[%s499 + $0x2c] sm:$0xf]
        %v1732 = vld [vmem:[%s499 + $0x30] sm:$0xf]
        %v1733 = vld [vmem:[%s499 + $0x34] sm:$0xf]
        %v1734 = vld [vmem:[%s499 + $0x38] sm:$0xf]
        %v1735 = vld [vmem:[%s499 + $0x3c] sm:$0xf]
        %v1736 = vld [vmem:[%s586 + $0x1] sm:$0x1]
        %v1737 = vlaneseq
        %v1738 = vshrl.u32 %v1737, 7
        %v1739 = vsub.s32 0, %v1738
        %v1740 = vrot.slane %v1736, %v1739
        %v1757 = vunpack.c.l.b16 %v1720
        %v1758 = vunpack.c.l.b16 %v1721
        %v1759 = vunpack.c.l.b16 %v1722
        %v1760 = vunpack.c.l.b16 %v1723
        %v1761 = vunpack.c.l.b16 %v1724
        %v1762 = vunpack.c.l.b16 %v1725
        %v1763 = vunpack.c.l.b16 %v1726
        %v1764 = vunpack.c.l.b16 %v1727
        %v1765 = vunpack.c.l.b16 %v1728
        %v1766 = vunpack.c.l.b16 %v1729
        %v1767 = vunpack.c.l.b16 %v1730
        %v1768 = vunpack.c.l.b16 %v1731
        %v1769 = vunpack.c.l.b16 %v1732
        %v1770 = vunpack.c.l.b16 %v1733
        %v1771 = vunpack.c.l.b16 %v1734
        %v1772 = vunpack.c.l.b16 %v1735
        %v1773 = vpack.c.b16 %v1758, %v1757
        %v1774 = vpack.c.b16 %v1760, %v1759
        %v1775 = vpack.c.b16 %v1762, %v1761
        %v1776 = vpack.c.b16 %v1764, %v1763
        %v1777 = vpack.c.b16 %v1766, %v1765
        %v1778 = vpack.c.b16 %v1768, %v1767
        %v1779 = vpack.c.b16 %v1770, %v1769
        %v1780 = vpack.c.b16 %v1772, %v1771
        %1789 = vmatprep.subr.bf16.mxu0 0
        %1790 = vmatpush1.bf16.msra.mxu0 %v1773
        %1791 = vmatprep.subr.bf16.mxu0 0
        %1792 = vmatpush1.bf16.msra.mxu0 %v1774
        %1793 = vmatprep.subr.bf16.mxu0 0
        %1794 = vmatpush1.bf16.msra.mxu0 %v1775
        %1795 = vmatprep.subr.bf16.mxu0 0
        %1796 = vmatpush1.bf16.msra.mxu0 %v1776
        %1797 = vmatprep.subr.bf16.mxu0 0
        %1798 = vmatpush1.bf16.msra.mxu0 %v1777
        %1799 = vmatprep.subr.bf16.mxu0 0
        %1800 = vmatpush1.bf16.msra.mxu0 %v1778
        %1801 = vmatprep.subr.bf16.mxu0 0
        %1802 = vmatpush1.bf16.msra.mxu0 %v1779
        %1803 = vmatprep.subr.bf16.mxu0 0
        %1804 = vmatpush1.bf16.msra.mxu0 %v1780
        %1805 = vmatprep.subr.bf16.mxu0 0
        %1806 = vmatpush1.bf16.msra.mxu0 0
        %1807 = vmatprep.subr.bf16.mxu0 0
        %1808 = vmatpush1.bf16.msra.mxu0 0
        %1809 = vmatprep.subr.bf16.mxu0 0
        %1810 = vmatpush1.bf16.msra.mxu0 0
        %1811 = vmatprep.subr.bf16.mxu0 0
        %1812 = vmatpush1.bf16.msra.mxu0 0
        %1813 = vmatprep.subr.bf16.mxu0 0
        %1814 = vmatpush1.bf16.msra.mxu0 0
        %1815 = vmatprep.subr.bf16.mxu0 0
        %1816 = vmatpush1.bf16.msra.mxu0 0
        %1817 = vmatprep.subr.bf16.mxu0 0
        %1818 = vmatpush1.bf16.msra.mxu0 0
        %1819 = vmatprep.subr.bf16.mxu0 0
        %1820 = vmatpush1.bf16.msra.mxu0 0
        %1821 = vmatprep.mubr.bf16.mxu0 0
        %1822 = vmatmul.mubr.bf16.gmra.mrb[0].mxu0 %v1719
        %v1823 = vpop.f32.mrb[0].mxu0
        %v1824 = vadd.f32 %v1740, %v1823
        %v1825 = vpop.f32.mrb[0].mxu0
        %v1826 = vpop.f32.mrb[0].mxu0
        %v1827 = vadd.f32 %v1740, %v1826
        %v1828 = vpop.f32.mrb[0].mxu0
        %1829 = vdwg.mxu0
        %v1830 = vmax.f32 %v1824, 0.0
        %v1831 = vmax.f32 %v1827, 0.0
        %v1832 = vpack.c.bf16 %v1831, %v1830
        %v1833 = vld [vmem:[%s508] sm:$0xf]
        %v1834 = vld [vmem:[%s508 + $0x4] sm:$0xf]
        %v1835 = vld [vmem:[%s508 + $0x8] sm:$0xf]
        %v1836 = vld [vmem:[%s508 + $0xc] sm:$0xf]
        %v1837 = vld [vmem:[%s508 + $0x10] sm:$0xf]
        %v1838 = vld [vmem:[%s508 + $0x14] sm:$0xf]
        %v1839 = vld [vmem:[%s508 + $0x18] sm:$0xf]
        %v1840 = vld [vmem:[%s508 + $0x1c] sm:$0xf]
        %v1841 = vld [vmem:[%s508 + $0x20] sm:$0xf]
        %v1842 = vld [vmem:[%s508 + $0x24] sm:$0xf]
        %v1843 = vld [vmem:[%s508 + $0x28] sm:$0xf]
        %v1844 = vld [vmem:[%s508 + $0x2c] sm:$0xf]
        %v1845 = vld [vmem:[%s508 + $0x30] sm:$0xf]
        %v1846 = vld [vmem:[%s508 + $0x34] sm:$0xf]
        %v1847 = vld [vmem:[%s508 + $0x38] sm:$0xf]
        %v1848 = vld [vmem:[%s508 + $0x3c] sm:$0xf]
        %v1849 = vld [vmem:[%s586 + $0x5] sm:$0x1]
        %v1850 = vlaneseq
        %v1851 = vshrl.u32 %v1850, 7
        %v1852 = vsub.s32 0, %v1851
        %v1853 = vrot.slane %v1849, %v1852
        %v1870 = vunpack.c.l.b16 %v1833
        %v1871 = vunpack.c.l.b16 %v1834
        %v1872 = vunpack.c.l.b16 %v1835
        %v1873 = vunpack.c.l.b16 %v1836
        %v1874 = vunpack.c.l.b16 %v1837
        %v1875 = vunpack.c.l.b16 %v1838
        %v1876 = vunpack.c.l.b16 %v1839
        %v1877 = vunpack.c.l.b16 %v1840
        %v1878 = vunpack.c.l.b16 %v1841
        %v1879 = vunpack.c.l.b16 %v1842
        %v1880 = vunpack.c.l.b16 %v1843
        %v1881 = vunpack.c.l.b16 %v1844
        %v1882 = vunpack.c.l.b16 %v1845
        %v1883 = vunpack.c.l.b16 %v1846
        %v1884 = vunpack.c.l.b16 %v1847
        %v1885 = vunpack.c.l.b16 %v1848
        %v1886 = vpack.c.b16 %v1871, %v1870
        %v1887 = vpack.c.b16 %v1873, %v1872
        %v1888 = vpack.c.b16 %v1875, %v1874
        %v1889 = vpack.c.b16 %v1877, %v1876
        %v1890 = vpack.c.b16 %v1879, %v1878
        %v1891 = vpack.c.b16 %v1881, %v1880
        %v1892 = vpack.c.b16 %v1883, %v1882
        %v1893 = vpack.c.b16 %v1885, %v1884
        %1902 = vmatprep.subr.bf16.mxu0 0
        %1903 = vmatpush1.bf16.msra.mxu0 %v1886
        %1904 = vmatprep.subr.bf16.mxu0 0
        %1905 = vmatpush1.bf16.msra.mxu0 %v1887
        %1906 = vmatprep.subr.bf16.mxu0 0
        %1907 = vmatpush1.bf16.msra.mxu0 %v1888
        %1908 = vmatprep.subr.bf16.mxu0 0
        %1909 = vmatpush1.bf16.msra.mxu0 %v1889
        %1910 = vmatprep.subr.bf16.mxu0 0
        %1911 = vmatpush1.bf16.msra.mxu0 %v1890
        %1912 = vmatprep.subr.bf16.mxu0 0
        %1913 = vmatpush1.bf16.msra.mxu0 %v1891
        %1914 = vmatprep.subr.bf16.mxu0 0
        %1915 = vmatpush1.bf16.msra.mxu0 %v1892
        %1916 = vmatprep.subr.bf16.mxu0 0
        %1917 = vmatpush1.bf16.msra.mxu0 %v1893
        %1918 = vmatprep.subr.bf16.mxu0 0
        %1919 = vmatpush1.bf16.msra.mxu0 0
        %1920 = vmatprep.subr.bf16.mxu0 0
        %1921 = vmatpush1.bf16.msra.mxu0 0
        %1922 = vmatprep.subr.bf16.mxu0 0
        %1923 = vmatpush1.bf16.msra.mxu0 0
        %1924 = vmatprep.subr.bf16.mxu0 0
        %1925 = vmatpush1.bf16.msra.mxu0 0
        %1926 = vmatprep.subr.bf16.mxu0 0
        %1927 = vmatpush1.bf16.msra.mxu0 0
        %1928 = vmatprep.subr.bf16.mxu0 0
        %1929 = vmatpush1.bf16.msra.mxu0 0
        %1930 = vmatprep.subr.bf16.mxu0 0
        %1931 = vmatpush1.bf16.msra.mxu0 0
        %1932 = vmatprep.subr.bf16.mxu0 0
        %1933 = vmatpush1.bf16.msra.mxu0 0
        %1934 = vmatprep.mubr.bf16.mxu0 0
        %1935 = vmatmul.mubr.bf16.gmra.mrb[0].mxu0 %v1832
        %v1936 = vpop.f32.mrb[0].mxu0
        %v1937 = vadd.f32 %v1853, %v1936
        %v1938 = vpop.f32.mrb[0].mxu0
        %v1939 = vpop.f32.mrb[0].mxu0
        %v1940 = vadd.f32 %v1853, %v1939
        %v1941 = vpop.f32.mrb[0].mxu0
        %1942 = vdwg.mxu0
        %v1943 = vadd.f32 %v1717, %v1937
        %v1944 = vadd.f32 %v1718, %v1940
        %v1945 = vld [vmem:[%s586 + $0xa] sm:$0x1]
        %v1946 = vlaneseq
        %v1947 = vshrl.u32 %v1946, 7
        %v1948 = vsub.s32 0, %v1947
        %v1949 = vrot.slane %v1945, %v1948
        %v1950 = vmul.f32 %v1943, %v1949
        %v1951 = vmul.f32 %v1944, %v1949
        %v1952 = vld [vmem:[%s586 + $0xb] sm:$0x1]
        %v1953 = vlaneseq
        %v1954 = vshrl.u32 %v1953, 7
        %v1955 = vsub.s32 0, %v1954
        %v1956 = vrot.slane %v1952, %v1955
        %v1957 = vadd.f32 %v1950, %v1956
        %v1958 = vadd.f32 %v1951, %v1956
        %1959 = vst [vmem:[#allocation2] sm:$0xff] %v1957
        %1960 = vst [vmem:[#allocation2 + $0x8] sm:$0xff] %v1958
        %1961 = vst [vmem:[%s13] sm:$0xff] %v1957
        %1962 = vst [vmem:[%s13 + $0x8] sm:$0xff] %v1958
        // Predicated region
        $region96: #{forward.4} parent=63 // pred_check
          %p1963 = pneg %p316
        $region97: #{forward.4} parent=63 // pred_check_branch
          %1965 = sbr.rel (%p1963) target = $region99
        $region98: #{forward.4} parent=63 // pred_region
          _
        $region99: #{forward.4} parent=63 // pred_fallthru
          _
        // Predicated region
        $region100: #{forward.4} parent=63 // pred_check
          %p1966 = pneg %p316
        $region101: #{forward.4} parent=63 // pred_check_branch
          %1968 = sbr.rel (%p1966) target = $region103
        $region102: #{forward.4} parent=63 // pred_region
          _
        $region103: #{forward.4} parent=63 // pred_fallthru
          _
      $region64: #{forward.4} parent=5 // pred_fallthru
        _
      %p1969 = scmp.le.s32.totalorder 2, %s32
      // Predicated region
      $region104: #{forward.4} parent=5 // pred_check
        %p1970 = pneg %p1969
      $region105: #{forward.4} parent=5 // pred_check_branch
        %1972 = sbr.rel (%p1970) target = $region107
      $region106: #{forward.4} parent=5 // pred_region
        %s1973 = ssub.s32 %s32, 2
      $region107: #{forward.4} parent=5 // pred_fallthru
        _
    $region6: #{forward.4} parent=1 // loop_footer
      %s36 = sadd.s32 1, %s32
    $region7: #{forward.4} parent=1 // loop_footer_branch
      %31 = sbr.rel target = $region3
    $region8: #{forward.4} parent=1 // loop_exit
      _
    %1974 = vsyncpa [#allocation8], 1
    %s1975 = scalar_lea.sflag [#allocation8], 1
    %1976 = vsyncpa %s1975, 1
    %1977 = vsyncpa [#allocation10], 1
    %s1978 = scalar_lea.sflag [#allocation10], 1
    %1979 = vsyncpa %s1978, 1
    %1980 = vsyncpa [#allocation13], 1
    %s1981 = scalar_lea.sflag [#allocation13], 1
    %1982 = vsyncpa %s1981, 1

</llo_original>
